<compile_context>
chip_gen: v5e
topology: v5e:2x2
jax: 0.10.0
libtpu: 0.0.40
codegen_flags: <defaults>
</compile_context>

<pallas_src>
import jax
import jax.numpy as jnp
from jax.experimental import pallas as pl
from jax.experimental.pallas import tpu as pltpu

IN_DIM = 128            # generalized=False -> nn.Linear(128, 400)
HID = 400               # logical hidden width (PyTorch model)
HID_PAD = 512           # padded hidden width: 4 full 128-lane vregs
OUT_DIM = 1             # logical output width
OUT_PAD = 128           # padded head width (MXU N granularity)
OUT_ROWS = 8            # sublane rows kept in the lane-packed output block
B_TILE_MAX = 512        # rows per grid step for large batches
COMPUTE_DTYPE = jnp.bfloat16


def _round_up(n, m):
    return ((n + m - 1) // m) * m


def _mlp_kernel(x_ref, w1_ref, b1_ref, w2_ref, b2_ref,
                w3_ref, b3_ref, w4_ref, b4_ref, o_ref):
    """Fused 4-layer MLP on one [b_tile, 128] batch tile.

    Matmuls run on the MXU in bf16 with f32 accumulation; bias-add + ReLU run
    on the VPU in f32 and the activation is re-materialized in bf16 for the
    next matmul.  The head result is lane-packed: o_ref is [8, b_tile] with
    row 0 carrying the real prediction for each batch row.
    """
    # Layer 1: [bt, 128] @ [128, 512]
    h = jnp.dot(x_ref[...], w1_ref[...], preferred_element_type=jnp.float32)
    h = jnp.maximum(h + b1_ref[...], 0.0).astype(COMPUTE_DTYPE)
    # Layer 2: [bt, 512] @ [512, 512]
    h = jnp.dot(h, w2_ref[...], preferred_element_type=jnp.float32)
    h = jnp.maximum(h + b2_ref[...], 0.0).astype(COMPUTE_DTYPE)
    # Layer 3: [bt, 512] @ [512, 512]
    h = jnp.dot(h, w3_ref[...], preferred_element_type=jnp.float32)
    h = jnp.maximum(h + b3_ref[...], 0.0).astype(COMPUTE_DTYPE)
    # Head: [bt, 512] @ [512, 128]; only column 0 is real (rest zero-padded).
    o = jnp.dot(h, w4_ref[...], preferred_element_type=jnp.float32) + b4_ref[...]
    # Lane-pack: transpose (XLU, free slot) and keep the first 8 rows so the
    # output store is a small, lane-dense [8, b_tile] block.
    o_ref[...] = jnp.transpose(o)[:OUT_ROWS, :]


def _batch_tiling(B):
    """Bucketed batch padding + tile size (all static, trace-time Python)."""
    if B <= 128:
        return 128, 128, 1                      # single tile; DMA/launch bound
    B_pad = _round_up(B, 256)                   # bucket -> bounded recompiles
    num_tiles = max(2, -(-B_pad // B_TILE_MAX))  # >=2 steps: both v7x TCs busy
    if num_tiles % 2:
        num_tiles += 1                          # even split across 2 cores
    b_tile = _round_up(-(-B_pad // num_tiles), 128)
    return b_tile * num_tiles, b_tile, num_tiles


@jax.jit
def latency_predictor_forward(x, padded_params):
    """x: [B, 128] (any float/int dtype; cast like the PyTorch forward).
    padded_params: output of prepare_params().  Returns [B, 1] float32."""
    w1, b1, w2, b2, w3, b3, w4, b4 = padded_params
    B = x.shape[0]
    B_pad, b_tile, num_tiles = _batch_tiling(B)

    # Single cast straight to the compute dtype, then pad (no f32 detour).
    x_p = x.astype(COMPUTE_DTYPE)
    if B_pad != B:
        x_p = jnp.pad(x_p, ((0, B_pad - B), (0, 0)))

    def full(arr):
        # Whole-array block with a constant index map: fetched once, reused by
        # every batch tile (no per-step re-DMA since the block index is fixed).
        return pl.BlockSpec(arr.shape, lambda i: (0,) * arr.ndim)

    out = pl.pallas_call(
        _mlp_kernel,
        out_shape=jax.ShapeDtypeStruct((OUT_ROWS, B_pad), jnp.float32),
        grid_spec=pltpu.PrefetchScalarGridSpec(
            num_scalar_prefetch=0,
            grid=(num_tiles,),
            in_specs=[
                pl.BlockSpec((b_tile, IN_DIM), lambda i: (i, 0)),  # x tile
                full(w1), full(b1),
                full(w2), full(b2),
                full(w3), full(b3),
                full(w4), full(b4),
            ],
            out_specs=pl.BlockSpec((OUT_ROWS, b_tile), lambda i: (0, i)),
        ),
        compiler_params=pltpu.CompilerParams(
            dimension_semantics=("parallel",)),
    )(x_p, w1, b1, w2, b2, w3, b3, w4, b4)

    # Row 0 carries the prediction, lane-packed along the batch dimension.
    return out[0, :B][:, None]


def init_params(key):
    """Deterministic synthetic params with the nn.Linear shapes, stored as
    [in_features, out_features] (transposed vs PyTorch's [out, in])."""
    dims = [(IN_DIM, HID), (HID, HID), (HID, HID), (HID, OUT_DIM)]
    params = []
    for fan_in, fan_out in dims:
        key, kw, kb = jax.random.split(key, 3)
        bound = 1.0 / jnp.sqrt(fan_in)  # PyTorch default Linear init range
        w = jax.random.uniform(kw, (fan_in, fan_out), jnp.float32, -bound, bound)
        b = jax.random.uniform(kb, (1, fan_out), jnp.float32, -bound, bound)
        params += [w, b]
    return tuple(params)


def prepare_params(params, compute_dtype=COMPUTE_DTYPE):
    """Zero-pad 400 -> 512 (and head 1 -> 128) and cast weights to bf16.
    Zero padding keeps the math exact: padded hidden units see zero weight and
    zero bias, so they stay exactly zero through every ReLU."""
    w1, b1, w2, b2, w3, b3, w4, b4 = params

    def pad_to(a, shape):
        return jnp.pad(a, [(0, s - d) for d, s in zip(a.shape, shape)])

    return (
        pad_to(w1, (IN_DIM, HID_PAD)).astype(compute_dtype),
        pad_to(b1, (1, HID_PAD)).astype(jnp.float32),
        pad_to(w2, (HID_PAD, HID_PAD)).astype(compute_dtype),
        pad_to(b2, (1, HID_PAD)).astype(jnp.float32),
        pad_to(w3, (HID_PAD, HID_PAD)).astype(compute_dtype),
        pad_to(b3, (1, HID_PAD)).astype(jnp.float32),
        pad_to(w4, (HID_PAD, OUT_PAD)).astype(compute_dtype),
        pad_to(b4, (1, OUT_PAD)).astype(jnp.float32),
    )


def _reference_forward_f32(x, params):
    """Exact f32 reference matching the PyTorch module (unpadded params)."""
    w1, b1, w2, b2, w3, b3, w4, b4 = params
    xf = x.astype(jnp.float32)
    h = jnp.maximum(xf @ w1 + b1, 0.0)
    h = jnp.maximum(h @ w2 + b2, 0.0)
    h = jnp.maximum(h @ w3 + b3, 0.0)
    return h @ w4 + b4


def _reference_forward_bf16(x, padded_params):
    """Same bf16-matmul / f32-accumulate / bf16-activation math as the kernel."""
    w1, b1, w2, b2, w3, b3, w4, b4 = padded_params
    h = x.astype(COMPUTE_DTYPE)
    h = jnp.maximum(jnp.dot(h, w1, preferred_element_type=jnp.float32) + b1,
                    0.0).astype(COMPUTE_DTYPE)
    h = jnp.maximum(jnp.dot(h, w2, preferred_element_type=jnp.float32) + b2,
                    0.0).astype(COMPUTE_DTYPE)
    h = jnp.maximum(jnp.dot(h, w3, preferred_element_type=jnp.float32) + b3,
                    0.0).astype(COMPUTE_DTYPE)
    o = jnp.dot(h, w4, preferred_element_type=jnp.float32) + b4
    return o[:, :OUT_DIM]


if __name__ == "__main__":
    key = jax.random.PRNGKey(0)
    key, kx = jax.random.split(key)
    params = init_params(key)
    padded = prepare_params(params)

    # Small batch: single 128-row grid step.
    batch = 8
    x = jax.random.normal(kx, (batch, IN_DIM), jnp.float32)
    out = jax.block_until_ready(latency_predictor_forward(x, padded))
    assert out.shape == (batch, OUT_DIM)
    assert jnp.allclose(out, _reference_forward_bf16(x, padded),
                        atol=5e-3, rtol=5e-3)
    assert jnp.allclose(out, _reference_forward_f32(x, params),
                        atol=5e-2, rtol=5e-2)

    # Larger, non-multiple batch exercises the tiled path (bucket 300 -> 512,
    # grid of 2 parallel 256-row tiles -> both v7x TensorCores busy).
    key, kx2 = jax.random.split(key)
    x2 = jax.random.normal(kx2, (300, IN_DIM), jnp.float32)
    out2 = jax.block_until_ready(latency_predictor_forward(x2, padded))
    assert out2.shape == (300, OUT_DIM)
    assert jnp.allclose(out2, _reference_forward_bf16(x2, padded),
                        atol=5e-3, rtol=5e-3)
    assert jnp.allclose(out2, _reference_forward_f32(x2, params),
                        atol=5e-2, rtol=5e-2)

    print("KERNEL_OK")
</pallas_src>

<mosaic_0001>
module attributes {stable_mosaic.version = 11 : i64} {
  func.func @_mlp_kernel(%arg0: i32, %arg1: memref<128x128xbf16, #tpu.memory_space<vmem>>, %arg2: memref<128x512xbf16, #tpu.memory_space<vmem>>, %arg3: memref<1x512xf32, #tpu.memory_space<vmem>>, %arg4: memref<512x512xbf16, #tpu.memory_space<vmem>>, %arg5: memref<1x512xf32, #tpu.memory_space<vmem>>, %arg6: memref<512x512xbf16, #tpu.memory_space<vmem>>, %arg7: memref<1x512xf32, #tpu.memory_space<vmem>>, %arg8: memref<512x128xbf16, #tpu.memory_space<vmem>>, %arg9: memref<1x128xf32, #tpu.memory_space<vmem>>, %arg10: memref<8x128xf32, #tpu.memory_space<vmem>>) attributes {dimension_semantics = [#tpu.dimension_semantics<parallel>], iteration_bounds = array<i64: 1>, scalar_prefetch = 0 : i64, scratch_operands = 0 : i64, tpu.core_type = #tpu.core_type<tc>, window_params = [{transform_indices = @transform_0, window_bounds = array<i64: 128, 128>}, {pipeline_mode = #tpu.pipeline_mode<synchronous>, transform_indices = @transform_1, window_bounds = array<i64: 128, 512>}, {pipeline_mode = #tpu.pipeline_mode<synchronous>, transform_indices = @transform_2, window_bounds = array<i64: 1, 512>}, {pipeline_mode = #tpu.pipeline_mode<synchronous>, transform_indices = @transform_3, window_bounds = array<i64: 512, 512>}, {pipeline_mode = #tpu.pipeline_mode<synchronous>, transform_indices = @transform_4, window_bounds = array<i64: 1, 512>}, {pipeline_mode = #tpu.pipeline_mode<synchronous>, transform_indices = @transform_5, window_bounds = array<i64: 512, 512>}, {pipeline_mode = #tpu.pipeline_mode<synchronous>, transform_indices = @transform_6, window_bounds = array<i64: 1, 512>}, {pipeline_mode = #tpu.pipeline_mode<synchronous>, transform_indices = @transform_7, window_bounds = array<i64: 512, 128>}, {pipeline_mode = #tpu.pipeline_mode<synchronous>, transform_indices = @transform_8, window_bounds = array<i64: 1, 128>}, {transform_indices = @transform_9, window_bounds = array<i64: 8, 128>}]} {
    %c0 = arith.constant 0 : index
    %c0_0 = arith.constant 0 : index
    %0 = vector.load %arg1[%c0, %c0_0] : memref<128x128xbf16, #tpu.memory_space<vmem>>, vector<128x128xbf16>
    %c0_1 = arith.constant 0 : index
    %c0_2 = arith.constant 0 : index
    %1 = vector.load %arg2[%c0_1, %c0_2] : memref<128x512xbf16, #tpu.memory_space<vmem>>, vector<128x512xbf16>
    %cst = arith.constant dense<0.000000e+00> : vector<128x512xf32>
    %2 = tpu.matmul %0, %1, %cst {dimension_numbers = #tpu.dot_dimension_numbers<[1], [0], [0], [1], [0, 0, 1, 1], [], []>} : vector<128x128xbf16>, vector<128x512xbf16>, vector<128x512xf32> -> vector<128x512xf32>
    %c0_3 = arith.constant 0 : index
    %c0_4 = arith.constant 0 : index
    %3 = vector.load %arg3[%c0_3, %c0_4] : memref<1x512xf32, #tpu.memory_space<vmem>>, vector<1x512xf32>
    %4 = vector.broadcast %3 : vector<1x512xf32> to vector<128x512xf32>
    %5 = arith.addf %2, %4 : vector<128x512xf32>
    %cst_5 = arith.constant 0.000000e+00 : f32
    %6 = vector.broadcast %cst_5 : f32 to vector<128x512xf32>
    %7 = arith.maximumf %5, %6 : vector<128x512xf32>
    %8 = arith.truncf %7 : vector<128x512xf32> to vector<128x512xbf16>
    %c0_6 = arith.constant 0 : index
    %c0_7 = arith.constant 0 : index
    %9 = vector.load %arg4[%c0_6, %c0_7] : memref<512x512xbf16, #tpu.memory_space<vmem>>, vector<512x512xbf16>
    %cst_8 = arith.constant dense<0.000000e+00> : vector<128x512xf32>
    %10 = tpu.matmul %8, %9, %cst_8 {dimension_numbers = #tpu.dot_dimension_numbers<[1], [0], [0], [1], [0, 0, 1, 1], [], []>} : vector<128x512xbf16>, vector<512x512xbf16>, vector<128x512xf32> -> vector<128x512xf32>
    %c0_9 = arith.constant 0 : index
    %c0_10 = arith.constant 0 : index
    %11 = vector.load %arg5[%c0_9, %c0_10] : memref<1x512xf32, #tpu.memory_space<vmem>>, vector<1x512xf32>
    %12 = vector.broadcast %11 : vector<1x512xf32> to vector<128x512xf32>
    %13 = arith.addf %10, %12 : vector<128x512xf32>
    %cst_11 = arith.constant 0.000000e+00 : f32
    %14 = vector.broadcast %cst_11 : f32 to vector<128x512xf32>
    %15 = arith.maximumf %13, %14 : vector<128x512xf32>
    %16 = arith.truncf %15 : vector<128x512xf32> to vector<128x512xbf16>
    %c0_12 = arith.constant 0 : index
    %c0_13 = arith.constant 0 : index
    %17 = vector.load %arg6[%c0_12, %c0_13] : memref<512x512xbf16, #tpu.memory_space<vmem>>, vector<512x512xbf16>
    %cst_14 = arith.constant dense<0.000000e+00> : vector<128x512xf32>
    %18 = tpu.matmul %16, %17, %cst_14 {dimension_numbers = #tpu.dot_dimension_numbers<[1], [0], [0], [1], [0, 0, 1, 1], [], []>} : vector<128x512xbf16>, vector<512x512xbf16>, vector<128x512xf32> -> vector<128x512xf32>
    %c0_15 = arith.constant 0 : index
    %c0_16 = arith.constant 0 : index
    %19 = vector.load %arg7[%c0_15, %c0_16] : memref<1x512xf32, #tpu.memory_space<vmem>>, vector<1x512xf32>
    %20 = vector.broadcast %19 : vector<1x512xf32> to vector<128x512xf32>
    %21 = arith.addf %18, %20 : vector<128x512xf32>
    %cst_17 = arith.constant 0.000000e+00 : f32
    %22 = vector.broadcast %cst_17 : f32 to vector<128x512xf32>
    %23 = arith.maximumf %21, %22 : vector<128x512xf32>
    %24 = arith.truncf %23 : vector<128x512xf32> to vector<128x512xbf16>
    %c0_18 = arith.constant 0 : index
    %c0_19 = arith.constant 0 : index
    %25 = vector.load %arg8[%c0_18, %c0_19] : memref<512x128xbf16, #tpu.memory_space<vmem>>, vector<512x128xbf16>
    %cst_20 = arith.constant dense<0.000000e+00> : vector<128x128xf32>
    %26 = tpu.matmul %24, %25, %cst_20 {dimension_numbers = #tpu.dot_dimension_numbers<[1], [0], [0], [1], [0, 0, 1, 1], [], []>} : vector<128x512xbf16>, vector<512x128xbf16>, vector<128x128xf32> -> vector<128x128xf32>
    %c0_21 = arith.constant 0 : index
    %c0_22 = arith.constant 0 : index
    %27 = vector.load %arg9[%c0_21, %c0_22] : memref<1x128xf32, #tpu.memory_space<vmem>>, vector<1x128xf32>
    %28 = vector.broadcast %27 : vector<1x128xf32> to vector<128x128xf32>
    %29 = arith.addf %26, %28 : vector<128x128xf32>
    %30 = tpu.transpose %29, [1, 0] : vector<128x128xf32> -> vector<128x128xf32>
    %31 = vector.extract_strided_slice %30 {offsets = [0, 0], sizes = [8, 128], strides = [1, 1]} : vector<128x128xf32> to vector<8x128xf32>
    %c0_23 = arith.constant 0 : index
    %c0_24 = arith.constant 0 : index
    %32 = vector.load %arg10[%c0_23, %c0_24] : memref<8x128xf32, #tpu.memory_space<vmem>>, vector<8x128xf32>
    tpu.vector_store %arg10[%c0_23, %c0_24], %31 {strides = array<i32>} : memref<8x128xf32, #tpu.memory_space<vmem>>, vector<8x128xf32>,
    return
  }
  func.func @transform_0(%arg0: i32) -> (i32, i32) {
    %c0_i32 = arith.constant 0 : i32
    %c0_i32_0 = arith.constant 0 : i32
    return %arg0, %c0_i32 : i32, i32
  }
  func.func @transform_1(%arg0: i32) -> (i32, i32) {
    %c0_i32 = arith.constant 0 : i32
    %c0_i32_0 = arith.constant 0 : i32
    %c0_i32_1 = arith.constant 0 : i32
    return %c0_i32, %c0_i32_0 : i32, i32
  }
  func.func @transform_2(%arg0: i32) -> (i32, i32) {
    %c0_i32 = arith.constant 0 : i32
    %c0_i32_0 = arith.constant 0 : i32
    %c0_i32_1 = arith.constant 0 : i32
    return %c0_i32, %c0_i32_0 : i32, i32
  }
  func.func @transform_3(%arg0: i32) -> (i32, i32) {
    %c0_i32 = arith.constant 0 : i32
    %c0_i32_0 = arith.constant 0 : i32
    %c0_i32_1 = arith.constant 0 : i32
    return %c0_i32, %c0_i32_0 : i32, i32
  }
  func.func @transform_4(%arg0: i32) -> (i32, i32) {
    %c0_i32 = arith.constant 0 : i32
    %c0_i32_0 = arith.constant 0 : i32
    %c0_i32_1 = arith.constant 0 : i32
    return %c0_i32, %c0_i32_0 : i32, i32
  }
  func.func @transform_5(%arg0: i32) -> (i32, i32) {
    %c0_i32 = arith.constant 0 : i32
    %c0_i32_0 = arith.constant 0 : i32
    %c0_i32_1 = arith.constant 0 : i32
    return %c0_i32, %c0_i32_0 : i32, i32
  }
  func.func @transform_6(%arg0: i32) -> (i32, i32) {
    %c0_i32 = arith.constant 0 : i32
    %c0_i32_0 = arith.constant 0 : i32
    %c0_i32_1 = arith.constant 0 : i32
    return %c0_i32, %c0_i32_0 : i32, i32
  }
  func.func @transform_7(%arg0: i32) -> (i32, i32) {
    %c0_i32 = arith.constant 0 : i32
    %c0_i32_0 = arith.constant 0 : i32
    %c0_i32_1 = arith.constant 0 : i32
    return %c0_i32, %c0_i32_0 : i32, i32
  }
  func.func @transform_8(%arg0: i32) -> (i32, i32) {
    %c0_i32 = arith.constant 0 : i32
    %c0_i32_0 = arith.constant 0 : i32
    %c0_i32_1 = arith.constant 0 : i32
    return %c0_i32, %c0_i32_0 : i32, i32
  }
  func.func @transform_9(%arg0: i32) -> (i32, i32) {
    %c0_i32 = arith.constant 0 : i32
    %c0_i32_0 = arith.constant 0 : i32
    return %c0_i32, %arg0 : i32, i32
  }
}

</mosaic_0001>

<llo_original>
// kernel: latency_predictor_forward.1
$region0: #{latency_predictor_forward.1}
  #allocation0 [shape = 'u32[]', space=smem, size = 0x4, offset = 0x4, fixed_abs, tag = 'smem constant byte address 0x4 - core index']
  #allocation1 [shape = 'u32[72,128]{1,0:T(1,128)}', space=vmem, size = 0x9000, scoped, tag = 'internal scratch']
  %s0 = inlined_call_operand.vmem [shape: bf16[128,128], index: 0, kind: input, shape index: {}]
  %s1 = inlined_call_operand.hbm [shape: bf16[128,512], index: 1, kind: input, shape index: {}]
  %s2 = inlined_call_operand.vmem [shape: f32[1,512], index: 2, kind: input, shape index: {}]
  %s3 = inlined_call_operand.hbm [shape: bf16[512,512], index: 3, kind: input, shape index: {}]
  %s4 = inlined_call_operand.vmem [shape: f32[1,512], index: 4, kind: input, shape index: {}]
  %s5 = inlined_call_operand.hbm [shape: bf16[512,512], index: 5, kind: input, shape index: {}]
  %s6 = inlined_call_operand.vmem [shape: f32[1,512], index: 6, kind: input, shape index: {}]
  %s7 = inlined_call_operand.hbm [shape: bf16[512,128], index: 7, kind: input, shape index: {}]
  %s8 = inlined_call_operand.vmem [shape: f32[1,128], index: 8, kind: input, shape index: {}]
  %s9 = inlined_call_operand.vmem [shape: f32[8,128], index: 9, kind: output, shape index: {}]
  %s10 = sld [smem:[#allocation0]]
  $region62: #{latency_predictor_forward.1} parent=0
    _
  %s12 = ssub.s32 1, %s10
  %s13 = scalar_select 0, %s12, %s10
  $region1: #{latency_predictor_forward.1} parent=0
    #allocation2 [shape = 'u8[131072]{0}', space=vmem, size = 0x20000, scoped, tag = 'input window, operand 1, single buffered']
    #allocation3 [shape = 's32[1]{0}', space=sflag, size = 0x4, scoped, tag = 'scoped memory for latency_predictor_forward.1']
    #allocation4 [shape = 'u8[524288]{0}', space=vmem, size = 0x80000, scoped, tag = 'input window, operand 3, single buffered']
    #allocation5 [shape = 's32[1]{0}', space=sflag, size = 0x4, scoped, tag = 'scoped memory for latency_predictor_forward.1']
    #allocation6 [shape = 'u8[524288]{0}', space=vmem, size = 0x80000, scoped, tag = 'input window, operand 5, single buffered']
    #allocation7 [shape = 'u8[131072]{0}', space=vmem, size = 0x20000, scoped, tag = 'input window, operand 7, single buffered']
    #allocation8 [shape = 's32[1]{0}', space=sflag, size = 0x4, scoped, tag = 'scoped memory for latency_predictor_forward.1']
    %14 = vsyncpa [#allocation3], 0
    %15 = vsyncpa [#allocation5], 0
    %16 = vsyncpa [#allocation8], 0
    // Predicated region
    $region2: #{latency_predictor_forward.1} parent=1 // pred_check
      _
    $region3: #{latency_predictor_forward.1} parent=1 // pred_check_branch
      %18 = sbr.rel (0) target = $region5
    $region4: #{latency_predictor_forward.1} parent=1 // pred_region
      _
    $region5: #{latency_predictor_forward.1} parent=1 // pred_fallthru
      _
    // Predicated region
    $region6: #{latency_predictor_forward.1} parent=1 // pred_check
      _
    $region7: #{latency_predictor_forward.1} parent=1 // pred_check_branch
      %20 = sbr.rel (0) target = $region9
    $region8: #{latency_predictor_forward.1} parent=1 // pred_region
      %22 = vsyncadd [#allocation3], 0
      %s23 = sshll.u32 %s1, 4
      %s24 = int_to_ptr.hbm [resolvable:$true] %s23
      %s25 = sshll.u32 [#allocation2], 4
      %s26 = int_to_ptr.vmem [resolvable:$true] %s25
      %31 = dma.hbm_to_vmem [thread:$0]  %s24, 4096, %s26, [#allocation3], 256, 256, 16
    $region9: #{latency_predictor_forward.1} parent=1 // pred_fallthru
      _
    // Predicated region
    $region10: #{latency_predictor_forward.1} parent=1 // pred_check
      _
    $region11: #{latency_predictor_forward.1} parent=1 // pred_check_branch
      %33 = sbr.rel (0) target = $region13
    $region12: #{latency_predictor_forward.1} parent=1 // pred_region
      _
    $region13: #{latency_predictor_forward.1} parent=1 // pred_fallthru
      _
    // Predicated region
    $region14: #{latency_predictor_forward.1} parent=1 // pred_check
      _
    $region15: #{latency_predictor_forward.1} parent=1 // pred_check_branch
      %35 = sbr.rel (0) target = $region17
    $region16: #{latency_predictor_forward.1} parent=1 // pred_region
      %37 = vsyncadd [#allocation5], 0
      %s38 = sshll.u32 %s3, 4
      %s39 = int_to_ptr.hbm [resolvable:$true] %s38
      %s40 = sshll.u32 [#allocation4], 4
      %s41 = int_to_ptr.vmem [resolvable:$true] %s40
      %46 = dma.hbm_to_vmem [thread:$0]  %s39, 16384, %s41, [#allocation5], 256, 256, 16
    $region17: #{latency_predictor_forward.1} parent=1 // pred_fallthru
      _
    // Predicated region
    $region18: #{latency_predictor_forward.1} parent=1 // pred_check
      _
    $region19: #{latency_predictor_forward.1} parent=1 // pred_check_branch
      %48 = sbr.rel (0) target = $region21
    $region20: #{latency_predictor_forward.1} parent=1 // pred_region
      _
    $region21: #{latency_predictor_forward.1} parent=1 // pred_fallthru
      _
    // Predicated region
    $region22: #{latency_predictor_forward.1} parent=1 // pred_check
      _
    $region23: #{latency_predictor_forward.1} parent=1 // pred_check_branch
      %50 = sbr.rel (0) target = $region25
    $region24: #{latency_predictor_forward.1} parent=1 // pred_region
      %52 = vsyncadd [#allocation5], 0
      %s53 = sshll.u32 %s5, 4
      %s54 = int_to_ptr.hbm [resolvable:$true] %s53
      %s55 = sshll.u32 [#allocation6], 4
      %s56 = int_to_ptr.vmem [resolvable:$true] %s55
      %61 = dma.hbm_to_vmem [thread:$0]  %s54, 16384, %s56, [#allocation5], 256, 256, 16
    $region25: #{latency_predictor_forward.1} parent=1 // pred_fallthru
      _
    // Predicated region
    $region26: #{latency_predictor_forward.1} parent=1 // pred_check
      _
    $region27: #{latency_predictor_forward.1} parent=1 // pred_check_branch
      %63 = sbr.rel (0) target = $region29
    $region28: #{latency_predictor_forward.1} parent=1 // pred_region
      _
    $region29: #{latency_predictor_forward.1} parent=1 // pred_fallthru
      _
    // Predicated region
    $region30: #{latency_predictor_forward.1} parent=1 // pred_check
      _
    $region31: #{latency_predictor_forward.1} parent=1 // pred_check_branch
      %65 = sbr.rel (0) target = $region33
    $region32: #{latency_predictor_forward.1} parent=1 // pred_region
      %67 = vsyncadd [#allocation8], 0
      %s68 = sshll.u32 %s7, 4
      %s69 = int_to_ptr.hbm [resolvable:$true] %s68
      %s70 = sshll.u32 [#allocation7], 4
      %s71 = int_to_ptr.vmem [resolvable:$true] %s70
      %76 = dma.hbm_to_vmem [thread:$0]  %s69, 4096, %s71, [#allocation8], 64, 64, 4
    $region33: #{latency_predictor_forward.1} parent=1 // pred_fallthru
      _
    // Predicated region
    $region34: #{latency_predictor_forward.1} parent=1 // pred_check
      _
    $region35: #{latency_predictor_forward.1} parent=1 // pred_check_branch
      %78 = sbr.rel (0) target = $region37
    $region36: #{latency_predictor_forward.1} parent=1 // pred_region
      _
    $region37: #{latency_predictor_forward.1} parent=1 // pred_fallthru
      _
    // Predicated region
    $region38: #{latency_predictor_forward.1} parent=1 // pred_check
      _
    $region39: #{latency_predictor_forward.1} parent=1 // pred_check_branch
      %80 = sbr.rel (0) target = $region41
    $region40: #{latency_predictor_forward.1} parent=1 // pred_region
      %82 = dma.done [#allocation3], 4096
    $region41: #{latency_predictor_forward.1} parent=1 // pred_fallthru
      _
    // Predicated region
    $region42: #{latency_predictor_forward.1} parent=1 // pred_check
      _
    $region43: #{latency_predictor_forward.1} parent=1 // pred_check_branch
      %84 = sbr.rel (0) target = $region45
    $region44: #{latency_predictor_forward.1} parent=1 // pred_region
      %86 = dma.done [#allocation5], 16384
    $region45: #{latency_predictor_forward.1} parent=1 // pred_fallthru
      _
    // Predicated region
    $region46: #{latency_predictor_forward.1} parent=1 // pred_check
      _
    $region47: #{latency_predictor_forward.1} parent=1 // pred_check_branch
      %88 = sbr.rel (0) target = $region49
    $region48: #{latency_predictor_forward.1} parent=1 // pred_region
      %90 = dma.done [#allocation5], 16384
    $region49: #{latency_predictor_forward.1} parent=1 // pred_fallthru
      _
    // Predicated region
    $region50: #{latency_predictor_forward.1} parent=1 // pred_check
      _
    $region51: #{latency_predictor_forward.1} parent=1 // pred_check_branch
      %92 = sbr.rel (0) target = $region53
    $region52: #{latency_predictor_forward.1} parent=1 // pred_region
      %94 = dma.done [#allocation8], 4096
    $region53: #{latency_predictor_forward.1} parent=1 // pred_fallthru
      _
    %v95 = vld [vmem:[%s0] sm:$0xf]
    %v96 = vld [vmem:[%s0 + $0x4] sm:$0xf]
    %v97 = vld [vmem:[%s0 + $0x8] sm:$0xf]
    %v98 = vld [vmem:[%s0 + $0xc] sm:$0xf]
    %v99 = vld [vmem:[%s0 + $0x10] sm:$0xf]
    %v100 = vld [vmem:[%s0 + $0x14] sm:$0xf]
    %v101 = vld [vmem:[%s0 + $0x18] sm:$0xf]
    %v102 = vld [vmem:[%s0 + $0x1c] sm:$0xf]
    %v103 = vld [vmem:[%s0 + $0x20] sm:$0xf]
    %v104 = vld [vmem:[%s0 + $0x24] sm:$0xf]
    %v105 = vld [vmem:[%s0 + $0x28] sm:$0xf]
    %v106 = vld [vmem:[%s0 + $0x2c] sm:$0xf]
    %v107 = vld [vmem:[%s0 + $0x30] sm:$0xf]
    %v108 = vld [vmem:[%s0 + $0x34] sm:$0xf]
    %v109 = vld [vmem:[%s0 + $0x38] sm:$0xf]
    %v110 = vld [vmem:[%s0 + $0x3c] sm:$0xf]
    %v111 = vld [vmem:[#allocation2] sm:$0xff]
    %v112 = vld [vmem:[#allocation2 + $0x8] sm:$0xff]
    %v113 = vld [vmem:[#allocation2 + $0x10] sm:$0xff]
    %v114 = vld [vmem:[#allocation2 + $0x18] sm:$0xff]
    %v115 = vld [vmem:[#allocation2 + $0x20] sm:$0xff]
    %v116 = vld [vmem:[#allocation2 + $0x28] sm:$0xff]
    %v117 = vld [vmem:[#allocation2 + $0x30] sm:$0xff]
    %v118 = vld [vmem:[#allocation2 + $0x38] sm:$0xff]
    %v119 = vld [vmem:[#allocation2 + $0x40] sm:$0xff]
    %v120 = vld [vmem:[#allocation2 + $0x48] sm:$0xff]
    %v121 = vld [vmem:[#allocation2 + $0x50] sm:$0xff]
    %v122 = vld [vmem:[#allocation2 + $0x58] sm:$0xff]
    %v123 = vld [vmem:[#allocation2 + $0x60] sm:$0xff]
    %v124 = vld [vmem:[#allocation2 + $0x68] sm:$0xff]
    %v125 = vld [vmem:[#allocation2 + $0x70] sm:$0xff]
    %v126 = vld [vmem:[#allocation2 + $0x78] sm:$0xff]
    %v127 = vld [vmem:[#allocation2 + $0x80] sm:$0xff]
    %v128 = vld [vmem:[#allocation2 + $0x88] sm:$0xff]
    %v129 = vld [vmem:[#allocation2 + $0x90] sm:$0xff]
    %v130 = vld [vmem:[#allocation2 + $0x98] sm:$0xff]
    %v131 = vld [vmem:[#allocation2 + $0xa0] sm:$0xff]
    %v132 = vld [vmem:[#allocation2 + $0xa8] sm:$0xff]
    %v133 = vld [vmem:[#allocation2 + $0xb0] sm:$0xff]
    %v134 = vld [vmem:[#allocation2 + $0xb8] sm:$0xff]
    %v135 = vld [vmem:[#allocation2 + $0xc0] sm:$0xff]
    %v136 = vld [vmem:[#allocation2 + $0xc8] sm:$0xff]
    %v137 = vld [vmem:[#allocation2 + $0xd0] sm:$0xff]
    %v138 = vld [vmem:[#allocation2 + $0xd8] sm:$0xff]
    %v139 = vld [vmem:[#allocation2 + $0xe0] sm:$0xff]
    %v140 = vld [vmem:[#allocation2 + $0xe8] sm:$0xff]
    %v141 = vld [vmem:[#allocation2 + $0xf0] sm:$0xff]
    %v142 = vld [vmem:[#allocation2 + $0xf8] sm:$0xff]
    %v143 = vld [vmem:[%s2] sm:$0xf]
    %v145 = vperm.slane %v143, 0
    %v146 = vperm.slane %v143, 1
    %v147 = vperm.slane %v143, 2
    %v148 = vperm.slane %v143, 3
    %v169 = vunpack.c.l.b16 %v95
    %v170 = vunpack.c.l.b16 %v96
    %v171 = vunpack.c.l.b16 %v97
    %v172 = vunpack.c.l.b16 %v98
    %v173 = vunpack.c.l.b16 %v99
    %v174 = vunpack.c.l.b16 %v100
    %v175 = vunpack.c.l.b16 %v101
    %v176 = vunpack.c.l.b16 %v102
    %v177 = vunpack.c.l.b16 %v103
    %v178 = vunpack.c.l.b16 %v104
    %v179 = vunpack.c.l.b16 %v105
    %v180 = vunpack.c.l.b16 %v106
    %v181 = vunpack.c.l.b16 %v107
    %v182 = vunpack.c.l.b16 %v108
    %v183 = vunpack.c.l.b16 %v109
    %v184 = vunpack.c.l.b16 %v110
    %v185 = vpack.c.b16 %v170, %v169
    %v186 = vpack.c.b16 %v172, %v171
    %v187 = vpack.c.b16 %v174, %v173
    %v188 = vpack.c.b16 %v176, %v175
    %v189 = vpack.c.b16 %v178, %v177
    %v190 = vpack.c.b16 %v180, %v179
    %v191 = vpack.c.b16 %v182, %v181
    %v192 = vpack.c.b16 %v184, %v183
    %v233 = vunpack.c.l.b16 %v111
    %v234 = vunpack.c.h.b16 %v111
    %v235 = vunpack.c.l.b16 %v112
    %v236 = vunpack.c.h.b16 %v112
    %v237 = vunpack.c.l.b16 %v113
    %v238 = vunpack.c.h.b16 %v113
    %v239 = vunpack.c.l.b16 %v114
    %v240 = vunpack.c.h.b16 %v114
    %v241 = vunpack.c.l.b16 %v115
    %v242 = vunpack.c.h.b16 %v115
    %v243 = vunpack.c.l.b16 %v116
    %v244 = vunpack.c.h.b16 %v116
    %v245 = vunpack.c.l.b16 %v117
    %v246 = vunpack.c.h.b16 %v117
    %v247 = vunpack.c.l.b16 %v118
    %v248 = vunpack.c.h.b16 %v118
    %v249 = vunpack.c.l.b16 %v119
    %v250 = vunpack.c.h.b16 %v119
    %v251 = vunpack.c.l.b16 %v120
    %v252 = vunpack.c.h.b16 %v120
    %v253 = vunpack.c.l.b16 %v121
    %v254 = vunpack.c.h.b16 %v121
    %v255 = vunpack.c.l.b16 %v122
    %v256 = vunpack.c.h.b16 %v122
    %v257 = vunpack.c.l.b16 %v123
    %v258 = vunpack.c.h.b16 %v123
    %v259 = vunpack.c.l.b16 %v124
    %v260 = vunpack.c.h.b16 %v124
    %v261 = vunpack.c.l.b16 %v125
    %v262 = vunpack.c.h.b16 %v125
    %v263 = vunpack.c.l.b16 %v126
    %v264 = vunpack.c.h.b16 %v126
    %v265 = vunpack.c.l.b16 %v127
    %v266 = vunpack.c.h.b16 %v127
    %v267 = vunpack.c.l.b16 %v128
    %v268 = vunpack.c.h.b16 %v128
    %v269 = vunpack.c.l.b16 %v129
    %v270 = vunpack.c.h.b16 %v129
    %v271 = vunpack.c.l.b16 %v130
    %v272 = vunpack.c.h.b16 %v130
    %v273 = vunpack.c.l.b16 %v131
    %v274 = vunpack.c.h.b16 %v131
    %v275 = vunpack.c.l.b16 %v132
    %v276 = vunpack.c.h.b16 %v132
    %v277 = vunpack.c.l.b16 %v133
    %v278 = vunpack.c.h.b16 %v133
    %v279 = vunpack.c.l.b16 %v134
    %v280 = vunpack.c.h.b16 %v134
    %v281 = vunpack.c.l.b16 %v135
    %v282 = vunpack.c.h.b16 %v135
    %v283 = vunpack.c.l.b16 %v136
    %v284 = vunpack.c.h.b16 %v136
    %v285 = vunpack.c.l.b16 %v137
    %v286 = vunpack.c.h.b16 %v137
    %v287 = vunpack.c.l.b16 %v138
    %v288 = vunpack.c.h.b16 %v138
    %v289 = vunpack.c.l.b16 %v139
    %v290 = vunpack.c.h.b16 %v139
    %v291 = vunpack.c.l.b16 %v140
    %v292 = vunpack.c.h.b16 %v140
    %v293 = vunpack.c.l.b16 %v141
    %v294 = vunpack.c.h.b16 %v141
    %v295 = vunpack.c.l.b16 %v142
    %v296 = vunpack.c.h.b16 %v142
    %v297 = vpack.c.b16 %v237, %v233
    %v298 = vpack.c.b16 %v238, %v234
    %v299 = vpack.c.b16 %v239, %v235
    %v300 = vpack.c.b16 %v240, %v236
    %v301 = vpack.c.b16 %v245, %v241
    %v302 = vpack.c.b16 %v246, %v242
    %v303 = vpack.c.b16 %v247, %v243
    %v304 = vpack.c.b16 %v248, %v244
    %v305 = vpack.c.b16 %v253, %v249
    %v306 = vpack.c.b16 %v254, %v250
    %v307 = vpack.c.b16 %v255, %v251
    %v308 = vpack.c.b16 %v256, %v252
    %v309 = vpack.c.b16 %v261, %v257
    %v310 = vpack.c.b16 %v262, %v258
    %v311 = vpack.c.b16 %v263, %v259
    %v312 = vpack.c.b16 %v264, %v260
    %v313 = vpack.c.b16 %v269, %v265
    %v314 = vpack.c.b16 %v270, %v266
    %v315 = vpack.c.b16 %v271, %v267
    %v316 = vpack.c.b16 %v272, %v268
    %v317 = vpack.c.b16 %v277, %v273
    %v318 = vpack.c.b16 %v278, %v274
    %v319 = vpack.c.b16 %v279, %v275
    %v320 = vpack.c.b16 %v280, %v276
    %v321 = vpack.c.b16 %v285, %v281
    %v322 = vpack.c.b16 %v286, %v282
    %v323 = vpack.c.b16 %v287, %v283
    %v324 = vpack.c.b16 %v288, %v284
    %v325 = vpack.c.b16 %v293, %v289
    %v326 = vpack.c.b16 %v294, %v290
    %v327 = vpack.c.b16 %v295, %v291
    %v328 = vpack.c.b16 %v296, %v292
    %361 = vmatpush.bf16.msra.mxu0 %v325
    %362 = vmatpush.bf16.msra.mxu0 %v321
    %363 = vmatpush.bf16.msra.mxu0 %v317
    %364 = vmatpush.bf16.msra.mxu0 %v313
    %365 = vmatpush.bf16.msra.mxu0 %v309
    %366 = vmatpush.bf16.msra.mxu0 %v305
    %367 = vmatpush.bf16.msra.mxu0 %v301
    %368 = vmatpush.bf16.msra.mxu0 %v297
    %369 = vmatmul.bf16.gmra.mxu0 %v185
    %v370 = vpop.f32.mrf.mxu0
    %v371 = vadd.f32 %v145, %v370
    %v372 = vpop.f32.mrf.mxu0
    %v373 = vadd.f32 %v145, %v372
    %374 = vmatmul.bf16.gmra.mxu0 %v186
    %v375 = vpop.f32.mrf.mxu0
    %v376 = vadd.f32 %v145, %v375
    %v377 = vpop.f32.mrf.mxu0
    %v378 = vadd.f32 %v145, %v377
    %379 = vmatmul.bf16.gmra.mxu0 %v187
    %v380 = vpop.f32.mrf.mxu0
    %v381 = vadd.f32 %v145, %v380
    %v382 = vpop.f32.mrf.mxu0
    %v383 = vadd.f32 %v145, %v382
    %384 = vmatmul.bf16.gmra.mxu0 %v188
    %v385 = vpop.f32.mrf.mxu0
    %v386 = vadd.f32 %v145, %v385
    %v387 = vpop.f32.mrf.mxu0
    %v388 = vadd.f32 %v145, %v387
    %389 = vmatmul.bf16.gmra.mxu0 %v189
    %v390 = vpop.f32.mrf.mxu0
    %v391 = vadd.f32 %v145, %v390
    %v392 = vpop.f32.mrf.mxu0
    %v393 = vadd.f32 %v145, %v392
    %394 = vmatmul.bf16.gmra.mxu0 %v190
    %v395 = vpop.f32.mrf.mxu0
    %v396 = vadd.f32 %v145, %v395
    %v397 = vpop.f32.mrf.mxu0
    %v398 = vadd.f32 %v145, %v397
    %399 = vmatmul.bf16.gmra.mxu0 %v191
    %v400 = vpop.f32.mrf.mxu0
    %v401 = vadd.f32 %v145, %v400
    %v402 = vpop.f32.mrf.mxu0
    %v403 = vadd.f32 %v145, %v402
    %404 = vmatmul.bf16.gmra.mxu0 %v192
    %v405 = vpop.f32.mrf.mxu0
    %v406 = vadd.f32 %v145, %v405
    %v407 = vpop.f32.mrf.mxu0
    %v408 = vadd.f32 %v145, %v407
    %409 = vdwg.mxu0
    %410 = vmatpush.bf16.msra.mxu0 %v326
    %411 = vmatpush.bf16.msra.mxu0 %v322
    %412 = vmatpush.bf16.msra.mxu0 %v318
    %413 = vmatpush.bf16.msra.mxu0 %v314
    %414 = vmatpush.bf16.msra.mxu0 %v310
    %415 = vmatpush.bf16.msra.mxu0 %v306
    %416 = vmatpush.bf16.msra.mxu0 %v302
    %417 = vmatpush.bf16.msra.mxu0 %v298
    %418 = vmatmul.bf16.gmra.mxu0 %v185
    %v419 = vpop.f32.mrf.mxu0
    %v420 = vadd.f32 %v146, %v419
    %v421 = vpop.f32.mrf.mxu0
    %v422 = vadd.f32 %v146, %v421
    %423 = vmatmul.bf16.gmra.mxu0 %v186
    %v424 = vpop.f32.mrf.mxu0
    %v425 = vadd.f32 %v146, %v424
    %v426 = vpop.f32.mrf.mxu0
    %v427 = vadd.f32 %v146, %v426
    %428 = vmatmul.bf16.gmra.mxu0 %v187
    %v429 = vpop.f32.mrf.mxu0
    %v430 = vadd.f32 %v146, %v429
    %v431 = vpop.f32.mrf.mxu0
    %v432 = vadd.f32 %v146, %v431
    %433 = vmatmul.bf16.gmra.mxu0 %v188
    %v434 = vpop.f32.mrf.mxu0
    %v435 = vadd.f32 %v146, %v434
    %v436 = vpop.f32.mrf.mxu0
    %v437 = vadd.f32 %v146, %v436
    %438 = vmatmul.bf16.gmra.mxu0 %v189
    %v439 = vpop.f32.mrf.mxu0
    %v440 = vadd.f32 %v146, %v439
    %v441 = vpop.f32.mrf.mxu0
    %v442 = vadd.f32 %v146, %v441
    %443 = vmatmul.bf16.gmra.mxu0 %v190
    %v444 = vpop.f32.mrf.mxu0
    %v445 = vadd.f32 %v146, %v444
    %v446 = vpop.f32.mrf.mxu0
    %v447 = vadd.f32 %v146, %v446
    %448 = vmatmul.bf16.gmra.mxu0 %v191
    %v449 = vpop.f32.mrf.mxu0
    %v450 = vadd.f32 %v146, %v449
    %v451 = vpop.f32.mrf.mxu0
    %v452 = vadd.f32 %v146, %v451
    %453 = vmatmul.bf16.gmra.mxu0 %v192
    %v454 = vpop.f32.mrf.mxu0
    %v455 = vadd.f32 %v146, %v454
    %v456 = vpop.f32.mrf.mxu0
    %v457 = vadd.f32 %v146, %v456
    %458 = vdwg.mxu0
    %459 = vmatpush.bf16.msra.mxu0 %v327
    %460 = vmatpush.bf16.msra.mxu0 %v323
    %461 = vmatpush.bf16.msra.mxu0 %v319
    %462 = vmatpush.bf16.msra.mxu0 %v315
    %463 = vmatpush.bf16.msra.mxu0 %v311
    %464 = vmatpush.bf16.msra.mxu0 %v307
    %465 = vmatpush.bf16.msra.mxu0 %v303
    %466 = vmatpush.bf16.msra.mxu0 %v299
    %467 = vmatmul.bf16.gmra.mxu0 %v185
    %v468 = vpop.f32.mrf.mxu0
    %v469 = vadd.f32 %v147, %v468
    %v470 = vpop.f32.mrf.mxu0
    %v471 = vadd.f32 %v147, %v470
    %472 = vmatmul.bf16.gmra.mxu0 %v186
    %v473 = vpop.f32.mrf.mxu0
    %v474 = vadd.f32 %v147, %v473
    %v475 = vpop.f32.mrf.mxu0
    %v476 = vadd.f32 %v147, %v475
    %477 = vmatmul.bf16.gmra.mxu0 %v187
    %v478 = vpop.f32.mrf.mxu0
    %v479 = vadd.f32 %v147, %v478
    %v480 = vpop.f32.mrf.mxu0
    %v481 = vadd.f32 %v147, %v480
    %482 = vmatmul.bf16.gmra.mxu0 %v188
    %v483 = vpop.f32.mrf.mxu0
    %v484 = vadd.f32 %v147, %v483
    %v485 = vpop.f32.mrf.mxu0
    %v486 = vadd.f32 %v147, %v485
    %487 = vmatmul.bf16.gmra.mxu0 %v189
    %v488 = vpop.f32.mrf.mxu0
    %v489 = vadd.f32 %v147, %v488
    %v490 = vpop.f32.mrf.mxu0
    %v491 = vadd.f32 %v147, %v490
    %492 = vmatmul.bf16.gmra.mxu0 %v190
    %v493 = vpop.f32.mrf.mxu0
    %v494 = vadd.f32 %v147, %v493
    %v495 = vpop.f32.mrf.mxu0
    %v496 = vadd.f32 %v147, %v495
    %497 = vmatmul.bf16.gmra.mxu0 %v191
    %v498 = vpop.f32.mrf.mxu0
    %v499 = vadd.f32 %v147, %v498
    %v500 = vpop.f32.mrf.mxu0
    %v501 = vadd.f32 %v147, %v500
    %502 = vmatmul.bf16.gmra.mxu0 %v192
    %v503 = vpop.f32.mrf.mxu0
    %v504 = vadd.f32 %v147, %v503
    %v505 = vpop.f32.mrf.mxu0
    %v506 = vadd.f32 %v147, %v505
    %507 = vdwg.mxu0
    %508 = vmatpush.bf16.msra.mxu0 %v328
    %509 = vmatpush.bf16.msra.mxu0 %v324
    %510 = vmatpush.bf16.msra.mxu0 %v320
    %511 = vmatpush.bf16.msra.mxu0 %v316
    %512 = vmatpush.bf16.msra.mxu0 %v312
    %513 = vmatpush.bf16.msra.mxu0 %v308
    %514 = vmatpush.bf16.msra.mxu0 %v304
    %515 = vmatpush.bf16.msra.mxu0 %v300
    %516 = vmatmul.bf16.gmra.mxu0 %v185
    %v517 = vpop.f32.mrf.mxu0
    %v518 = vadd.f32 %v148, %v517
    %v519 = vpop.f32.mrf.mxu0
    %v520 = vadd.f32 %v148, %v519
    %521 = vmatmul.bf16.gmra.mxu0 %v186
    %v522 = vpop.f32.mrf.mxu0
    %v523 = vadd.f32 %v148, %v522
    %v524 = vpop.f32.mrf.mxu0
    %v525 = vadd.f32 %v148, %v524
    %526 = vmatmul.bf16.gmra.mxu0 %v187
    %v527 = vpop.f32.mrf.mxu0
    %v528 = vadd.f32 %v148, %v527
    %v529 = vpop.f32.mrf.mxu0
    %v530 = vadd.f32 %v148, %v529
    %531 = vmatmul.bf16.gmra.mxu0 %v188
    %v532 = vpop.f32.mrf.mxu0
    %v533 = vadd.f32 %v148, %v532
    %v534 = vpop.f32.mrf.mxu0
    %v535 = vadd.f32 %v148, %v534
    %536 = vmatmul.bf16.gmra.mxu0 %v189
    %v537 = vpop.f32.mrf.mxu0
    %v538 = vadd.f32 %v148, %v537
    %v539 = vpop.f32.mrf.mxu0
    %v540 = vadd.f32 %v148, %v539
    %541 = vmatmul.bf16.gmra.mxu0 %v190
    %v542 = vpop.f32.mrf.mxu0
    %v543 = vadd.f32 %v148, %v542
    %v544 = vpop.f32.mrf.mxu0
    %v545 = vadd.f32 %v148, %v544
    %546 = vmatmul.bf16.gmra.mxu0 %v191
    %v547 = vpop.f32.mrf.mxu0
    %v548 = vadd.f32 %v148, %v547
    %v549 = vpop.f32.mrf.mxu0
    %v550 = vadd.f32 %v148, %v549
    %551 = vmatmul.bf16.gmra.mxu0 %v192
    %v552 = vpop.f32.mrf.mxu0
    %v553 = vadd.f32 %v148, %v552
    %v554 = vpop.f32.mrf.mxu0
    %v555 = vadd.f32 %v148, %v554
    %556 = vdwg.mxu0
    %v557 = vmax.f32 %v371, 0.0
    %v558 = vmax.f32 %v420, 0.0
    %v559 = vmax.f32 %v469, 0.0
    %v560 = vmax.f32 %v518, 0.0
    %v561 = vmax.f32 %v373, 0.0
    %v562 = vmax.f32 %v422, 0.0
    %v563 = vmax.f32 %v471, 0.0
    %v564 = vmax.f32 %v520, 0.0
    %v565 = vmax.f32 %v376, 0.0
    %v566 = vmax.f32 %v425, 0.0
    %v567 = vmax.f32 %v474, 0.0
    %v568 = vmax.f32 %v523, 0.0
    %v569 = vmax.f32 %v378, 0.0
    %v570 = vmax.f32 %v427, 0.0
    %v571 = vmax.f32 %v476, 0.0
    %v572 = vmax.f32 %v525, 0.0
    %v573 = vmax.f32 %v381, 0.0
    %v574 = vmax.f32 %v430, 0.0
    %v575 = vmax.f32 %v479, 0.0
    %v576 = vmax.f32 %v528, 0.0
    %v577 = vmax.f32 %v383, 0.0
    %v578 = vmax.f32 %v432, 0.0
    %v579 = vmax.f32 %v481, 0.0
    %v580 = vmax.f32 %v530, 0.0
    %v581 = vmax.f32 %v386, 0.0
    %v582 = vmax.f32 %v435, 0.0
    %v583 = vmax.f32 %v484, 0.0
    %v584 = vmax.f32 %v533, 0.0
    %v585 = vmax.f32 %v388, 0.0
    %v586 = vmax.f32 %v437, 0.0
    %v587 = vmax.f32 %v486, 0.0
    %v588 = vmax.f32 %v535, 0.0
    %v589 = vmax.f32 %v391, 0.0
    %v590 = vmax.f32 %v440, 0.0
    %v591 = vmax.f32 %v489, 0.0
    %v592 = vmax.f32 %v538, 0.0
    %v593 = vmax.f32 %v393, 0.0
    %v594 = vmax.f32 %v442, 0.0
    %v595 = vmax.f32 %v491, 0.0
    %v596 = vmax.f32 %v540, 0.0
    %v597 = vmax.f32 %v396, 0.0
    %v598 = vmax.f32 %v445, 0.0
    %v599 = vmax.f32 %v494, 0.0
    %v600 = vmax.f32 %v543, 0.0
    %v601 = vmax.f32 %v398, 0.0
    %v602 = vmax.f32 %v447, 0.0
    %v603 = vmax.f32 %v496, 0.0
    %v604 = vmax.f32 %v545, 0.0
    %v605 = vmax.f32 %v401, 0.0
    %v606 = vmax.f32 %v450, 0.0
    %v607 = vmax.f32 %v499, 0.0
    %v608 = vmax.f32 %v548, 0.0
    %v609 = vmax.f32 %v403, 0.0
    %v610 = vmax.f32 %v452, 0.0
    %v611 = vmax.f32 %v501, 0.0
    %v612 = vmax.f32 %v550, 0.0
    %v613 = vmax.f32 %v406, 0.0
    %v614 = vmax.f32 %v455, 0.0
    %v615 = vmax.f32 %v504, 0.0
    %v616 = vmax.f32 %v553, 0.0
    %v617 = vmax.f32 %v408, 0.0
    %v618 = vmax.f32 %v457, 0.0
    %v619 = vmax.f32 %v506, 0.0
    %v620 = vmax.f32 %v555, 0.0
    %v621 = vpack.c.bf16 %v561, %v557
    %v622 = vpack.c.bf16 %v562, %v558
    %v623 = vpack.c.bf16 %v563, %v559
    %v624 = vpack.c.bf16 %v564, %v560
    %v625 = vpack.c.bf16 %v569, %v565
    %v626 = vpack.c.bf16 %v570, %v566
    %v627 = vpack.c.bf16 %v571, %v567
    %v628 = vpack.c.bf16 %v572, %v568
    %v629 = vpack.c.bf16 %v577, %v573
    %v630 = vpack.c.bf16 %v578, %v574
    %v631 = vpack.c.bf16 %v579, %v575
    %v632 = vpack.c.bf16 %v580, %v576
    %v633 = vpack.c.bf16 %v585, %v581
    %v634 = vpack.c.bf16 %v586, %v582
    %v635 = vpack.c.bf16 %v587, %v583
    %v636 = vpack.c.bf16 %v588, %v584
    %v637 = vpack.c.bf16 %v593, %v589
    %v638 = vpack.c.bf16 %v594, %v590
    %v639 = vpack.c.bf16 %v595, %v591
    %v640 = vpack.c.bf16 %v596, %v592
    %v641 = vpack.c.bf16 %v601, %v597
    %v642 = vpack.c.bf16 %v602, %v598
    %v643 = vpack.c.bf16 %v603, %v599
    %v644 = vpack.c.bf16 %v604, %v600
    %v645 = vpack.c.bf16 %v609, %v605
    %v646 = vpack.c.bf16 %v610, %v606
    %v647 = vpack.c.bf16 %v611, %v607
    %v648 = vpack.c.bf16 %v612, %v608
    %v649 = vpack.c.bf16 %v617, %v613
    %v650 = vpack.c.bf16 %v618, %v614
    %v651 = vpack.c.bf16 %v619, %v615
    %v652 = vpack.c.bf16 %v620, %v616
    %v653 = vld [vmem:[#allocation4] sm:$0xff]
    %v654 = vld [vmem:[#allocation4 + $0x8] sm:$0xff]
    %v655 = vld [vmem:[#allocation4 + $0x10] sm:$0xff]
    %v656 = vld [vmem:[#allocation4 + $0x18] sm:$0xff]
    %v657 = vld [vmem:[#allocation4 + $0x20] sm:$0xff]
    %v658 = vld [vmem:[#allocation4 + $0x28] sm:$0xff]
    %v659 = vld [vmem:[#allocation4 + $0x30] sm:$0xff]
    %v660 = vld [vmem:[#allocation4 + $0x38] sm:$0xff]
    %v661 = vld [vmem:[#allocation4 + $0x40] sm:$0xff]
    %v662 = vld [vmem:[#allocation4 + $0x48] sm:$0xff]
    %v663 = vld [vmem:[#allocation4 + $0x50] sm:$0xff]
    %v664 = vld [vmem:[#allocation4 + $0x58] sm:$0xff]
    %v665 = vld [vmem:[#allocation4 + $0x60] sm:$0xff]
    %v666 = vld [vmem:[#allocation4 + $0x68] sm:$0xff]
    %v667 = vld [vmem:[#allocation4 + $0x70] sm:$0xff]
    %v668 = vld [vmem:[#allocation4 + $0x78] sm:$0xff]
    %v669 = vld [vmem:[#allocation4 + $0x80] sm:$0xff]
    %v670 = vld [vmem:[#allocation4 + $0x88] sm:$0xff]
    %v671 = vld [vmem:[#allocation4 + $0x90] sm:$0xff]
    %v672 = vld [vmem:[#allocation4 + $0x98] sm:$0xff]
    %v673 = vld [vmem:[#allocation4 + $0xa0] sm:$0xff]
    %v674 = vld [vmem:[#allocation4 + $0xa8] sm:$0xff]
    %v675 = vld [vmem:[#allocation4 + $0xb0] sm:$0xff]
    %v676 = vld [vmem:[#allocation4 + $0xb8] sm:$0xff]
    %v677 = vld [vmem:[#allocation4 + $0xc0] sm:$0xff]
    %v678 = vld [vmem:[#allocation4 + $0xc8] sm:$0xff]
    %v679 = vld [vmem:[#allocation4 + $0xd0] sm:$0xff]
    %v680 = vld [vmem:[#allocation4 + $0xd8] sm:$0xff]
    %v681 = vld [vmem:[#allocation4 + $0xe0] sm:$0xff]
    %v682 = vld [vmem:[#allocation4 + $0xe8] sm:$0xff]
    %v683 = vld [vmem:[#allocation4 + $0xf0] sm:$0xff]
    %v684 = vld [vmem:[#allocation4 + $0xf8] sm:$0xff]
    %v685 = vld [vmem:[#allocation4 + $0x100] sm:$0xff]
    %v686 = vld [vmem:[#allocation4 + $0x108] sm:$0xff]
    %v687 = vld [vmem:[#allocation4 + $0x110] sm:$0xff]
    %v688 = vld [vmem:[#allocation4 + $0x118] sm:$0xff]
    %v689 = vld [vmem:[#allocation4 + $0x120] sm:$0xff]
    %v690 = vld [vmem:[#allocation4 + $0x128] sm:$0xff]
    %v691 = vld [vmem:[#allocation4 + $0x130] sm:$0xff]
    %v692 = vld [vmem:[#allocation4 + $0x138] sm:$0xff]
    %v693 = vld [vmem:[#allocation4 + $0x140] sm:$0xff]
    %v694 = vld [vmem:[#allocation4 + $0x148] sm:$0xff]
    %v695 = vld [vmem:[#allocation4 + $0x150] sm:$0xff]
    %v696 = vld [vmem:[#allocation4 + $0x158] sm:$0xff]
    %v697 = vld [vmem:[#allocation4 + $0x160] sm:$0xff]
    %v698 = vld [vmem:[#allocation4 + $0x168] sm:$0xff]
    %v699 = vld [vmem:[#allocation4 + $0x170] sm:$0xff]
    %v700 = vld [vmem:[#allocation4 + $0x178] sm:$0xff]
    %v701 = vld [vmem:[#allocation4 + $0x180] sm:$0xff]
    %v702 = vld [vmem:[#allocation4 + $0x188] sm:$0xff]
    %v703 = vld [vmem:[#allocation4 + $0x190] sm:$0xff]
    %v704 = vld [vmem:[#allocation4 + $0x198] sm:$0xff]
    %v705 = vld [vmem:[#allocation4 + $0x1a0] sm:$0xff]
    %v706 = vld [vmem:[#allocation4 + $0x1a8] sm:$0xff]
    %v707 = vld [vmem:[#allocation4 + $0x1b0] sm:$0xff]
    %v708 = vld [vmem:[#allocation4 + $0x1b8] sm:$0xff]
    %v709 = vld [vmem:[#allocation4 + $0x1c0] sm:$0xff]
    %v710 = vld [vmem:[#allocation4 + $0x1c8] sm:$0xff]
    %v711 = vld [vmem:[#allocation4 + $0x1d0] sm:$0xff]
    %v712 = vld [vmem:[#allocation4 + $0x1d8] sm:$0xff]
    %v713 = vld [vmem:[#allocation4 + $0x1e0] sm:$0xff]
    %v714 = vld [vmem:[#allocation4 + $0x1e8] sm:$0xff]
    %v715 = vld [vmem:[#allocation4 + $0x1f0] sm:$0xff]
    %v716 = vld [vmem:[#allocation4 + $0x1f8] sm:$0xff]
    %v717 = vld [vmem:[#allocation4 + $0x200] sm:$0xff]
    %v718 = vld [vmem:[#allocation4 + $0x208] sm:$0xff]
    %v719 = vld [vmem:[#allocation4 + $0x210] sm:$0xff]
    %v720 = vld [vmem:[#allocation4 + $0x218] sm:$0xff]
    %v721 = vld [vmem:[#allocation4 + $0x220] sm:$0xff]
    %v722 = vld [vmem:[#allocation4 + $0x228] sm:$0xff]
    %v723 = vld [vmem:[#allocation4 + $0x230] sm:$0xff]
    %v724 = vld [vmem:[#allocation4 + $0x238] sm:$0xff]
    %v725 = vld [vmem:[#allocation4 + $0x240] sm:$0xff]
    %v726 = vld [vmem:[#allocation4 + $0x248] sm:$0xff]
    %v727 = vld [vmem:[#allocation4 + $0x250] sm:$0xff]
    %v728 = vld [vmem:[#allocation4 + $0x258] sm:$0xff]
    %v729 = vld [vmem:[#allocation4 + $0x260] sm:$0xff]
    %v730 = vld [vmem:[#allocation4 + $0x268] sm:$0xff]
    %v731 = vld [vmem:[#allocation4 + $0x270] sm:$0xff]
    %v732 = vld [vmem:[#allocation4 + $0x278] sm:$0xff]
    %v733 = vld [vmem:[#allocation4 + $0x280] sm:$0xff]
    %v734 = vld [vmem:[#allocation4 + $0x288] sm:$0xff]
    %v735 = vld [vmem:[#allocation4 + $0x290] sm:$0xff]
    %v736 = vld [vmem:[#allocation4 + $0x298] sm:$0xff]
    %v737 = vld [vmem:[#allocation4 + $0x2a0] sm:$0xff]
    %v738 = vld [vmem:[#allocation4 + $0x2a8] sm:$0xff]
    %v739 = vld [vmem:[#allocation4 + $0x2b0] sm:$0xff]
    %v740 = vld [vmem:[#allocation4 + $0x2b8] sm:$0xff]
    %v741 = vld [vmem:[#allocation4 + $0x2c0] sm:$0xff]
    %v742 = vld [vmem:[#allocation4 + $0x2c8] sm:$0xff]
    %v743 = vld [vmem:[#allocation4 + $0x2d0] sm:$0xff]
    %v744 = vld [vmem:[#allocation4 + $0x2d8] sm:$0xff]
    %v745 = vld [vmem:[#allocation4 + $0x2e0] sm:$0xff]
    %v746 = vld [vmem:[#allocation4 + $0x2e8] sm:$0xff]
    %v747 = vld [vmem:[#allocation4 + $0x2f0] sm:$0xff]
    %v748 = vld [vmem:[#allocation4 + $0x2f8] sm:$0xff]
    %v749 = vld [vmem:[#allocation4 + $0x300] sm:$0xff]
    %v750 = vld [vmem:[#allocation4 + $0x308] sm:$0xff]
    %v751 = vld [vmem:[#allocation4 + $0x310] sm:$0xff]
    %v752 = vld [vmem:[#allocation4 + $0x318] sm:$0xff]
    %v753 = vld [vmem:[#allocation4 + $0x320] sm:$0xff]
    %v754 = vld [vmem:[#allocation4 + $0x328] sm:$0xff]
    %v755 = vld [vmem:[#allocation4 + $0x330] sm:$0xff]
    %v756 = vld [vmem:[#allocation4 + $0x338] sm:$0xff]
    %v757 = vld [vmem:[#allocation4 + $0x340] sm:$0xff]
    %v758 = vld [vmem:[#allocation4 + $0x348] sm:$0xff]
    %v759 = vld [vmem:[#allocation4 + $0x350] sm:$0xff]
    %v760 = vld [vmem:[#allocation4 + $0x358] sm:$0xff]
    %v761 = vld [vmem:[#allocation4 + $0x360] sm:$0xff]
    %v762 = vld [vmem:[#allocation4 + $0x368] sm:$0xff]
    %v763 = vld [vmem:[#allocation4 + $0x370] sm:$0xff]
    %v764 = vld [vmem:[#allocation4 + $0x378] sm:$0xff]
    %v765 = vld [vmem:[#allocation4 + $0x380] sm:$0xff]
    %v766 = vld [vmem:[#allocation4 + $0x388] sm:$0xff]
    %v767 = vld [vmem:[#allocation4 + $0x390] sm:$0xff]
    %v768 = vld [vmem:[#allocation4 + $0x398] sm:$0xff]
    %v769 = vld [vmem:[#allocation4 + $0x3a0] sm:$0xff]
    %v770 = vld [vmem:[#allocation4 + $0x3a8] sm:$0xff]
    %v771 = vld [vmem:[#allocation4 + $0x3b0] sm:$0xff]
    %v772 = vld [vmem:[#allocation4 + $0x3b8] sm:$0xff]
    %v773 = vld [vmem:[#allocation4 + $0x3c0] sm:$0xff]
    %v774 = vld [vmem:[#allocation4 + $0x3c8] sm:$0xff]
    %v775 = vld [vmem:[#allocation4 + $0x3d0] sm:$0xff]
    %v776 = vld [vmem:[#allocation4 + $0x3d8] sm:$0xff]
    %v777 = vld [vmem:[#allocation4 + $0x3e0] sm:$0xff]
    %v778 = vld [vmem:[#allocation4 + $0x3e8] sm:$0xff]
    %v779 = vld [vmem:[#allocation4 + $0x3f0] sm:$0xff]
    %v780 = vld [vmem:[#allocation4 + $0x3f8] sm:$0xff]
    %v781 = vld [vmem:[%s4] sm:$0xf]
    %v783 = vperm.slane %v781, 0
    %v784 = vperm.slane %v781, 1
    %v785 = vperm.slane %v781, 2
    %v786 = vperm.slane %v781, 3
    %v919 = vunpack.c.l.b16 %v653
    %v920 = vunpack.c.h.b16 %v653
    %v921 = vunpack.c.l.b16 %v654
    %v922 = vunpack.c.h.b16 %v654
    %v923 = vunpack.c.l.b16 %v655
    %v924 = vunpack.c.h.b16 %v655
    %v925 = vunpack.c.l.b16 %v656
    %v926 = vunpack.c.h.b16 %v656
    %v927 = vunpack.c.l.b16 %v657
    %v928 = vunpack.c.h.b16 %v657
    %v929 = vunpack.c.l.b16 %v658
    %v930 = vunpack.c.h.b16 %v658
    %v931 = vunpack.c.l.b16 %v659
    %v932 = vunpack.c.h.b16 %v659
    %v933 = vunpack.c.l.b16 %v660
    %v934 = vunpack.c.h.b16 %v660
    %v935 = vunpack.c.l.b16 %v661
    %v936 = vunpack.c.h.b16 %v661
    %v937 = vunpack.c.l.b16 %v662
    %v938 = vunpack.c.h.b16 %v662
    %v939 = vunpack.c.l.b16 %v663
    %v940 = vunpack.c.h.b16 %v663
    %v941 = vunpack.c.l.b16 %v664
    %v942 = vunpack.c.h.b16 %v664
    %v943 = vunpack.c.l.b16 %v665
    %v944 = vunpack.c.h.b16 %v665
    %v945 = vunpack.c.l.b16 %v666
    %v946 = vunpack.c.h.b16 %v666
    %v947 = vunpack.c.l.b16 %v667
    %v948 = vunpack.c.h.b16 %v667
    %v949 = vunpack.c.l.b16 %v668
    %v950 = vunpack.c.h.b16 %v668
    %v951 = vunpack.c.l.b16 %v669
    %v952 = vunpack.c.h.b16 %v669
    %v953 = vunpack.c.l.b16 %v670
    %v954 = vunpack.c.h.b16 %v670
    %v955 = vunpack.c.l.b16 %v671
    %v956 = vunpack.c.h.b16 %v671
    %v957 = vunpack.c.l.b16 %v672
    %v958 = vunpack.c.h.b16 %v672
    %v959 = vunpack.c.l.b16 %v673
    %v960 = vunpack.c.h.b16 %v673
    %v961 = vunpack.c.l.b16 %v674
    %v962 = vunpack.c.h.b16 %v674
    %v963 = vunpack.c.l.b16 %v675
    %v964 = vunpack.c.h.b16 %v675
    %v965 = vunpack.c.l.b16 %v676
    %v966 = vunpack.c.h.b16 %v676
    %v967 = vunpack.c.l.b16 %v677
    %v968 = vunpack.c.h.b16 %v677
    %v969 = vunpack.c.l.b16 %v678
    %v970 = vunpack.c.h.b16 %v678
    %v971 = vunpack.c.l.b16 %v679
    %v972 = vunpack.c.h.b16 %v679
    %v973 = vunpack.c.l.b16 %v680
    %v974 = vunpack.c.h.b16 %v680
    %v975 = vunpack.c.l.b16 %v681
    %v976 = vunpack.c.h.b16 %v681
    %v977 = vunpack.c.l.b16 %v682
    %v978 = vunpack.c.h.b16 %v682
    %v979 = vunpack.c.l.b16 %v683
    %v980 = vunpack.c.h.b16 %v683
    %v981 = vunpack.c.l.b16 %v684
    %v982 = vunpack.c.h.b16 %v684
    %v983 = vunpack.c.l.b16 %v685
    %v984 = vunpack.c.h.b16 %v685
    %v985 = vunpack.c.l.b16 %v686
    %v986 = vunpack.c.h.b16 %v686
    %v987 = vunpack.c.l.b16 %v687
    %v988 = vunpack.c.h.b16 %v687
    %v989 = vunpack.c.l.b16 %v688
    %v990 = vunpack.c.h.b16 %v688
    %v991 = vunpack.c.l.b16 %v689
    %v992 = vunpack.c.h.b16 %v689
    %v993 = vunpack.c.l.b16 %v690
    %v994 = vunpack.c.h.b16 %v690
    %v995 = vunpack.c.l.b16 %v691
    %v996 = vunpack.c.h.b16 %v691
    %v997 = vunpack.c.l.b16 %v692
    %v998 = vunpack.c.h.b16 %v692
    %v999 = vunpack.c.l.b16 %v693
    %v1000 = vunpack.c.h.b16 %v693
    %v1001 = vunpack.c.l.b16 %v694
    %v1002 = vunpack.c.h.b16 %v694
    %v1003 = vunpack.c.l.b16 %v695
    %v1004 = vunpack.c.h.b16 %v695
    %v1005 = vunpack.c.l.b16 %v696
    %v1006 = vunpack.c.h.b16 %v696
    %v1007 = vunpack.c.l.b16 %v697
    %v1008 = vunpack.c.h.b16 %v697
    %v1009 = vunpack.c.l.b16 %v698
    %v1010 = vunpack.c.h.b16 %v698
    %v1011 = vunpack.c.l.b16 %v699
    %v1012 = vunpack.c.h.b16 %v699
    %v1013 = vunpack.c.l.b16 %v700
    %v1014 = vunpack.c.h.b16 %v700
    %v1015 = vunpack.c.l.b16 %v701
    %v1016 = vunpack.c.h.b16 %v701
    %v1017 = vunpack.c.l.b16 %v702
    %v1018 = vunpack.c.h.b16 %v702
    %v1019 = vunpack.c.l.b16 %v703
    %v1020 = vunpack.c.h.b16 %v703
    %v1021 = vunpack.c.l.b16 %v704
    %v1022 = vunpack.c.h.b16 %v704
    %v1023 = vunpack.c.l.b16 %v705
    %v1024 = vunpack.c.h.b16 %v705
    %v1025 = vunpack.c.l.b16 %v706
    %v1026 = vunpack.c.h.b16 %v706
    %v1027 = vunpack.c.l.b16 %v707
    %v1028 = vunpack.c.h.b16 %v707
    %v1029 = vunpack.c.l.b16 %v708
    %v1030 = vunpack.c.h.b16 %v708
    %v1031 = vunpack.c.l.b16 %v709
    %v1032 = vunpack.c.h.b16 %v709
    %v1033 = vunpack.c.l.b16 %v710
    %v1034 = vunpack.c.h.b16 %v710
    %v1035 = vunpack.c.l.b16 %v711
    %v1036 = vunpack.c.h.b16 %v711
    %v1037 = vunpack.c.l.b16 %v712
    %v1038 = vunpack.c.h.b16 %v712
    %v1039 = vunpack.c.l.b16 %v713
    %v1040 = vunpack.c.h.b16 %v713
    %v1041 = vunpack.c.l.b16 %v714
    %v1042 = vunpack.c.h.b16 %v714
    %v1043 = vunpack.c.l.b16 %v715
    %v1044 = vunpack.c.h.b16 %v715
    %v1045 = vunpack.c.l.b16 %v716
    %v1046 = vunpack.c.h.b16 %v716
    %v1047 = vunpack.c.l.b16 %v717
    %v1048 = vunpack.c.h.b16 %v717
    %v1049 = vunpack.c.l.b16 %v718
    %v1050 = vunpack.c.h.b16 %v718
    %v1051 = vunpack.c.l.b16 %v719
    %v1052 = vunpack.c.h.b16 %v719
    %v1053 = vunpack.c.l.b16 %v720
    %v1054 = vunpack.c.h.b16 %v720
    %v1055 = vunpack.c.l.b16 %v721
    %v1056 = vunpack.c.h.b16 %v721
    %v1057 = vunpack.c.l.b16 %v722
    %v1058 = vunpack.c.h.b16 %v722
    %v1059 = vunpack.c.l.b16 %v723
    %v1060 = vunpack.c.h.b16 %v723
    %v1061 = vunpack.c.l.b16 %v724
    %v1062 = vunpack.c.h.b16 %v724
    %v1063 = vunpack.c.l.b16 %v725
    %v1064 = vunpack.c.h.b16 %v725
    %v1065 = vunpack.c.l.b16 %v726
    %v1066 = vunpack.c.h.b16 %v726
    %v1067 = vunpack.c.l.b16 %v727
    %v1068 = vunpack.c.h.b16 %v727
    %v1069 = vunpack.c.l.b16 %v728
    %v1070 = vunpack.c.h.b16 %v728
    %v1071 = vunpack.c.l.b16 %v729
    %v1072 = vunpack.c.h.b16 %v729
    %v1073 = vunpack.c.l.b16 %v730
    %v1074 = vunpack.c.h.b16 %v730
    %v1075 = vunpack.c.l.b16 %v731
    %v1076 = vunpack.c.h.b16 %v731
    %v1077 = vunpack.c.l.b16 %v732
    %v1078 = vunpack.c.h.b16 %v732
    %v1079 = vunpack.c.l.b16 %v733
    %v1080 = vunpack.c.h.b16 %v733
    %v1081 = vunpack.c.l.b16 %v734
    %v1082 = vunpack.c.h.b16 %v734
    %v1083 = vunpack.c.l.b16 %v735
    %v1084 = vunpack.c.h.b16 %v735
    %v1085 = vunpack.c.l.b16 %v736
    %v1086 = vunpack.c.h.b16 %v736
    %v1087 = vunpack.c.l.b16 %v737
    %v1088 = vunpack.c.h.b16 %v737
    %v1089 = vunpack.c.l.b16 %v738
    %v1090 = vunpack.c.h.b16 %v738
    %v1091 = vunpack.c.l.b16 %v739
    %v1092 = vunpack.c.h.b16 %v739
    %v1093 = vunpack.c.l.b16 %v740
    %v1094 = vunpack.c.h.b16 %v740
    %v1095 = vunpack.c.l.b16 %v741
    %v1096 = vunpack.c.h.b16 %v741
    %v1097 = vunpack.c.l.b16 %v742
    %v1098 = vunpack.c.h.b16 %v742
    %v1099 = vunpack.c.l.b16 %v743
    %v1100 = vunpack.c.h.b16 %v743
    %v1101 = vunpack.c.l.b16 %v744
    %v1102 = vunpack.c.h.b16 %v744
    %v1103 = vunpack.c.l.b16 %v745
    %v1104 = vunpack.c.h.b16 %v745
    %v1105 = vunpack.c.l.b16 %v746
    %v1106 = vunpack.c.h.b16 %v746
    %v1107 = vunpack.c.l.b16 %v747
    %v1108 = vunpack.c.h.b16 %v747
    %v1109 = vunpack.c.l.b16 %v748
    %v1110 = vunpack.c.h.b16 %v748
    %v1111 = vunpack.c.l.b16 %v749
    %v1112 = vunpack.c.h.b16 %v749
    %v1113 = vunpack.c.l.b16 %v750
    %v1114 = vunpack.c.h.b16 %v750
    %v1115 = vunpack.c.l.b16 %v751
    %v1116 = vunpack.c.h.b16 %v751
    %v1117 = vunpack.c.l.b16 %v752
    %v1118 = vunpack.c.h.b16 %v752
    %v1119 = vunpack.c.l.b16 %v753
    %v1120 = vunpack.c.h.b16 %v753
    %v1121 = vunpack.c.l.b16 %v754
    %v1122 = vunpack.c.h.b16 %v754
    %v1123 = vunpack.c.l.b16 %v755
    %v1124 = vunpack.c.h.b16 %v755
    %v1125 = vunpack.c.l.b16 %v756
    %v1126 = vunpack.c.h.b16 %v756
    %v1127 = vunpack.c.l.b16 %v757
    %v1128 = vunpack.c.h.b16 %v757
    %v1129 = vunpack.c.l.b16 %v758
    %v1130 = vunpack.c.h.b16 %v758
    %v1131 = vunpack.c.l.b16 %v759
    %v1132 = vunpack.c.h.b16 %v759
    %v1133 = vunpack.c.l.b16 %v760
    %v1134 = vunpack.c.h.b16 %v760
    %v1135 = vunpack.c.l.b16 %v761
    %v1136 = vunpack.c.h.b16 %v761
    %v1137 = vunpack.c.l.b16 %v762
    %v1138 = vunpack.c.h.b16 %v762
    %v1139 = vunpack.c.l.b16 %v763
    %v1140 = vunpack.c.h.b16 %v763
    %v1141 = vunpack.c.l.b16 %v764
    %v1142 = vunpack.c.h.b16 %v764
    %v1143 = vunpack.c.l.b16 %v765
    %v1144 = vunpack.c.h.b16 %v765
    %v1145 = vunpack.c.l.b16 %v766
    %v1146 = vunpack.c.h.b16 %v766
    %v1147 = vunpack.c.l.b16 %v767
    %v1148 = vunpack.c.h.b16 %v767
    %v1149 = vunpack.c.l.b16 %v768
    %v1150 = vunpack.c.h.b16 %v768
    %v1151 = vunpack.c.l.b16 %v769
    %v1152 = vunpack.c.h.b16 %v769
    %v1153 = vunpack.c.l.b16 %v770
    %v1154 = vunpack.c.h.b16 %v770
    %v1155 = vunpack.c.l.b16 %v771
    %v1156 = vunpack.c.h.b16 %v771
    %v1157 = vunpack.c.l.b16 %v772
    %v1158 = vunpack.c.h.b16 %v772
    %v1159 = vunpack.c.l.b16 %v773
    %v1160 = vunpack.c.h.b16 %v773
    %v1161 = vunpack.c.l.b16 %v774
    %v1162 = vunpack.c.h.b16 %v774
    %v1163 = vunpack.c.l.b16 %v775
    %v1164 = vunpack.c.h.b16 %v775
    %v1165 = vunpack.c.l.b16 %v776
    %v1166 = vunpack.c.h.b16 %v776
    %v1167 = vunpack.c.l.b16 %v777
    %v1168 = vunpack.c.h.b16 %v777
    %v1169 = vunpack.c.l.b16 %v778
    %v1170 = vunpack.c.h.b16 %v778
    %v1171 = vunpack.c.l.b16 %v779
    %v1172 = vunpack.c.h.b16 %v779
    %v1173 = vunpack.c.l.b16 %v780
    %v1174 = vunpack.c.h.b16 %v780
    %v1175 = vpack.c.b16 %v923, %v919
    %v1176 = vpack.c.b16 %v924, %v920
    %v1177 = vpack.c.b16 %v925, %v921
    %v1178 = vpack.c.b16 %v926, %v922
    %v1179 = vpack.c.b16 %v931, %v927
    %v1180 = vpack.c.b16 %v932, %v928
    %v1181 = vpack.c.b16 %v933, %v929
    %v1182 = vpack.c.b16 %v934, %v930
    %v1183 = vpack.c.b16 %v939, %v935
    %v1184 = vpack.c.b16 %v940, %v936
    %v1185 = vpack.c.b16 %v941, %v937
    %v1186 = vpack.c.b16 %v942, %v938
    %v1187 = vpack.c.b16 %v947, %v943
    %v1188 = vpack.c.b16 %v948, %v944
    %v1189 = vpack.c.b16 %v949, %v945
    %v1190 = vpack.c.b16 %v950, %v946
    %v1191 = vpack.c.b16 %v955, %v951
    %v1192 = vpack.c.b16 %v956, %v952
    %v1193 = vpack.c.b16 %v957, %v953
    %v1194 = vpack.c.b16 %v958, %v954
    %v1195 = vpack.c.b16 %v963, %v959
    %v1196 = vpack.c.b16 %v964, %v960
    %v1197 = vpack.c.b16 %v965, %v961
    %v1198 = vpack.c.b16 %v966, %v962
    %v1199 = vpack.c.b16 %v971, %v967
    %v1200 = vpack.c.b16 %v972, %v968
    %v1201 = vpack.c.b16 %v973, %v969
    %v1202 = vpack.c.b16 %v974, %v970
    %v1203 = vpack.c.b16 %v979, %v975
    %v1204 = vpack.c.b16 %v980, %v976
    %v1205 = vpack.c.b16 %v981, %v977
    %v1206 = vpack.c.b16 %v982, %v978
    %v1207 = vpack.c.b16 %v987, %v983
    %v1208 = vpack.c.b16 %v988, %v984
    %v1209 = vpack.c.b16 %v989, %v985
    %v1210 = vpack.c.b16 %v990, %v986
    %v1211 = vpack.c.b16 %v995, %v991
    %v1212 = vpack.c.b16 %v996, %v992
    %v1213 = vpack.c.b16 %v997, %v993
    %v1214 = vpack.c.b16 %v998, %v994
    %v1215 = vpack.c.b16 %v1003, %v999
    %v1216 = vpack.c.b16 %v1004, %v1000
    %v1217 = vpack.c.b16 %v1005, %v1001
    %v1218 = vpack.c.b16 %v1006, %v1002
    %v1219 = vpack.c.b16 %v1011, %v1007
    %v1220 = vpack.c.b16 %v1012, %v1008
    %v1221 = vpack.c.b16 %v1013, %v1009
    %v1222 = vpack.c.b16 %v1014, %v1010
    %v1223 = vpack.c.b16 %v1019, %v1015
    %v1224 = vpack.c.b16 %v1020, %v1016
    %v1225 = vpack.c.b16 %v1021, %v1017
    %v1226 = vpack.c.b16 %v1022, %v1018
    %v1227 = vpack.c.b16 %v1027, %v1023
    %v1228 = vpack.c.b16 %v1028, %v1024
    %v1229 = vpack.c.b16 %v1029, %v1025
    %v1230 = vpack.c.b16 %v1030, %v1026
    %v1231 = vpack.c.b16 %v1035, %v1031
    %v1232 = vpack.c.b16 %v1036, %v1032
    %v1233 = vpack.c.b16 %v1037, %v1033
    %v1234 = vpack.c.b16 %v1038, %v1034
    %v1235 = vpack.c.b16 %v1043, %v1039
    %v1236 = vpack.c.b16 %v1044, %v1040
    %v1237 = vpack.c.b16 %v1045, %v1041
    %v1238 = vpack.c.b16 %v1046, %v1042
    %v1239 = vpack.c.b16 %v1051, %v1047
    %v1240 = vpack.c.b16 %v1052, %v1048
    %v1241 = vpack.c.b16 %v1053, %v1049
    %v1242 = vpack.c.b16 %v1054, %v1050
    %v1243 = vpack.c.b16 %v1059, %v1055
    %v1244 = vpack.c.b16 %v1060, %v1056
    %v1245 = vpack.c.b16 %v1061, %v1057
    %v1246 = vpack.c.b16 %v1062, %v1058
    %v1247 = vpack.c.b16 %v1067, %v1063
    %v1248 = vpack.c.b16 %v1068, %v1064
    %v1249 = vpack.c.b16 %v1069, %v1065
    %v1250 = vpack.c.b16 %v1070, %v1066
    %v1251 = vpack.c.b16 %v1075, %v1071
    %v1252 = vpack.c.b16 %v1076, %v1072
    %v1253 = vpack.c.b16 %v1077, %v1073
    %v1254 = vpack.c.b16 %v1078, %v1074
    %v1255 = vpack.c.b16 %v1083, %v1079
    %v1256 = vpack.c.b16 %v1084, %v1080
    %v1257 = vpack.c.b16 %v1085, %v1081
    %v1258 = vpack.c.b16 %v1086, %v1082
    %v1259 = vpack.c.b16 %v1091, %v1087
    %v1260 = vpack.c.b16 %v1092, %v1088
    %v1261 = vpack.c.b16 %v1093, %v1089
    %v1262 = vpack.c.b16 %v1094, %v1090
    %v1263 = vpack.c.b16 %v1099, %v1095
    %v1264 = vpack.c.b16 %v1100, %v1096
    %v1265 = vpack.c.b16 %v1101, %v1097
    %v1266 = vpack.c.b16 %v1102, %v1098
    %v1267 = vpack.c.b16 %v1107, %v1103
    %v1268 = vpack.c.b16 %v1108, %v1104
    %v1269 = vpack.c.b16 %v1109, %v1105
    %v1270 = vpack.c.b16 %v1110, %v1106
    %v1271 = vpack.c.b16 %v1115, %v1111
    %v1272 = vpack.c.b16 %v1116, %v1112
    %v1273 = vpack.c.b16 %v1117, %v1113
    %v1274 = vpack.c.b16 %v1118, %v1114
    %v1275 = vpack.c.b16 %v1123, %v1119
    %v1276 = vpack.c.b16 %v1124, %v1120
    %v1277 = vpack.c.b16 %v1125, %v1121
    %v1278 = vpack.c.b16 %v1126, %v1122
    %v1279 = vpack.c.b16 %v1131, %v1127
    %v1280 = vpack.c.b16 %v1132, %v1128
    %v1281 = vpack.c.b16 %v1133, %v1129
    %v1282 = vpack.c.b16 %v1134, %v1130
    %v1283 = vpack.c.b16 %v1139, %v1135
    %v1284 = vpack.c.b16 %v1140, %v1136
    %v1285 = vpack.c.b16 %v1141, %v1137
    %v1286 = vpack.c.b16 %v1142, %v1138
    %v1287 = vpack.c.b16 %v1147, %v1143
    %v1288 = vpack.c.b16 %v1148, %v1144
    %v1289 = vpack.c.b16 %v1149, %v1145
    %v1290 = vpack.c.b16 %v1150, %v1146
    %v1291 = vpack.c.b16 %v1155, %v1151
    %v1292 = vpack.c.b16 %v1156, %v1152
    %v1293 = vpack.c.b16 %v1157, %v1153
    %v1294 = vpack.c.b16 %v1158, %v1154
    %v1295 = vpack.c.b16 %v1163, %v1159
    %v1296 = vpack.c.b16 %v1164, %v1160
    %v1297 = vpack.c.b16 %v1165, %v1161
    %v1298 = vpack.c.b16 %v1166, %v1162
    %v1299 = vpack.c.b16 %v1171, %v1167
    %v1300 = vpack.c.b16 %v1172, %v1168
    %v1301 = vpack.c.b16 %v1173, %v1169
    %v1302 = vpack.c.b16 %v1174, %v1170
    %1431 = vmatpush.bf16.msra.mxu0 %v1203
    %1432 = vmatpush.bf16.msra.mxu0 %v1199
    %1433 = vmatpush.bf16.msra.mxu0 %v1195
    %1434 = vmatpush.bf16.msra.mxu0 %v1191
    %1435 = vmatpush.bf16.msra.mxu0 %v1187
    %1436 = vmatpush.bf16.msra.mxu0 %v1183
    %1437 = vmatpush.bf16.msra.mxu0 %v1179
    %1438 = vmatpush.bf16.msra.mxu0 %v1175
    %1439 = vmatmul.bf16.gmra.mxu0 %v621
    %v1440 = vpop.f32.mrf.mxu0
    %v1441 = vadd.f32 %v783, %v1440
    %v1442 = vpop.f32.mrf.mxu0
    %v1443 = vadd.f32 %v783, %v1442
    %1444 = vmatmul.bf16.gmra.mxu0 %v625
    %v1445 = vpop.f32.mrf.mxu0
    %v1446 = vadd.f32 %v783, %v1445
    %v1447 = vpop.f32.mrf.mxu0
    %v1448 = vadd.f32 %v783, %v1447
    %1449 = vmatmul.bf16.gmra.mxu0 %v629
    %v1450 = vpop.f32.mrf.mxu0
    %v1451 = vadd.f32 %v783, %v1450
    %v1452 = vpop.f32.mrf.mxu0
    %v1453 = vadd.f32 %v783, %v1452
    %1454 = vmatmul.bf16.gmra.mxu0 %v633
    %v1455 = vpop.f32.mrf.mxu0
    %v1456 = vadd.f32 %v783, %v1455
    %v1457 = vpop.f32.mrf.mxu0
    %v1458 = vadd.f32 %v783, %v1457
    %1459 = vmatmul.bf16.gmra.mxu0 %v637
    %v1460 = vpop.f32.mrf.mxu0
    %v1461 = vadd.f32 %v783, %v1460
    %v1462 = vpop.f32.mrf.mxu0
    %v1463 = vadd.f32 %v783, %v1462
    %1464 = vmatmul.bf16.gmra.mxu0 %v641
    %v1465 = vpop.f32.mrf.mxu0
    %v1466 = vadd.f32 %v783, %v1465
    %v1467 = vpop.f32.mrf.mxu0
    %v1468 = vadd.f32 %v783, %v1467
    %1469 = vmatmul.bf16.gmra.mxu0 %v645
    %v1470 = vpop.f32.mrf.mxu0
    %v1471 = vadd.f32 %v783, %v1470
    %v1472 = vpop.f32.mrf.mxu0
    %v1473 = vadd.f32 %v783, %v1472
    %1474 = vmatmul.bf16.gmra.mxu0 %v649
    %v1475 = vpop.f32.mrf.mxu0
    %v1476 = vadd.f32 %v783, %v1475
    %v1477 = vpop.f32.mrf.mxu0
    %v1478 = vadd.f32 %v783, %v1477
    %1479 = vdwg.mxu0
    %1480 = vmatpush.bf16.msra.mxu0 %v1235
    %1481 = vmatpush.bf16.msra.mxu0 %v1231
    %1482 = vmatpush.bf16.msra.mxu0 %v1227
    %1483 = vmatpush.bf16.msra.mxu0 %v1223
    %1484 = vmatpush.bf16.msra.mxu0 %v1219
    %1485 = vmatpush.bf16.msra.mxu0 %v1215
    %1486 = vmatpush.bf16.msra.mxu0 %v1211
    %1487 = vmatpush.bf16.msra.mxu0 %v1207
    %1488 = vmatmul.bf16.gmra.mxu0 %v622
    %v1489 = vpop.f32.mrf.mxu0
    %v1490 = vadd.f32 %v1441, %v1489
    %v1491 = vpop.f32.mrf.mxu0
    %v1492 = vadd.f32 %v1443, %v1491
    %1493 = vmatmul.bf16.gmra.mxu0 %v626
    %v1494 = vpop.f32.mrf.mxu0
    %v1495 = vadd.f32 %v1446, %v1494
    %v1496 = vpop.f32.mrf.mxu0
    %v1497 = vadd.f32 %v1448, %v1496
    %1498 = vmatmul.bf16.gmra.mxu0 %v630
    %v1499 = vpop.f32.mrf.mxu0
    %v1500 = vadd.f32 %v1451, %v1499
    %v1501 = vpop.f32.mrf.mxu0
    %v1502 = vadd.f32 %v1453, %v1501
    %1503 = vmatmul.bf16.gmra.mxu0 %v634
    %v1504 = vpop.f32.mrf.mxu0
    %v1505 = vadd.f32 %v1456, %v1504
    %v1506 = vpop.f32.mrf.mxu0
    %v1507 = vadd.f32 %v1458, %v1506
    %1508 = vmatmul.bf16.gmra.mxu0 %v638
    %v1509 = vpop.f32.mrf.mxu0
    %v1510 = vadd.f32 %v1461, %v1509
    %v1511 = vpop.f32.mrf.mxu0
    %v1512 = vadd.f32 %v1463, %v1511
    %1513 = vmatmul.bf16.gmra.mxu0 %v642
    %v1514 = vpop.f32.mrf.mxu0
    %v1515 = vadd.f32 %v1466, %v1514
    %v1516 = vpop.f32.mrf.mxu0
    %v1517 = vadd.f32 %v1468, %v1516
    %1518 = vmatmul.bf16.gmra.mxu0 %v646
    %v1519 = vpop.f32.mrf.mxu0
    %v1520 = vadd.f32 %v1471, %v1519
    %v1521 = vpop.f32.mrf.mxu0
    %v1522 = vadd.f32 %v1473, %v1521
    %1523 = vmatmul.bf16.gmra.mxu0 %v650
    %v1524 = vpop.f32.mrf.mxu0
    %v1525 = vadd.f32 %v1476, %v1524
    %v1526 = vpop.f32.mrf.mxu0
    %v1527 = vadd.f32 %v1478, %v1526
    %1528 = vdwg.mxu0
    %1529 = vmatpush.bf16.msra.mxu0 %v1267
    %1530 = vmatpush.bf16.msra.mxu0 %v1263
    %1531 = vmatpush.bf16.msra.mxu0 %v1259
    %1532 = vmatpush.bf16.msra.mxu0 %v1255
    %1533 = vmatpush.bf16.msra.mxu0 %v1251
    %1534 = vmatpush.bf16.msra.mxu0 %v1247
    %1535 = vmatpush.bf16.msra.mxu0 %v1243
    %1536 = vmatpush.bf16.msra.mxu0 %v1239
    %1537 = vmatmul.bf16.gmra.mxu0 %v623
    %v1538 = vpop.f32.mrf.mxu0
    %v1539 = vadd.f32 %v1490, %v1538
    %v1540 = vpop.f32.mrf.mxu0
    %v1541 = vadd.f32 %v1492, %v1540
    %1542 = vmatmul.bf16.gmra.mxu0 %v627
    %v1543 = vpop.f32.mrf.mxu0
    %v1544 = vadd.f32 %v1495, %v1543
    %v1545 = vpop.f32.mrf.mxu0
    %v1546 = vadd.f32 %v1497, %v1545
    %1547 = vmatmul.bf16.gmra.mxu0 %v631
    %v1548 = vpop.f32.mrf.mxu0
    %v1549 = vadd.f32 %v1500, %v1548
    %v1550 = vpop.f32.mrf.mxu0
    %v1551 = vadd.f32 %v1502, %v1550
    %1552 = vmatmul.bf16.gmra.mxu0 %v635
    %v1553 = vpop.f32.mrf.mxu0
    %v1554 = vadd.f32 %v1505, %v1553
    %v1555 = vpop.f32.mrf.mxu0
    %v1556 = vadd.f32 %v1507, %v1555
    %1557 = vmatmul.bf16.gmra.mxu0 %v639
    %v1558 = vpop.f32.mrf.mxu0
    %v1559 = vadd.f32 %v1510, %v1558
    %v1560 = vpop.f32.mrf.mxu0
    %v1561 = vadd.f32 %v1512, %v1560
    %1562 = vmatmul.bf16.gmra.mxu0 %v643
    %v1563 = vpop.f32.mrf.mxu0
    %v1564 = vadd.f32 %v1515, %v1563
    %v1565 = vpop.f32.mrf.mxu0
    %v1566 = vadd.f32 %v1517, %v1565
    %1567 = vmatmul.bf16.gmra.mxu0 %v647
    %v1568 = vpop.f32.mrf.mxu0
    %v1569 = vadd.f32 %v1520, %v1568
    %v1570 = vpop.f32.mrf.mxu0
    %v1571 = vadd.f32 %v1522, %v1570
    %1572 = vmatmul.bf16.gmra.mxu0 %v651
    %v1573 = vpop.f32.mrf.mxu0
    %v1574 = vadd.f32 %v1525, %v1573
    %v1575 = vpop.f32.mrf.mxu0
    %v1576 = vadd.f32 %v1527, %v1575
    %1577 = vdwg.mxu0
    %1578 = vmatpush.bf16.msra.mxu0 %v1299
    %1579 = vmatpush.bf16.msra.mxu0 %v1295
    %1580 = vmatpush.bf16.msra.mxu0 %v1291
    %1581 = vmatpush.bf16.msra.mxu0 %v1287
    %1582 = vmatpush.bf16.msra.mxu0 %v1283
    %1583 = vmatpush.bf16.msra.mxu0 %v1279
    %1584 = vmatpush.bf16.msra.mxu0 %v1275
    %1585 = vmatpush.bf16.msra.mxu0 %v1271
    %1586 = vmatmul.bf16.gmra.mxu0 %v624
    %v1587 = vpop.f32.mrf.mxu0
    %v1588 = vadd.f32 %v1539, %v1587
    %v1589 = vpop.f32.mrf.mxu0
    %v1590 = vadd.f32 %v1541, %v1589
    %1591 = vmatmul.bf16.gmra.mxu0 %v628
    %v1592 = vpop.f32.mrf.mxu0
    %v1593 = vadd.f32 %v1544, %v1592
    %v1594 = vpop.f32.mrf.mxu0
    %v1595 = vadd.f32 %v1546, %v1594
    %1596 = vmatmul.bf16.gmra.mxu0 %v632
    %v1597 = vpop.f32.mrf.mxu0
    %v1598 = vadd.f32 %v1549, %v1597
    %v1599 = vpop.f32.mrf.mxu0
    %v1600 = vadd.f32 %v1551, %v1599
    %1601 = vmatmul.bf16.gmra.mxu0 %v636
    %v1602 = vpop.f32.mrf.mxu0
    %v1603 = vadd.f32 %v1554, %v1602
    %v1604 = vpop.f32.mrf.mxu0
    %v1605 = vadd.f32 %v1556, %v1604
    %1606 = vmatmul.bf16.gmra.mxu0 %v640
    %v1607 = vpop.f32.mrf.mxu0
    %v1608 = vadd.f32 %v1559, %v1607
    %v1609 = vpop.f32.mrf.mxu0
    %v1610 = vadd.f32 %v1561, %v1609
    %1611 = vmatmul.bf16.gmra.mxu0 %v644
    %v1612 = vpop.f32.mrf.mxu0
    %v1613 = vadd.f32 %v1564, %v1612
    %v1614 = vpop.f32.mrf.mxu0
    %v1615 = vadd.f32 %v1566, %v1614
    %1616 = vmatmul.bf16.gmra.mxu0 %v648
    %v1617 = vpop.f32.mrf.mxu0
    %v1618 = vadd.f32 %v1569, %v1617
    %v1619 = vpop.f32.mrf.mxu0
    %v1620 = vadd.f32 %v1571, %v1619
    %1621 = vmatmul.bf16.gmra.mxu0 %v652
    %v1622 = vpop.f32.mrf.mxu0
    %v1623 = vadd.f32 %v1574, %v1622
    %v1624 = vpop.f32.mrf.mxu0
    %v1625 = vadd.f32 %v1576, %v1624
    %1626 = vdwg.mxu0
    %1627 = vmatpush.bf16.msra.mxu0 %v1204
    %1628 = vmatpush.bf16.msra.mxu0 %v1200
    %1629 = vmatpush.bf16.msra.mxu0 %v1196
    %1630 = vmatpush.bf16.msra.mxu0 %v1192
    %1631 = vmatpush.bf16.msra.mxu0 %v1188
    %1632 = vmatpush.bf16.msra.mxu0 %v1184
    %1633 = vmatpush.bf16.msra.mxu0 %v1180
    %1634 = vmatpush.bf16.msra.mxu0 %v1176
    %1635 = vmatmul.bf16.gmra.mxu0 %v621
    %v1636 = vpop.f32.mrf.mxu0
    %v1637 = vadd.f32 %v784, %v1636
    %v1638 = vpop.f32.mrf.mxu0
    %v1639 = vadd.f32 %v784, %v1638
    %1640 = vmatmul.bf16.gmra.mxu0 %v625
    %v1641 = vpop.f32.mrf.mxu0
    %v1642 = vadd.f32 %v784, %v1641
    %v1643 = vpop.f32.mrf.mxu0
    %v1644 = vadd.f32 %v784, %v1643
    %1645 = vmatmul.bf16.gmra.mxu0 %v629
    %v1646 = vpop.f32.mrf.mxu0
    %v1647 = vadd.f32 %v784, %v1646
    %v1648 = vpop.f32.mrf.mxu0
    %v1649 = vadd.f32 %v784, %v1648
    %1650 = vmatmul.bf16.gmra.mxu0 %v633
    %v1651 = vpop.f32.mrf.mxu0
    %v1652 = vadd.f32 %v784, %v1651
    %v1653 = vpop.f32.mrf.mxu0
    %v1654 = vadd.f32 %v784, %v1653
    %1655 = vmatmul.bf16.gmra.mxu0 %v637
    %v1656 = vpop.f32.mrf.mxu0
    %v1657 = vadd.f32 %v784, %v1656
    %v1658 = vpop.f32.mrf.mxu0
    %v1659 = vadd.f32 %v784, %v1658
    %1660 = vmatmul.bf16.gmra.mxu0 %v641
    %v1661 = vpop.f32.mrf.mxu0
    %v1662 = vadd.f32 %v784, %v1661
    %v1663 = vpop.f32.mrf.mxu0
    %v1664 = vadd.f32 %v784, %v1663
    %1665 = vmatmul.bf16.gmra.mxu0 %v645
    %v1666 = vpop.f32.mrf.mxu0
    %v1667 = vadd.f32 %v784, %v1666
    %v1668 = vpop.f32.mrf.mxu0
    %v1669 = vadd.f32 %v784, %v1668
    %1670 = vmatmul.bf16.gmra.mxu0 %v649
    %v1671 = vpop.f32.mrf.mxu0
    %v1672 = vadd.f32 %v784, %v1671
    %v1673 = vpop.f32.mrf.mxu0
    %v1674 = vadd.f32 %v784, %v1673
    %1675 = vdwg.mxu0
    %1676 = vmatpush.bf16.msra.mxu0 %v1236
    %1677 = vmatpush.bf16.msra.mxu0 %v1232
    %1678 = vmatpush.bf16.msra.mxu0 %v1228
    %1679 = vmatpush.bf16.msra.mxu0 %v1224
    %1680 = vmatpush.bf16.msra.mxu0 %v1220
    %1681 = vmatpush.bf16.msra.mxu0 %v1216
    %1682 = vmatpush.bf16.msra.mxu0 %v1212
    %1683 = vmatpush.bf16.msra.mxu0 %v1208
    %1684 = vmatmul.bf16.gmra.mxu0 %v622
    %v1685 = vpop.f32.mrf.mxu0
    %v1686 = vadd.f32 %v1637, %v1685
    %v1687 = vpop.f32.mrf.mxu0
    %v1688 = vadd.f32 %v1639, %v1687
    %1689 = vmatmul.bf16.gmra.mxu0 %v626
    %v1690 = vpop.f32.mrf.mxu0
    %v1691 = vadd.f32 %v1642, %v1690
    %v1692 = vpop.f32.mrf.mxu0
    %v1693 = vadd.f32 %v1644, %v1692
    %1694 = vmatmul.bf16.gmra.mxu0 %v630
    %v1695 = vpop.f32.mrf.mxu0
    %v1696 = vadd.f32 %v1647, %v1695
    %v1697 = vpop.f32.mrf.mxu0
    %v1698 = vadd.f32 %v1649, %v1697
    %1699 = vmatmul.bf16.gmra.mxu0 %v634
    %v1700 = vpop.f32.mrf.mxu0
    %v1701 = vadd.f32 %v1652, %v1700
    %v1702 = vpop.f32.mrf.mxu0
    %v1703 = vadd.f32 %v1654, %v1702
    %1704 = vmatmul.bf16.gmra.mxu0 %v638
    %v1705 = vpop.f32.mrf.mxu0
    %v1706 = vadd.f32 %v1657, %v1705
    %v1707 = vpop.f32.mrf.mxu0
    %v1708 = vadd.f32 %v1659, %v1707
    %1709 = vmatmul.bf16.gmra.mxu0 %v642
    %v1710 = vpop.f32.mrf.mxu0
    %v1711 = vadd.f32 %v1662, %v1710
    %v1712 = vpop.f32.mrf.mxu0
    %v1713 = vadd.f32 %v1664, %v1712
    %1714 = vmatmul.bf16.gmra.mxu0 %v646
    %v1715 = vpop.f32.mrf.mxu0
    %v1716 = vadd.f32 %v1667, %v1715
    %v1717 = vpop.f32.mrf.mxu0
    %v1718 = vadd.f32 %v1669, %v1717
    %1719 = vmatmul.bf16.gmra.mxu0 %v650
    %v1720 = vpop.f32.mrf.mxu0
    %v1721 = vadd.f32 %v1672, %v1720
    %v1722 = vpop.f32.mrf.mxu0
    %v1723 = vadd.f32 %v1674, %v1722
    %1724 = vdwg.mxu0
    %1725 = vmatpush.bf16.msra.mxu0 %v1268
    %1726 = vmatpush.bf16.msra.mxu0 %v1264
    %1727 = vmatpush.bf16.msra.mxu0 %v1260
    %1728 = vmatpush.bf16.msra.mxu0 %v1256
    %1729 = vmatpush.bf16.msra.mxu0 %v1252
    %1730 = vmatpush.bf16.msra.mxu0 %v1248
    %1731 = vmatpush.bf16.msra.mxu0 %v1244
    %1732 = vmatpush.bf16.msra.mxu0 %v1240
    %1733 = vmatmul.bf16.gmra.mxu0 %v623
    %v1734 = vpop.f32.mrf.mxu0
    %v1735 = vadd.f32 %v1686, %v1734
    %v1736 = vpop.f32.mrf.mxu0
    %v1737 = vadd.f32 %v1688, %v1736
    %1738 = vmatmul.bf16.gmra.mxu0 %v627
    %v1739 = vpop.f32.mrf.mxu0
    %v1740 = vadd.f32 %v1691, %v1739
    %v1741 = vpop.f32.mrf.mxu0
    %v1742 = vadd.f32 %v1693, %v1741
    %1743 = vmatmul.bf16.gmra.mxu0 %v631
    %v1744 = vpop.f32.mrf.mxu0
    %v1745 = vadd.f32 %v1696, %v1744
    %v1746 = vpop.f32.mrf.mxu0
    %v1747 = vadd.f32 %v1698, %v1746
    %1748 = vmatmul.bf16.gmra.mxu0 %v635
    %v1749 = vpop.f32.mrf.mxu0
    %v1750 = vadd.f32 %v1701, %v1749
    %v1751 = vpop.f32.mrf.mxu0
    %v1752 = vadd.f32 %v1703, %v1751
    %1753 = vmatmul.bf16.gmra.mxu0 %v639
    %v1754 = vpop.f32.mrf.mxu0
    %v1755 = vadd.f32 %v1706, %v1754
    %v1756 = vpop.f32.mrf.mxu0
    %v1757 = vadd.f32 %v1708, %v1756
    %1758 = vmatmul.bf16.gmra.mxu0 %v643
    %v1759 = vpop.f32.mrf.mxu0
    %v1760 = vadd.f32 %v1711, %v1759
    %v1761 = vpop.f32.mrf.mxu0
    %v1762 = vadd.f32 %v1713, %v1761
    %1763 = vmatmul.bf16.gmra.mxu0 %v647
    %v1764 = vpop.f32.mrf.mxu0
    %v1765 = vadd.f32 %v1716, %v1764
    %v1766 = vpop.f32.mrf.mxu0
    %v1767 = vadd.f32 %v1718, %v1766
    %1768 = vmatmul.bf16.gmra.mxu0 %v651
    %v1769 = vpop.f32.mrf.mxu0
    %v1770 = vadd.f32 %v1721, %v1769
    %v1771 = vpop.f32.mrf.mxu0
    %v1772 = vadd.f32 %v1723, %v1771
    %1773 = vdwg.mxu0
    %1774 = vmatpush.bf16.msra.mxu0 %v1300
    %1775 = vmatpush.bf16.msra.mxu0 %v1296
    %1776 = vmatpush.bf16.msra.mxu0 %v1292
    %1777 = vmatpush.bf16.msra.mxu0 %v1288
    %1778 = vmatpush.bf16.msra.mxu0 %v1284
    %1779 = vmatpush.bf16.msra.mxu0 %v1280
    %1780 = vmatpush.bf16.msra.mxu0 %v1276
    %1781 = vmatpush.bf16.msra.mxu0 %v1272
    %1782 = vmatmul.bf16.gmra.mxu0 %v624
    %v1783 = vpop.f32.mrf.mxu0
    %v1784 = vadd.f32 %v1735, %v1783
    %v1785 = vpop.f32.mrf.mxu0
    %v1786 = vadd.f32 %v1737, %v1785
    %1787 = vmatmul.bf16.gmra.mxu0 %v628
    %v1788 = vpop.f32.mrf.mxu0
    %v1789 = vadd.f32 %v1740, %v1788
    %v1790 = vpop.f32.mrf.mxu0
    %v1791 = vadd.f32 %v1742, %v1790
    %1792 = vmatmul.bf16.gmra.mxu0 %v632
    %v1793 = vpop.f32.mrf.mxu0
    %v1794 = vadd.f32 %v1745, %v1793
    %v1795 = vpop.f32.mrf.mxu0
    %v1796 = vadd.f32 %v1747, %v1795
    %1797 = vmatmul.bf16.gmra.mxu0 %v636
    %v1798 = vpop.f32.mrf.mxu0
    %v1799 = vadd.f32 %v1750, %v1798
    %v1800 = vpop.f32.mrf.mxu0
    %v1801 = vadd.f32 %v1752, %v1800
    %1802 = vmatmul.bf16.gmra.mxu0 %v640
    %v1803 = vpop.f32.mrf.mxu0
    %v1804 = vadd.f32 %v1755, %v1803
    %v1805 = vpop.f32.mrf.mxu0
    %v1806 = vadd.f32 %v1757, %v1805
    %1807 = vmatmul.bf16.gmra.mxu0 %v644
    %v1808 = vpop.f32.mrf.mxu0
    %v1809 = vadd.f32 %v1760, %v1808
    %v1810 = vpop.f32.mrf.mxu0
    %v1811 = vadd.f32 %v1762, %v1810
    %1812 = vmatmul.bf16.gmra.mxu0 %v648
    %v1813 = vpop.f32.mrf.mxu0
    %v1814 = vadd.f32 %v1765, %v1813
    %v1815 = vpop.f32.mrf.mxu0
    %v1816 = vadd.f32 %v1767, %v1815
    %1817 = vmatmul.bf16.gmra.mxu0 %v652
    %v1818 = vpop.f32.mrf.mxu0
    %v1819 = vadd.f32 %v1770, %v1818
    %v1820 = vpop.f32.mrf.mxu0
    %v1821 = vadd.f32 %v1772, %v1820
    %1822 = vdwg.mxu0
    %1823 = vmatpush.bf16.msra.mxu0 %v1205
    %1824 = vmatpush.bf16.msra.mxu0 %v1201
    %1825 = vmatpush.bf16.msra.mxu0 %v1197
    %1826 = vmatpush.bf16.msra.mxu0 %v1193
    %1827 = vmatpush.bf16.msra.mxu0 %v1189
    %1828 = vmatpush.bf16.msra.mxu0 %v1185
    %1829 = vmatpush.bf16.msra.mxu0 %v1181
    %1830 = vmatpush.bf16.msra.mxu0 %v1177
    %1831 = vmatmul.bf16.gmra.mxu0 %v621
    %v1832 = vpop.f32.mrf.mxu0
    %v1833 = vadd.f32 %v785, %v1832
    %v1834 = vpop.f32.mrf.mxu0
    %v1835 = vadd.f32 %v785, %v1834
    %1836 = vmatmul.bf16.gmra.mxu0 %v625
    %v1837 = vpop.f32.mrf.mxu0
    %v1838 = vadd.f32 %v785, %v1837
    %v1839 = vpop.f32.mrf.mxu0
    %v1840 = vadd.f32 %v785, %v1839
    %1841 = vmatmul.bf16.gmra.mxu0 %v629
    %v1842 = vpop.f32.mrf.mxu0
    %v1843 = vadd.f32 %v785, %v1842
    %v1844 = vpop.f32.mrf.mxu0
    %v1845 = vadd.f32 %v785, %v1844
    %1846 = vmatmul.bf16.gmra.mxu0 %v633
    %v1847 = vpop.f32.mrf.mxu0
    %v1848 = vadd.f32 %v785, %v1847
    %v1849 = vpop.f32.mrf.mxu0
    %v1850 = vadd.f32 %v785, %v1849
    %1851 = vmatmul.bf16.gmra.mxu0 %v637
    %v1852 = vpop.f32.mrf.mxu0
    %v1853 = vadd.f32 %v785, %v1852
    %v1854 = vpop.f32.mrf.mxu0
    %v1855 = vadd.f32 %v785, %v1854
    %1856 = vmatmul.bf16.gmra.mxu0 %v641
    %v1857 = vpop.f32.mrf.mxu0
    %v1858 = vadd.f32 %v785, %v1857
    %v1859 = vpop.f32.mrf.mxu0
    %v1860 = vadd.f32 %v785, %v1859
    %1861 = vmatmul.bf16.gmra.mxu0 %v645
    %v1862 = vpop.f32.mrf.mxu0
    %v1863 = vadd.f32 %v785, %v1862
    %v1864 = vpop.f32.mrf.mxu0
    %v1865 = vadd.f32 %v785, %v1864
    %1866 = vmatmul.bf16.gmra.mxu0 %v649
    %v1867 = vpop.f32.mrf.mxu0
    %v1868 = vadd.f32 %v785, %v1867
    %v1869 = vpop.f32.mrf.mxu0
    %v1870 = vadd.f32 %v785, %v1869
    %1871 = vdwg.mxu0
    %1872 = vmatpush.bf16.msra.mxu0 %v1237
    %1873 = vmatpush.bf16.msra.mxu0 %v1233
    %1874 = vmatpush.bf16.msra.mxu0 %v1229
    %1875 = vmatpush.bf16.msra.mxu0 %v1225
    %1876 = vmatpush.bf16.msra.mxu0 %v1221
    %1877 = vmatpush.bf16.msra.mxu0 %v1217
    %1878 = vmatpush.bf16.msra.mxu0 %v1213
    %1879 = vmatpush.bf16.msra.mxu0 %v1209
    %1880 = vmatmul.bf16.gmra.mxu0 %v622
    %v1881 = vpop.f32.mrf.mxu0
    %v1882 = vadd.f32 %v1833, %v1881
    %v1883 = vpop.f32.mrf.mxu0
    %v1884 = vadd.f32 %v1835, %v1883
    %1885 = vmatmul.bf16.gmra.mxu0 %v626
    %v1886 = vpop.f32.mrf.mxu0
    %v1887 = vadd.f32 %v1838, %v1886
    %v1888 = vpop.f32.mrf.mxu0
    %v1889 = vadd.f32 %v1840, %v1888
    %1890 = vmatmul.bf16.gmra.mxu0 %v630
    %v1891 = vpop.f32.mrf.mxu0
    %v1892 = vadd.f32 %v1843, %v1891
    %v1893 = vpop.f32.mrf.mxu0
    %v1894 = vadd.f32 %v1845, %v1893
    %1895 = vmatmul.bf16.gmra.mxu0 %v634
    %v1896 = vpop.f32.mrf.mxu0
    %v1897 = vadd.f32 %v1848, %v1896
    %v1898 = vpop.f32.mrf.mxu0
    %v1899 = vadd.f32 %v1850, %v1898
    %1900 = vmatmul.bf16.gmra.mxu0 %v638
    %v1901 = vpop.f32.mrf.mxu0
    %v1902 = vadd.f32 %v1853, %v1901
    %v1903 = vpop.f32.mrf.mxu0
    %v1904 = vadd.f32 %v1855, %v1903
    %1905 = vmatmul.bf16.gmra.mxu0 %v642
    %v1906 = vpop.f32.mrf.mxu0
    %v1907 = vadd.f32 %v1858, %v1906
    %v1908 = vpop.f32.mrf.mxu0
    %v1909 = vadd.f32 %v1860, %v1908
    %1910 = vmatmul.bf16.gmra.mxu0 %v646
    %v1911 = vpop.f32.mrf.mxu0
    %v1912 = vadd.f32 %v1863, %v1911
    %v1913 = vpop.f32.mrf.mxu0
    %v1914 = vadd.f32 %v1865, %v1913
    %1915 = vmatmul.bf16.gmra.mxu0 %v650
    %v1916 = vpop.f32.mrf.mxu0
    %v1917 = vadd.f32 %v1868, %v1916
    %v1918 = vpop.f32.mrf.mxu0
    %v1919 = vadd.f32 %v1870, %v1918
    %1920 = vdwg.mxu0
    %1921 = vmatpush.bf16.msra.mxu0 %v1269
    %1922 = vmatpush.bf16.msra.mxu0 %v1265
    %1923 = vmatpush.bf16.msra.mxu0 %v1261
    %1924 = vmatpush.bf16.msra.mxu0 %v1257
    %1925 = vmatpush.bf16.msra.mxu0 %v1253
    %1926 = vmatpush.bf16.msra.mxu0 %v1249
    %1927 = vmatpush.bf16.msra.mxu0 %v1245
    %1928 = vmatpush.bf16.msra.mxu0 %v1241
    %1929 = vmatmul.bf16.gmra.mxu0 %v623
    %v1930 = vpop.f32.mrf.mxu0
    %v1931 = vadd.f32 %v1882, %v1930
    %v1932 = vpop.f32.mrf.mxu0
    %v1933 = vadd.f32 %v1884, %v1932
    %1934 = vmatmul.bf16.gmra.mxu0 %v627
    %v1935 = vpop.f32.mrf.mxu0
    %v1936 = vadd.f32 %v1887, %v1935
    %v1937 = vpop.f32.mrf.mxu0
    %v1938 = vadd.f32 %v1889, %v1937
    %1939 = vmatmul.bf16.gmra.mxu0 %v631
    %v1940 = vpop.f32.mrf.mxu0
    %v1941 = vadd.f32 %v1892, %v1940
    %v1942 = vpop.f32.mrf.mxu0
    %v1943 = vadd.f32 %v1894, %v1942
    %1944 = vmatmul.bf16.gmra.mxu0 %v635
    %v1945 = vpop.f32.mrf.mxu0
    %v1946 = vadd.f32 %v1897, %v1945
    %v1947 = vpop.f32.mrf.mxu0
    %v1948 = vadd.f32 %v1899, %v1947
    %1949 = vmatmul.bf16.gmra.mxu0 %v639
    %v1950 = vpop.f32.mrf.mxu0
    %v1951 = vadd.f32 %v1902, %v1950
    %v1952 = vpop.f32.mrf.mxu0
    %v1953 = vadd.f32 %v1904, %v1952
    %1954 = vmatmul.bf16.gmra.mxu0 %v643
    %v1955 = vpop.f32.mrf.mxu0
    %v1956 = vadd.f32 %v1907, %v1955
    %v1957 = vpop.f32.mrf.mxu0
    %v1958 = vadd.f32 %v1909, %v1957
    %1959 = vmatmul.bf16.gmra.mxu0 %v647
    %v1960 = vpop.f32.mrf.mxu0
    %v1961 = vadd.f32 %v1912, %v1960
    %v1962 = vpop.f32.mrf.mxu0
    %v1963 = vadd.f32 %v1914, %v1962
    %1964 = vmatmul.bf16.gmra.mxu0 %v651
    %v1965 = vpop.f32.mrf.mxu0
    %v1966 = vadd.f32 %v1917, %v1965
    %v1967 = vpop.f32.mrf.mxu0
    %v1968 = vadd.f32 %v1919, %v1967
    %1969 = vdwg.mxu0
    %1970 = vmatpush.bf16.msra.mxu0 %v1301
    %1971 = vmatpush.bf16.msra.mxu0 %v1297
    %1972 = vmatpush.bf16.msra.mxu0 %v1293
    %1973 = vmatpush.bf16.msra.mxu0 %v1289
    %1974 = vmatpush.bf16.msra.mxu0 %v1285
    %1975 = vmatpush.bf16.msra.mxu0 %v1281
    %1976 = vmatpush.bf16.msra.mxu0 %v1277
    %1977 = vmatpush.bf16.msra.mxu0 %v1273
    %1978 = vmatmul.bf16.gmra.mxu0 %v624
    %v1979 = vpop.f32.mrf.mxu0
    %v1980 = vadd.f32 %v1931, %v1979
    %v1981 = vpop.f32.mrf.mxu0
    %v1982 = vadd.f32 %v1933, %v1981
    %1983 = vmatmul.bf16.gmra.mxu0 %v628
    %v1984 = vpop.f32.mrf.mxu0
    %v1985 = vadd.f32 %v1936, %v1984
    %v1986 = vpop.f32.mrf.mxu0
    %v1987 = vadd.f32 %v1938, %v1986
    %1988 = vmatmul.bf16.gmra.mxu0 %v632
    %v1989 = vpop.f32.mrf.mxu0
    %v1990 = vadd.f32 %v1941, %v1989
    %v1991 = vpop.f32.mrf.mxu0
    %v1992 = vadd.f32 %v1943, %v1991
    %1993 = vmatmul.bf16.gmra.mxu0 %v636
    %v1994 = vpop.f32.mrf.mxu0
    %v1995 = vadd.f32 %v1946, %v1994
    %v1996 = vpop.f32.mrf.mxu0
    %v1997 = vadd.f32 %v1948, %v1996
    %1998 = vmatmul.bf16.gmra.mxu0 %v640
    %v1999 = vpop.f32.mrf.mxu0
    %v2000 = vadd.f32 %v1951, %v1999
    %v2001 = vpop.f32.mrf.mxu0
    %v2002 = vadd.f32 %v1953, %v2001
    %2003 = vmatmul.bf16.gmra.mxu0 %v644
    %v2004 = vpop.f32.mrf.mxu0
    %v2005 = vadd.f32 %v1956, %v2004
    %v2006 = vpop.f32.mrf.mxu0
    %v2007 = vadd.f32 %v1958, %v2006
    %2008 = vmatmul.bf16.gmra.mxu0 %v648
    %v2009 = vpop.f32.mrf.mxu0
    %v2010 = vadd.f32 %v1961, %v2009
    %v2011 = vpop.f32.mrf.mxu0
    %v2012 = vadd.f32 %v1963, %v2011
    %2013 = vmatmul.bf16.gmra.mxu0 %v652
    %v2014 = vpop.f32.mrf.mxu0
    %v2015 = vadd.f32 %v1966, %v2014
    %v2016 = vpop.f32.mrf.mxu0
    %v2017 = vadd.f32 %v1968, %v2016
    %2018 = vdwg.mxu0
    %2019 = vmatpush.bf16.msra.mxu0 %v1206
    %2020 = vmatpush.bf16.msra.mxu0 %v1202
    %2021 = vmatpush.bf16.msra.mxu0 %v1198
    %2022 = vmatpush.bf16.msra.mxu0 %v1194
    %2023 = vmatpush.bf16.msra.mxu0 %v1190
    %2024 = vmatpush.bf16.msra.mxu0 %v1186
    %2025 = vmatpush.bf16.msra.mxu0 %v1182
    %2026 = vmatpush.bf16.msra.mxu0 %v1178
    %2027 = vmatmul.bf16.gmra.mxu0 %v621
    %v2028 = vpop.f32.mrf.mxu0
    %v2029 = vadd.f32 %v786, %v2028
    %v2030 = vpop.f32.mrf.mxu0
    %v2031 = vadd.f32 %v786, %v2030
    %2032 = vmatmul.bf16.gmra.mxu0 %v625
    %v2033 = vpop.f32.mrf.mxu0
    %v2034 = vadd.f32 %v786, %v2033
    %v2035 = vpop.f32.mrf.mxu0
    %v2036 = vadd.f32 %v786, %v2035
    %2037 = vmatmul.bf16.gmra.mxu0 %v629
    %v2038 = vpop.f32.mrf.mxu0
    %v2039 = vadd.f32 %v786, %v2038
    %v2040 = vpop.f32.mrf.mxu0
    %v2041 = vadd.f32 %v786, %v2040
    %2042 = vmatmul.bf16.gmra.mxu0 %v633
    %v2043 = vpop.f32.mrf.mxu0
    %v2044 = vadd.f32 %v786, %v2043
    %v2045 = vpop.f32.mrf.mxu0
    %v2046 = vadd.f32 %v786, %v2045
    %2047 = vmatmul.bf16.gmra.mxu0 %v637
    %v2048 = vpop.f32.mrf.mxu0
    %v2049 = vadd.f32 %v786, %v2048
    %v2050 = vpop.f32.mrf.mxu0
    %v2051 = vadd.f32 %v786, %v2050
    %2052 = vmatmul.bf16.gmra.mxu0 %v641
    %v2053 = vpop.f32.mrf.mxu0
    %v2054 = vadd.f32 %v786, %v2053
    %v2055 = vpop.f32.mrf.mxu0
    %v2056 = vadd.f32 %v786, %v2055
    %2057 = vmatmul.bf16.gmra.mxu0 %v645
    %v2058 = vpop.f32.mrf.mxu0
    %v2059 = vadd.f32 %v786, %v2058
    %v2060 = vpop.f32.mrf.mxu0
    %v2061 = vadd.f32 %v786, %v2060
    %2062 = vmatmul.bf16.gmra.mxu0 %v649
    %v2063 = vpop.f32.mrf.mxu0
    %v2064 = vadd.f32 %v786, %v2063
    %v2065 = vpop.f32.mrf.mxu0
    %v2066 = vadd.f32 %v786, %v2065
    %2067 = vdwg.mxu0
    %2068 = vmatpush.bf16.msra.mxu0 %v1238
    %2069 = vmatpush.bf16.msra.mxu0 %v1234
    %2070 = vmatpush.bf16.msra.mxu0 %v1230
    %2071 = vmatpush.bf16.msra.mxu0 %v1226
    %2072 = vmatpush.bf16.msra.mxu0 %v1222
    %2073 = vmatpush.bf16.msra.mxu0 %v1218
    %2074 = vmatpush.bf16.msra.mxu0 %v1214
    %2075 = vmatpush.bf16.msra.mxu0 %v1210
    %2076 = vmatmul.bf16.gmra.mxu0 %v622
    %v2077 = vpop.f32.mrf.mxu0
    %v2078 = vadd.f32 %v2029, %v2077
    %v2079 = vpop.f32.mrf.mxu0
    %v2080 = vadd.f32 %v2031, %v2079
    %2081 = vmatmul.bf16.gmra.mxu0 %v626
    %v2082 = vpop.f32.mrf.mxu0
    %v2083 = vadd.f32 %v2034, %v2082
    %v2084 = vpop.f32.mrf.mxu0
    %v2085 = vadd.f32 %v2036, %v2084
    %2086 = vmatmul.bf16.gmra.mxu0 %v630
    %v2087 = vpop.f32.mrf.mxu0
    %v2088 = vadd.f32 %v2039, %v2087
    %v2089 = vpop.f32.mrf.mxu0
    %v2090 = vadd.f32 %v2041, %v2089
    %2091 = vmatmul.bf16.gmra.mxu0 %v634
    %v2092 = vpop.f32.mrf.mxu0
    %v2093 = vadd.f32 %v2044, %v2092
    %v2094 = vpop.f32.mrf.mxu0
    %v2095 = vadd.f32 %v2046, %v2094
    %2096 = vmatmul.bf16.gmra.mxu0 %v638
    %v2097 = vpop.f32.mrf.mxu0
    %v2098 = vadd.f32 %v2049, %v2097
    %v2099 = vpop.f32.mrf.mxu0
    %v2100 = vadd.f32 %v2051, %v2099
    %2101 = vmatmul.bf16.gmra.mxu0 %v642
    %v2102 = vpop.f32.mrf.mxu0
    %v2103 = vadd.f32 %v2054, %v2102
    %v2104 = vpop.f32.mrf.mxu0
    %v2105 = vadd.f32 %v2056, %v2104
    %2106 = vmatmul.bf16.gmra.mxu0 %v646
    %v2107 = vpop.f32.mrf.mxu0
    %v2108 = vadd.f32 %v2059, %v2107
    %v2109 = vpop.f32.mrf.mxu0
    %v2110 = vadd.f32 %v2061, %v2109
    %2111 = vmatmul.bf16.gmra.mxu0 %v650
    %v2112 = vpop.f32.mrf.mxu0
    %v2113 = vadd.f32 %v2064, %v2112
    %v2114 = vpop.f32.mrf.mxu0
    %v2115 = vadd.f32 %v2066, %v2114
    %2116 = vdwg.mxu0
    %2117 = vmatpush.bf16.msra.mxu0 %v1270
    %2118 = vmatpush.bf16.msra.mxu0 %v1266
    %2119 = vmatpush.bf16.msra.mxu0 %v1262
    %2120 = vmatpush.bf16.msra.mxu0 %v1258
    %2121 = vmatpush.bf16.msra.mxu0 %v1254
    %2122 = vmatpush.bf16.msra.mxu0 %v1250
    %2123 = vmatpush.bf16.msra.mxu0 %v1246
    %2124 = vmatpush.bf16.msra.mxu0 %v1242
    %2125 = vmatmul.bf16.gmra.mxu0 %v623
    %v2126 = vpop.f32.mrf.mxu0
    %v2127 = vadd.f32 %v2078, %v2126
    %v2128 = vpop.f32.mrf.mxu0
    %v2129 = vadd.f32 %v2080, %v2128
    %2130 = vmatmul.bf16.gmra.mxu0 %v627
    %v2131 = vpop.f32.mrf.mxu0
    %v2132 = vadd.f32 %v2083, %v2131
    %v2133 = vpop.f32.mrf.mxu0
    %v2134 = vadd.f32 %v2085, %v2133
    %2135 = vmatmul.bf16.gmra.mxu0 %v631
    %v2136 = vpop.f32.mrf.mxu0
    %v2137 = vadd.f32 %v2088, %v2136
    %v2138 = vpop.f32.mrf.mxu0
    %v2139 = vadd.f32 %v2090, %v2138
    %2140 = vmatmul.bf16.gmra.mxu0 %v635
    %v2141 = vpop.f32.mrf.mxu0
    %v2142 = vadd.f32 %v2093, %v2141
    %v2143 = vpop.f32.mrf.mxu0
    %v2144 = vadd.f32 %v2095, %v2143
    %2145 = vmatmul.bf16.gmra.mxu0 %v639
    %v2146 = vpop.f32.mrf.mxu0
    %v2147 = vadd.f32 %v2098, %v2146
    %v2148 = vpop.f32.mrf.mxu0
    %v2149 = vadd.f32 %v2100, %v2148
    %2150 = vmatmul.bf16.gmra.mxu0 %v643
    %v2151 = vpop.f32.mrf.mxu0
    %v2152 = vadd.f32 %v2103, %v2151
    %v2153 = vpop.f32.mrf.mxu0
    %v2154 = vadd.f32 %v2105, %v2153
    %2155 = vmatmul.bf16.gmra.mxu0 %v647
    %v2156 = vpop.f32.mrf.mxu0
    %v2157 = vadd.f32 %v2108, %v2156
    %v2158 = vpop.f32.mrf.mxu0
    %v2159 = vadd.f32 %v2110, %v2158
    %2160 = vmatmul.bf16.gmra.mxu0 %v651
    %v2161 = vpop.f32.mrf.mxu0
    %v2162 = vadd.f32 %v2113, %v2161
    %v2163 = vpop.f32.mrf.mxu0
    %v2164 = vadd.f32 %v2115, %v2163
    %2165 = vdwg.mxu0
    %2166 = vmatpush.bf16.msra.mxu0 %v1302
    %2167 = vmatpush.bf16.msra.mxu0 %v1298
    %2168 = vmatpush.bf16.msra.mxu0 %v1294
    %2169 = vmatpush.bf16.msra.mxu0 %v1290
    %2170 = vmatpush.bf16.msra.mxu0 %v1286
    %2171 = vmatpush.bf16.msra.mxu0 %v1282
    %2172 = vmatpush.bf16.msra.mxu0 %v1278
    %2173 = vmatpush.bf16.msra.mxu0 %v1274
    %2174 = vmatmul.bf16.gmra.mxu0 %v624
    %v2175 = vpop.f32.mrf.mxu0
    %v2176 = vadd.f32 %v2127, %v2175
    %v2177 = vpop.f32.mrf.mxu0
    %v2178 = vadd.f32 %v2129, %v2177
    %2179 = vmatmul.bf16.gmra.mxu0 %v628
    %v2180 = vpop.f32.mrf.mxu0
    %v2181 = vadd.f32 %v2132, %v2180
    %v2182 = vpop.f32.mrf.mxu0
    %v2183 = vadd.f32 %v2134, %v2182
    %2184 = vmatmul.bf16.gmra.mxu0 %v632
    %v2185 = vpop.f32.mrf.mxu0
    %v2186 = vadd.f32 %v2137, %v2185
    %v2187 = vpop.f32.mrf.mxu0
    %v2188 = vadd.f32 %v2139, %v2187
    %2189 = vmatmul.bf16.gmra.mxu0 %v636
    %v2190 = vpop.f32.mrf.mxu0
    %v2191 = vadd.f32 %v2142, %v2190
    %v2192 = vpop.f32.mrf.mxu0
    %v2193 = vadd.f32 %v2144, %v2192
    %2194 = vmatmul.bf16.gmra.mxu0 %v640
    %v2195 = vpop.f32.mrf.mxu0
    %v2196 = vadd.f32 %v2147, %v2195
    %v2197 = vpop.f32.mrf.mxu0
    %v2198 = vadd.f32 %v2149, %v2197
    %2199 = vmatmul.bf16.gmra.mxu0 %v644
    %v2200 = vpop.f32.mrf.mxu0
    %v2201 = vadd.f32 %v2152, %v2200
    %v2202 = vpop.f32.mrf.mxu0
    %v2203 = vadd.f32 %v2154, %v2202
    %2204 = vmatmul.bf16.gmra.mxu0 %v648
    %v2205 = vpop.f32.mrf.mxu0
    %v2206 = vadd.f32 %v2157, %v2205
    %v2207 = vpop.f32.mrf.mxu0
    %v2208 = vadd.f32 %v2159, %v2207
    %2209 = vmatmul.bf16.gmra.mxu0 %v652
    %v2210 = vpop.f32.mrf.mxu0
    %v2211 = vadd.f32 %v2162, %v2210
    %v2212 = vpop.f32.mrf.mxu0
    %v2213 = vadd.f32 %v2164, %v2212
    %2214 = vdwg.mxu0
    %v2215 = vmax.f32 %v1588, 0.0
    %v2216 = vmax.f32 %v1784, 0.0
    %v2217 = vmax.f32 %v1980, 0.0
    %v2218 = vmax.f32 %v2176, 0.0
    %v2219 = vmax.f32 %v1590, 0.0
    %v2220 = vmax.f32 %v1786, 0.0
    %v2221 = vmax.f32 %v1982, 0.0
    %v2222 = vmax.f32 %v2178, 0.0
    %v2223 = vmax.f32 %v1593, 0.0
    %v2224 = vmax.f32 %v1789, 0.0
    %v2225 = vmax.f32 %v1985, 0.0
    %v2226 = vmax.f32 %v2181, 0.0
    %v2227 = vmax.f32 %v1595, 0.0
    %v2228 = vmax.f32 %v1791, 0.0
    %v2229 = vmax.f32 %v1987, 0.0
    %v2230 = vmax.f32 %v2183, 0.0
    %v2231 = vmax.f32 %v1598, 0.0
    %v2232 = vmax.f32 %v1794, 0.0
    %v2233 = vmax.f32 %v1990, 0.0
    %v2234 = vmax.f32 %v2186, 0.0
    %v2235 = vmax.f32 %v1600, 0.0
    %v2236 = vmax.f32 %v1796, 0.0
    %v2237 = vmax.f32 %v1992, 0.0
    %v2238 = vmax.f32 %v2188, 0.0
    %v2239 = vmax.f32 %v1603, 0.0
    %v2240 = vmax.f32 %v1799, 0.0
    %v2241 = vmax.f32 %v1995, 0.0
    %v2242 = vmax.f32 %v2191, 0.0
    %v2243 = vmax.f32 %v1605, 0.0
    %v2244 = vmax.f32 %v1801, 0.0
    %v2245 = vmax.f32 %v1997, 0.0
    %v2246 = vmax.f32 %v2193, 0.0
    %v2247 = vmax.f32 %v1608, 0.0
    %v2248 = vmax.f32 %v1804, 0.0
    %v2249 = vmax.f32 %v2000, 0.0
    %v2250 = vmax.f32 %v2196, 0.0
    %v2251 = vmax.f32 %v1610, 0.0
    %v2252 = vmax.f32 %v1806, 0.0
    %v2253 = vmax.f32 %v2002, 0.0
    %v2254 = vmax.f32 %v2198, 0.0
    %v2255 = vmax.f32 %v1613, 0.0
    %v2256 = vmax.f32 %v1809, 0.0
    %v2257 = vmax.f32 %v2005, 0.0
    %v2258 = vmax.f32 %v2201, 0.0
    %v2259 = vmax.f32 %v1615, 0.0
    %v2260 = vmax.f32 %v1811, 0.0
    %v2261 = vmax.f32 %v2007, 0.0
    %v2262 = vmax.f32 %v2203, 0.0
    %v2263 = vmax.f32 %v1618, 0.0
    %v2264 = vmax.f32 %v1814, 0.0
    %v2265 = vmax.f32 %v2010, 0.0
    %v2266 = vmax.f32 %v2206, 0.0
    %v2267 = vmax.f32 %v1620, 0.0
    %v2268 = vmax.f32 %v1816, 0.0
    %v2269 = vmax.f32 %v2012, 0.0
    %v2270 = vmax.f32 %v2208, 0.0
    %v2271 = vmax.f32 %v1623, 0.0
    %v2272 = vmax.f32 %v1819, 0.0
    %v2273 = vmax.f32 %v2015, 0.0
    %v2274 = vmax.f32 %v2211, 0.0
    %v2275 = vmax.f32 %v1625, 0.0
    %v2276 = vmax.f32 %v1821, 0.0
    %v2277 = vmax.f32 %v2017, 0.0
    %v2278 = vmax.f32 %v2213, 0.0
    %v2279 = vpack.c.bf16 %v2219, %v2215
    %v2280 = vpack.c.bf16 %v2220, %v2216
    %v2281 = vpack.c.bf16 %v2221, %v2217
    %v2282 = vpack.c.bf16 %v2222, %v2218
    %v2283 = vpack.c.bf16 %v2227, %v2223
    %v2284 = vpack.c.bf16 %v2228, %v2224
    %v2285 = vpack.c.bf16 %v2229, %v2225
    %v2286 = vpack.c.bf16 %v2230, %v2226
    %v2287 = vpack.c.bf16 %v2235, %v2231
    %v2288 = vpack.c.bf16 %v2236, %v2232
    %v2289 = vpack.c.bf16 %v2237, %v2233
    %v2290 = vpack.c.bf16 %v2238, %v2234
    %v2291 = vpack.c.bf16 %v2243, %v2239
    %v2292 = vpack.c.bf16 %v2244, %v2240
    %v2293 = vpack.c.bf16 %v2245, %v2241
    %v2294 = vpack.c.bf16 %v2246, %v2242
    %v2295 = vpack.c.bf16 %v2251, %v2247
    %v2296 = vpack.c.bf16 %v2252, %v2248
    %v2297 = vpack.c.bf16 %v2253, %v2249
    %v2298 = vpack.c.bf16 %v2254, %v2250
    %v2299 = vpack.c.bf16 %v2259, %v2255
    %v2300 = vpack.c.bf16 %v2260, %v2256
    %v2301 = vpack.c.bf16 %v2261, %v2257
    %v2302 = vpack.c.bf16 %v2262, %v2258
    %v2303 = vpack.c.bf16 %v2267, %v2263
    %v2304 = vpack.c.bf16 %v2268, %v2264
    %v2305 = vpack.c.bf16 %v2269, %v2265
    %v2306 = vpack.c.bf16 %v2270, %v2266
    %v2307 = vpack.c.bf16 %v2275, %v2271
    %v2308 = vpack.c.bf16 %v2276, %v2272
    %v2309 = vpack.c.bf16 %v2277, %v2273
    %v2310 = vpack.c.bf16 %v2278, %v2274
    %v2311 = vld [vmem:[#allocation6] sm:$0xff]
    %v2312 = vld [vmem:[#allocation6 + $0x8] sm:$0xff]
    %v2313 = vld [vmem:[#allocation6 + $0x10] sm:$0xff]
    %v2314 = vld [vmem:[#allocation6 + $0x18] sm:$0xff]
    %v2315 = vld [vmem:[#allocation6 + $0x20] sm:$0xff]
    %v2316 = vld [vmem:[#allocation6 + $0x28] sm:$0xff]
    %v2317 = vld [vmem:[#allocation6 + $0x30] sm:$0xff]
    %v2318 = vld [vmem:[#allocation6 + $0x38] sm:$0xff]
    %v2319 = vld [vmem:[#allocation6 + $0x40] sm:$0xff]
    %v2320 = vld [vmem:[#allocation6 + $0x48] sm:$0xff]
    %v2321 = vld [vmem:[#allocation6 + $0x50] sm:$0xff]
    %v2322 = vld [vmem:[#allocation6 + $0x58] sm:$0xff]
    %v2323 = vld [vmem:[#allocation6 + $0x60] sm:$0xff]
    %v2324 = vld [vmem:[#allocation6 + $0x68] sm:$0xff]
    %v2325 = vld [vmem:[#allocation6 + $0x70] sm:$0xff]
    %v2326 = vld [vmem:[#allocation6 + $0x78] sm:$0xff]
    %v2327 = vld [vmem:[#allocation6 + $0x80] sm:$0xff]
    %v2328 = vld [vmem:[#allocation6 + $0x88] sm:$0xff]
    %v2329 = vld [vmem:[#allocation6 + $0x90] sm:$0xff]
    %v2330 = vld [vmem:[#allocation6 + $0x98] sm:$0xff]
    %v2331 = vld [vmem:[#allocation6 + $0xa0] sm:$0xff]
    %v2332 = vld [vmem:[#allocation6 + $0xa8] sm:$0xff]
    %v2333 = vld [vmem:[#allocation6 + $0xb0] sm:$0xff]
    %v2334 = vld [vmem:[#allocation6 + $0xb8] sm:$0xff]
    %v2335 = vld [vmem:[#allocation6 + $0xc0] sm:$0xff]
    %v2336 = vld [vmem:[#allocation6 + $0xc8] sm:$0xff]
    %v2337 = vld [vmem:[#allocation6 + $0xd0] sm:$0xff]
    %v2338 = vld [vmem:[#allocation6 + $0xd8] sm:$0xff]
    %v2339 = vld [vmem:[#allocation6 + $0xe0] sm:$0xff]
    %v2340 = vld [vmem:[#allocation6 + $0xe8] sm:$0xff]
    %v2341 = vld [vmem:[#allocation6 + $0xf0] sm:$0xff]
    %v2342 = vld [vmem:[#allocation6 + $0xf8] sm:$0xff]
    %v2343 = vld [vmem:[#allocation6 + $0x100] sm:$0xff]
    %v2344 = vld [vmem:[#allocation6 + $0x108] sm:$0xff]
    %v2345 = vld [vmem:[#allocation6 + $0x110] sm:$0xff]
    %v2346 = vld [vmem:[#allocation6 + $0x118] sm:$0xff]
    %v2347 = vld [vmem:[#allocation6 + $0x120] sm:$0xff]
    %v2348 = vld [vmem:[#allocation6 + $0x128] sm:$0xff]
    %v2349 = vld [vmem:[#allocation6 + $0x130] sm:$0xff]
    %v2350 = vld [vmem:[#allocation6 + $0x138] sm:$0xff]
    %v2351 = vld [vmem:[#allocation6 + $0x140] sm:$0xff]
    %v2352 = vld [vmem:[#allocation6 + $0x148] sm:$0xff]
    %v2353 = vld [vmem:[#allocation6 + $0x150] sm:$0xff]
    %v2354 = vld [vmem:[#allocation6 + $0x158] sm:$0xff]
    %v2355 = vld [vmem:[#allocation6 + $0x160] sm:$0xff]
    %v2356 = vld [vmem:[#allocation6 + $0x168] sm:$0xff]
    %v2357 = vld [vmem:[#allocation6 + $0x170] sm:$0xff]
    %v2358 = vld [vmem:[#allocation6 + $0x178] sm:$0xff]
    %v2359 = vld [vmem:[#allocation6 + $0x180] sm:$0xff]
    %v2360 = vld [vmem:[#allocation6 + $0x188] sm:$0xff]
    %v2361 = vld [vmem:[#allocation6 + $0x190] sm:$0xff]
    %v2362 = vld [vmem:[#allocation6 + $0x198] sm:$0xff]
    %v2363 = vld [vmem:[#allocation6 + $0x1a0] sm:$0xff]
    %v2364 = vld [vmem:[#allocation6 + $0x1a8] sm:$0xff]
    %v2365 = vld [vmem:[#allocation6 + $0x1b0] sm:$0xff]
    %v2366 = vld [vmem:[#allocation6 + $0x1b8] sm:$0xff]
    %v2367 = vld [vmem:[#allocation6 + $0x1c0] sm:$0xff]
    %v2368 = vld [vmem:[#allocation6 + $0x1c8] sm:$0xff]
    %v2369 = vld [vmem:[#allocation6 + $0x1d0] sm:$0xff]
    %v2370 = vld [vmem:[#allocation6 + $0x1d8] sm:$0xff]
    %v2371 = vld [vmem:[#allocation6 + $0x1e0] sm:$0xff]
    %v2372 = vld [vmem:[#allocation6 + $0x1e8] sm:$0xff]
    %v2373 = vld [vmem:[#allocation6 + $0x1f0] sm:$0xff]
    %v2374 = vld [vmem:[#allocation6 + $0x1f8] sm:$0xff]
    %v2375 = vld [vmem:[#allocation6 + $0x200] sm:$0xff]
    %v2376 = vld [vmem:[#allocation6 + $0x208] sm:$0xff]
    %v2377 = vld [vmem:[#allocation6 + $0x210] sm:$0xff]
    %v2378 = vld [vmem:[#allocation6 + $0x218] sm:$0xff]
    %v2379 = vld [vmem:[#allocation6 + $0x220] sm:$0xff]
    %v2380 = vld [vmem:[#allocation6 + $0x228] sm:$0xff]
    %v2381 = vld [vmem:[#allocation6 + $0x230] sm:$0xff]
    %v2382 = vld [vmem:[#allocation6 + $0x238] sm:$0xff]
    %v2383 = vld [vmem:[#allocation6 + $0x240] sm:$0xff]
    %v2384 = vld [vmem:[#allocation6 + $0x248] sm:$0xff]
    %v2385 = vld [vmem:[#allocation6 + $0x250] sm:$0xff]
    %v2386 = vld [vmem:[#allocation6 + $0x258] sm:$0xff]
    %v2387 = vld [vmem:[#allocation6 + $0x260] sm:$0xff]
    %v2388 = vld [vmem:[#allocation6 + $0x268] sm:$0xff]
    %v2389 = vld [vmem:[#allocation6 + $0x270] sm:$0xff]
    %v2390 = vld [vmem:[#allocation6 + $0x278] sm:$0xff]
    %v2391 = vld [vmem:[#allocation6 + $0x280] sm:$0xff]
    %v2392 = vld [vmem:[#allocation6 + $0x288] sm:$0xff]
    %v2393 = vld [vmem:[#allocation6 + $0x290] sm:$0xff]
    %v2394 = vld [vmem:[#allocation6 + $0x298] sm:$0xff]
    %v2395 = vld [vmem:[#allocation6 + $0x2a0] sm:$0xff]
    %v2396 = vld [vmem:[#allocation6 + $0x2a8] sm:$0xff]
    %v2397 = vld [vmem:[#allocation6 + $0x2b0] sm:$0xff]
    %v2398 = vld [vmem:[#allocation6 + $0x2b8] sm:$0xff]
    %v2399 = vld [vmem:[#allocation6 + $0x2c0] sm:$0xff]
    %v2400 = vld [vmem:[#allocation6 + $0x2c8] sm:$0xff]
    %v2401 = vld [vmem:[#allocation6 + $0x2d0] sm:$0xff]
    %v2402 = vld [vmem:[#allocation6 + $0x2d8] sm:$0xff]
    %v2403 = vld [vmem:[#allocation6 + $0x2e0] sm:$0xff]
    %v2404 = vld [vmem:[#allocation6 + $0x2e8] sm:$0xff]
    %v2405 = vld [vmem:[#allocation6 + $0x2f0] sm:$0xff]
    %v2406 = vld [vmem:[#allocation6 + $0x2f8] sm:$0xff]
    %v2407 = vld [vmem:[#allocation6 + $0x300] sm:$0xff]
    %v2408 = vld [vmem:[#allocation6 + $0x308] sm:$0xff]
    %v2409 = vld [vmem:[#allocation6 + $0x310] sm:$0xff]
    %v2410 = vld [vmem:[#allocation6 + $0x318] sm:$0xff]
    %v2411 = vld [vmem:[#allocation6 + $0x320] sm:$0xff]
    %v2412 = vld [vmem:[#allocation6 + $0x328] sm:$0xff]
    %v2413 = vld [vmem:[#allocation6 + $0x330] sm:$0xff]
    %v2414 = vld [vmem:[#allocation6 + $0x338] sm:$0xff]
    %v2415 = vld [vmem:[#allocation6 + $0x340] sm:$0xff]
    %v2416 = vld [vmem:[#allocation6 + $0x348] sm:$0xff]
    %v2417 = vld [vmem:[#allocation6 + $0x350] sm:$0xff]
    %v2418 = vld [vmem:[#allocation6 + $0x358] sm:$0xff]
    %v2419 = vld [vmem:[#allocation6 + $0x360] sm:$0xff]
    %v2420 = vld [vmem:[#allocation6 + $0x368] sm:$0xff]
    %v2421 = vld [vmem:[#allocation6 + $0x370] sm:$0xff]
    %v2422 = vld [vmem:[#allocation6 + $0x378] sm:$0xff]
    %v2423 = vld [vmem:[#allocation6 + $0x380] sm:$0xff]
    %v2424 = vld [vmem:[#allocation6 + $0x388] sm:$0xff]
    %v2425 = vld [vmem:[#allocation6 + $0x390] sm:$0xff]
    %v2426 = vld [vmem:[#allocation6 + $0x398] sm:$0xff]
    %v2427 = vld [vmem:[#allocation6 + $0x3a0] sm:$0xff]
    %v2428 = vld [vmem:[#allocation6 + $0x3a8] sm:$0xff]
    %v2429 = vld [vmem:[#allocation6 + $0x3b0] sm:$0xff]
    %v2430 = vld [vmem:[#allocation6 + $0x3b8] sm:$0xff]
    %v2431 = vld [vmem:[#allocation6 + $0x3c0] sm:$0xff]
    %v2432 = vld [vmem:[#allocation6 + $0x3c8] sm:$0xff]
    %v2433 = vld [vmem:[#allocation6 + $0x3d0] sm:$0xff]
    %v2434 = vld [vmem:[#allocation6 + $0x3d8] sm:$0xff]
    %v2435 = vld [vmem:[#allocation6 + $0x3e0] sm:$0xff]
    %v2436 = vld [vmem:[#allocation6 + $0x3e8] sm:$0xff]
    %v2437 = vld [vmem:[#allocation6 + $0x3f0] sm:$0xff]
    %v2438 = vld [vmem:[#allocation6 + $0x3f8] sm:$0xff]
    %v2439 = vld [vmem:[%s6] sm:$0xf]
    %v2441 = vperm.slane %v2439, 0
    %v2442 = vperm.slane %v2439, 1
    %v2443 = vperm.slane %v2439, 2
    %v2444 = vperm.slane %v2439, 3
    %v2577 = vunpack.c.l.b16 %v2311
    %v2578 = vunpack.c.h.b16 %v2311
    %v2579 = vunpack.c.l.b16 %v2312
    %v2580 = vunpack.c.h.b16 %v2312
    %v2581 = vunpack.c.l.b16 %v2313
    %v2582 = vunpack.c.h.b16 %v2313
    %v2583 = vunpack.c.l.b16 %v2314
    %v2584 = vunpack.c.h.b16 %v2314
    %v2585 = vunpack.c.l.b16 %v2315
    %v2586 = vunpack.c.h.b16 %v2315
    %v2587 = vunpack.c.l.b16 %v2316
    %v2588 = vunpack.c.h.b16 %v2316
    %v2589 = vunpack.c.l.b16 %v2317
    %v2590 = vunpack.c.h.b16 %v2317
    %v2591 = vunpack.c.l.b16 %v2318
    %v2592 = vunpack.c.h.b16 %v2318
    %v2593 = vunpack.c.l.b16 %v2319
    %v2594 = vunpack.c.h.b16 %v2319
    %v2595 = vunpack.c.l.b16 %v2320
    %v2596 = vunpack.c.h.b16 %v2320
    %v2597 = vunpack.c.l.b16 %v2321
    %v2598 = vunpack.c.h.b16 %v2321
    %v2599 = vunpack.c.l.b16 %v2322
    %v2600 = vunpack.c.h.b16 %v2322
    %v2601 = vunpack.c.l.b16 %v2323
    %v2602 = vunpack.c.h.b16 %v2323
    %v2603 = vunpack.c.l.b16 %v2324
    %v2604 = vunpack.c.h.b16 %v2324
    %v2605 = vunpack.c.l.b16 %v2325
    %v2606 = vunpack.c.h.b16 %v2325
    %v2607 = vunpack.c.l.b16 %v2326
    %v2608 = vunpack.c.h.b16 %v2326
    %v2609 = vunpack.c.l.b16 %v2327
    %v2610 = vunpack.c.h.b16 %v2327
    %v2611 = vunpack.c.l.b16 %v2328
    %v2612 = vunpack.c.h.b16 %v2328
    %v2613 = vunpack.c.l.b16 %v2329
    %v2614 = vunpack.c.h.b16 %v2329
    %v2615 = vunpack.c.l.b16 %v2330
    %v2616 = vunpack.c.h.b16 %v2330
    %v2617 = vunpack.c.l.b16 %v2331
    %v2618 = vunpack.c.h.b16 %v2331
    %v2619 = vunpack.c.l.b16 %v2332
    %v2620 = vunpack.c.h.b16 %v2332
    %v2621 = vunpack.c.l.b16 %v2333
    %v2622 = vunpack.c.h.b16 %v2333
    %v2623 = vunpack.c.l.b16 %v2334
    %v2624 = vunpack.c.h.b16 %v2334
    %v2625 = vunpack.c.l.b16 %v2335
    %v2626 = vunpack.c.h.b16 %v2335
    %v2627 = vunpack.c.l.b16 %v2336
    %v2628 = vunpack.c.h.b16 %v2336
    %v2629 = vunpack.c.l.b16 %v2337
    %v2630 = vunpack.c.h.b16 %v2337
    %v2631 = vunpack.c.l.b16 %v2338
    %v2632 = vunpack.c.h.b16 %v2338
    %v2633 = vunpack.c.l.b16 %v2339
    %v2634 = vunpack.c.h.b16 %v2339
    %v2635 = vunpack.c.l.b16 %v2340
    %v2636 = vunpack.c.h.b16 %v2340
    %v2637 = vunpack.c.l.b16 %v2341
    %v2638 = vunpack.c.h.b16 %v2341
    %v2639 = vunpack.c.l.b16 %v2342
    %v2640 = vunpack.c.h.b16 %v2342
    %v2641 = vunpack.c.l.b16 %v2343
    %v2642 = vunpack.c.h.b16 %v2343
    %v2643 = vunpack.c.l.b16 %v2344
    %v2644 = vunpack.c.h.b16 %v2344
    %v2645 = vunpack.c.l.b16 %v2345
    %v2646 = vunpack.c.h.b16 %v2345
    %v2647 = vunpack.c.l.b16 %v2346
    %v2648 = vunpack.c.h.b16 %v2346
    %v2649 = vunpack.c.l.b16 %v2347
    %v2650 = vunpack.c.h.b16 %v2347
    %v2651 = vunpack.c.l.b16 %v2348
    %v2652 = vunpack.c.h.b16 %v2348
    %v2653 = vunpack.c.l.b16 %v2349
    %v2654 = vunpack.c.h.b16 %v2349
    %v2655 = vunpack.c.l.b16 %v2350
    %v2656 = vunpack.c.h.b16 %v2350
    %v2657 = vunpack.c.l.b16 %v2351
    %v2658 = vunpack.c.h.b16 %v2351
    %v2659 = vunpack.c.l.b16 %v2352
    %v2660 = vunpack.c.h.b16 %v2352
    %v2661 = vunpack.c.l.b16 %v2353
    %v2662 = vunpack.c.h.b16 %v2353
    %v2663 = vunpack.c.l.b16 %v2354
    %v2664 = vunpack.c.h.b16 %v2354
    %v2665 = vunpack.c.l.b16 %v2355
    %v2666 = vunpack.c.h.b16 %v2355
    %v2667 = vunpack.c.l.b16 %v2356
    %v2668 = vunpack.c.h.b16 %v2356
    %v2669 = vunpack.c.l.b16 %v2357
    %v2670 = vunpack.c.h.b16 %v2357
    %v2671 = vunpack.c.l.b16 %v2358
    %v2672 = vunpack.c.h.b16 %v2358
    %v2673 = vunpack.c.l.b16 %v2359
    %v2674 = vunpack.c.h.b16 %v2359
    %v2675 = vunpack.c.l.b16 %v2360
    %v2676 = vunpack.c.h.b16 %v2360
    %v2677 = vunpack.c.l.b16 %v2361
    %v2678 = vunpack.c.h.b16 %v2361
    %v2679 = vunpack.c.l.b16 %v2362
    %v2680 = vunpack.c.h.b16 %v2362
    %v2681 = vunpack.c.l.b16 %v2363
    %v2682 = vunpack.c.h.b16 %v2363
    %v2683 = vunpack.c.l.b16 %v2364
    %v2684 = vunpack.c.h.b16 %v2364
    %v2685 = vunpack.c.l.b16 %v2365
    %v2686 = vunpack.c.h.b16 %v2365
    %v2687 = vunpack.c.l.b16 %v2366
    %v2688 = vunpack.c.h.b16 %v2366
    %v2689 = vunpack.c.l.b16 %v2367
    %v2690 = vunpack.c.h.b16 %v2367
    %v2691 = vunpack.c.l.b16 %v2368
    %v2692 = vunpack.c.h.b16 %v2368
    %v2693 = vunpack.c.l.b16 %v2369
    %v2694 = vunpack.c.h.b16 %v2369
    %v2695 = vunpack.c.l.b16 %v2370
    %v2696 = vunpack.c.h.b16 %v2370
    %v2697 = vunpack.c.l.b16 %v2371
    %v2698 = vunpack.c.h.b16 %v2371
    %v2699 = vunpack.c.l.b16 %v2372
    %v2700 = vunpack.c.h.b16 %v2372
    %v2701 = vunpack.c.l.b16 %v2373
    %v2702 = vunpack.c.h.b16 %v2373
    %v2703 = vunpack.c.l.b16 %v2374
    %v2704 = vunpack.c.h.b16 %v2374
    %v2705 = vunpack.c.l.b16 %v2375
    %v2706 = vunpack.c.h.b16 %v2375
    %v2707 = vunpack.c.l.b16 %v2376
    %v2708 = vunpack.c.h.b16 %v2376
    %v2709 = vunpack.c.l.b16 %v2377
    %v2710 = vunpack.c.h.b16 %v2377
    %v2711 = vunpack.c.l.b16 %v2378
    %v2712 = vunpack.c.h.b16 %v2378
    %v2713 = vunpack.c.l.b16 %v2379
    %v2714 = vunpack.c.h.b16 %v2379
    %v2715 = vunpack.c.l.b16 %v2380
    %v2716 = vunpack.c.h.b16 %v2380
    %v2717 = vunpack.c.l.b16 %v2381
    %v2718 = vunpack.c.h.b16 %v2381
    %v2719 = vunpack.c.l.b16 %v2382
    %v2720 = vunpack.c.h.b16 %v2382
    %v2721 = vunpack.c.l.b16 %v2383
    %v2722 = vunpack.c.h.b16 %v2383
    %v2723 = vunpack.c.l.b16 %v2384
    %v2724 = vunpack.c.h.b16 %v2384
    %v2725 = vunpack.c.l.b16 %v2385
    %v2726 = vunpack.c.h.b16 %v2385
    %v2727 = vunpack.c.l.b16 %v2386
    %v2728 = vunpack.c.h.b16 %v2386
    %v2729 = vunpack.c.l.b16 %v2387
    %v2730 = vunpack.c.h.b16 %v2387
    %v2731 = vunpack.c.l.b16 %v2388
    %v2732 = vunpack.c.h.b16 %v2388
    %v2733 = vunpack.c.l.b16 %v2389
    %v2734 = vunpack.c.h.b16 %v2389
    %v2735 = vunpack.c.l.b16 %v2390
    %v2736 = vunpack.c.h.b16 %v2390
    %v2737 = vunpack.c.l.b16 %v2391
    %v2738 = vunpack.c.h.b16 %v2391
    %v2739 = vunpack.c.l.b16 %v2392
    %v2740 = vunpack.c.h.b16 %v2392
    %v2741 = vunpack.c.l.b16 %v2393
    %v2742 = vunpack.c.h.b16 %v2393
    %v2743 = vunpack.c.l.b16 %v2394
    %v2744 = vunpack.c.h.b16 %v2394
    %v2745 = vunpack.c.l.b16 %v2395
    %v2746 = vunpack.c.h.b16 %v2395
    %v2747 = vunpack.c.l.b16 %v2396
    %v2748 = vunpack.c.h.b16 %v2396
    %v2749 = vunpack.c.l.b16 %v2397
    %v2750 = vunpack.c.h.b16 %v2397
    %v2751 = vunpack.c.l.b16 %v2398
    %v2752 = vunpack.c.h.b16 %v2398
    %v2753 = vunpack.c.l.b16 %v2399
    %v2754 = vunpack.c.h.b16 %v2399
    %v2755 = vunpack.c.l.b16 %v2400
    %v2756 = vunpack.c.h.b16 %v2400
    %v2757 = vunpack.c.l.b16 %v2401
    %v2758 = vunpack.c.h.b16 %v2401
    %v2759 = vunpack.c.l.b16 %v2402
    %v2760 = vunpack.c.h.b16 %v2402
    %v2761 = vunpack.c.l.b16 %v2403
    %v2762 = vunpack.c.h.b16 %v2403
    %v2763 = vunpack.c.l.b16 %v2404
    %v2764 = vunpack.c.h.b16 %v2404
    %v2765 = vunpack.c.l.b16 %v2405
    %v2766 = vunpack.c.h.b16 %v2405
    %v2767 = vunpack.c.l.b16 %v2406
    %v2768 = vunpack.c.h.b16 %v2406
    %v2769 = vunpack.c.l.b16 %v2407
    %v2770 = vunpack.c.h.b16 %v2407
    %v2771 = vunpack.c.l.b16 %v2408
    %v2772 = vunpack.c.h.b16 %v2408
    %v2773 = vunpack.c.l.b16 %v2409
    %v2774 = vunpack.c.h.b16 %v2409
    %v2775 = vunpack.c.l.b16 %v2410
    %v2776 = vunpack.c.h.b16 %v2410
    %v2777 = vunpack.c.l.b16 %v2411
    %v2778 = vunpack.c.h.b16 %v2411
    %v2779 = vunpack.c.l.b16 %v2412
    %v2780 = vunpack.c.h.b16 %v2412
    %v2781 = vunpack.c.l.b16 %v2413
    %v2782 = vunpack.c.h.b16 %v2413
    %v2783 = vunpack.c.l.b16 %v2414
    %v2784 = vunpack.c.h.b16 %v2414
    %v2785 = vunpack.c.l.b16 %v2415
    %v2786 = vunpack.c.h.b16 %v2415
    %v2787 = vunpack.c.l.b16 %v2416
    %v2788 = vunpack.c.h.b16 %v2416
    %v2789 = vunpack.c.l.b16 %v2417
    %v2790 = vunpack.c.h.b16 %v2417
    %v2791 = vunpack.c.l.b16 %v2418
    %v2792 = vunpack.c.h.b16 %v2418
    %v2793 = vunpack.c.l.b16 %v2419
    %v2794 = vunpack.c.h.b16 %v2419
    %v2795 = vunpack.c.l.b16 %v2420
    %v2796 = vunpack.c.h.b16 %v2420
    %v2797 = vunpack.c.l.b16 %v2421
    %v2798 = vunpack.c.h.b16 %v2421
    %v2799 = vunpack.c.l.b16 %v2422
    %v2800 = vunpack.c.h.b16 %v2422
    %v2801 = vunpack.c.l.b16 %v2423
    %v2802 = vunpack.c.h.b16 %v2423
    %v2803 = vunpack.c.l.b16 %v2424
    %v2804 = vunpack.c.h.b16 %v2424
    %v2805 = vunpack.c.l.b16 %v2425
    %v2806 = vunpack.c.h.b16 %v2425
    %v2807 = vunpack.c.l.b16 %v2426
    %v2808 = vunpack.c.h.b16 %v2426
    %v2809 = vunpack.c.l.b16 %v2427
    %v2810 = vunpack.c.h.b16 %v2427
    %v2811 = vunpack.c.l.b16 %v2428
    %v2812 = vunpack.c.h.b16 %v2428
    %v2813 = vunpack.c.l.b16 %v2429
    %v2814 = vunpack.c.h.b16 %v2429
    %v2815 = vunpack.c.l.b16 %v2430
    %v2816 = vunpack.c.h.b16 %v2430
    %v2817 = vunpack.c.l.b16 %v2431
    %v2818 = vunpack.c.h.b16 %v2431
    %v2819 = vunpack.c.l.b16 %v2432
    %v2820 = vunpack.c.h.b16 %v2432
    %v2821 = vunpack.c.l.b16 %v2433
    %v2822 = vunpack.c.h.b16 %v2433
    %v2823 = vunpack.c.l.b16 %v2434
    %v2824 = vunpack.c.h.b16 %v2434
    %v2825 = vunpack.c.l.b16 %v2435
    %v2826 = vunpack.c.h.b16 %v2435
    %v2827 = vunpack.c.l.b16 %v2436
    %v2828 = vunpack.c.h.b16 %v2436
    %v2829 = vunpack.c.l.b16 %v2437
    %v2830 = vunpack.c.h.b16 %v2437
    %v2831 = vunpack.c.l.b16 %v2438
    %v2832 = vunpack.c.h.b16 %v2438
    %v2833 = vpack.c.b16 %v2581, %v2577
    %v2834 = vpack.c.b16 %v2582, %v2578
    %v2835 = vpack.c.b16 %v2583, %v2579
    %v2836 = vpack.c.b16 %v2584, %v2580
    %v2837 = vpack.c.b16 %v2589, %v2585
    %v2838 = vpack.c.b16 %v2590, %v2586
    %v2839 = vpack.c.b16 %v2591, %v2587
    %v2840 = vpack.c.b16 %v2592, %v2588
    %v2841 = vpack.c.b16 %v2597, %v2593
    %v2842 = vpack.c.b16 %v2598, %v2594
    %v2843 = vpack.c.b16 %v2599, %v2595
    %v2844 = vpack.c.b16 %v2600, %v2596
    %v2845 = vpack.c.b16 %v2605, %v2601
    %v2846 = vpack.c.b16 %v2606, %v2602
    %v2847 = vpack.c.b16 %v2607, %v2603
    %v2848 = vpack.c.b16 %v2608, %v2604
    %v2849 = vpack.c.b16 %v2613, %v2609
    %v2850 = vpack.c.b16 %v2614, %v2610
    %v2851 = vpack.c.b16 %v2615, %v2611
    %v2852 = vpack.c.b16 %v2616, %v2612
    %v2853 = vpack.c.b16 %v2621, %v2617
    %v2854 = vpack.c.b16 %v2622, %v2618
    %v2855 = vpack.c.b16 %v2623, %v2619
    %v2856 = vpack.c.b16 %v2624, %v2620
    %v2857 = vpack.c.b16 %v2629, %v2625
    %v2858 = vpack.c.b16 %v2630, %v2626
    %v2859 = vpack.c.b16 %v2631, %v2627
    %v2860 = vpack.c.b16 %v2632, %v2628
    %v2861 = vpack.c.b16 %v2637, %v2633
    %v2862 = vpack.c.b16 %v2638, %v2634
    %v2863 = vpack.c.b16 %v2639, %v2635
    %v2864 = vpack.c.b16 %v2640, %v2636
    %v2865 = vpack.c.b16 %v2645, %v2641
    %v2866 = vpack.c.b16 %v2646, %v2642
    %v2867 = vpack.c.b16 %v2647, %v2643
    %v2868 = vpack.c.b16 %v2648, %v2644
    %v2869 = vpack.c.b16 %v2653, %v2649
    %v2870 = vpack.c.b16 %v2654, %v2650
    %v2871 = vpack.c.b16 %v2655, %v2651
    %v2872 = vpack.c.b16 %v2656, %v2652
    %v2873 = vpack.c.b16 %v2661, %v2657
    %v2874 = vpack.c.b16 %v2662, %v2658
    %v2875 = vpack.c.b16 %v2663, %v2659
    %v2876 = vpack.c.b16 %v2664, %v2660
    %v2877 = vpack.c.b16 %v2669, %v2665
    %v2878 = vpack.c.b16 %v2670, %v2666
    %v2879 = vpack.c.b16 %v2671, %v2667
    %v2880 = vpack.c.b16 %v2672, %v2668
    %v2881 = vpack.c.b16 %v2677, %v2673
    %v2882 = vpack.c.b16 %v2678, %v2674
    %v2883 = vpack.c.b16 %v2679, %v2675
    %v2884 = vpack.c.b16 %v2680, %v2676
    %v2885 = vpack.c.b16 %v2685, %v2681
    %v2886 = vpack.c.b16 %v2686, %v2682
    %v2887 = vpack.c.b16 %v2687, %v2683
    %v2888 = vpack.c.b16 %v2688, %v2684
    %v2889 = vpack.c.b16 %v2693, %v2689
    %v2890 = vpack.c.b16 %v2694, %v2690
    %v2891 = vpack.c.b16 %v2695, %v2691
    %v2892 = vpack.c.b16 %v2696, %v2692
    %v2893 = vpack.c.b16 %v2701, %v2697
    %v2894 = vpack.c.b16 %v2702, %v2698
    %v2895 = vpack.c.b16 %v2703, %v2699
    %v2896 = vpack.c.b16 %v2704, %v2700
    %v2897 = vpack.c.b16 %v2709, %v2705
    %v2898 = vpack.c.b16 %v2710, %v2706
    %v2899 = vpack.c.b16 %v2711, %v2707
    %v2900 = vpack.c.b16 %v2712, %v2708
    %v2901 = vpack.c.b16 %v2717, %v2713
    %v2902 = vpack.c.b16 %v2718, %v2714
    %v2903 = vpack.c.b16 %v2719, %v2715
    %v2904 = vpack.c.b16 %v2720, %v2716
    %v2905 = vpack.c.b16 %v2725, %v2721
    %v2906 = vpack.c.b16 %v2726, %v2722
    %v2907 = vpack.c.b16 %v2727, %v2723
    %v2908 = vpack.c.b16 %v2728, %v2724
    %v2909 = vpack.c.b16 %v2733, %v2729
    %v2910 = vpack.c.b16 %v2734, %v2730
    %v2911 = vpack.c.b16 %v2735, %v2731
    %v2912 = vpack.c.b16 %v2736, %v2732
    %v2913 = vpack.c.b16 %v2741, %v2737
    %v2914 = vpack.c.b16 %v2742, %v2738
    %v2915 = vpack.c.b16 %v2743, %v2739
    %v2916 = vpack.c.b16 %v2744, %v2740
    %v2917 = vpack.c.b16 %v2749, %v2745
    %v2918 = vpack.c.b16 %v2750, %v2746
    %v2919 = vpack.c.b16 %v2751, %v2747
    %v2920 = vpack.c.b16 %v2752, %v2748
    %v2921 = vpack.c.b16 %v2757, %v2753
    %v2922 = vpack.c.b16 %v2758, %v2754
    %v2923 = vpack.c.b16 %v2759, %v2755
    %v2924 = vpack.c.b16 %v2760, %v2756
    %v2925 = vpack.c.b16 %v2765, %v2761
    %v2926 = vpack.c.b16 %v2766, %v2762
    %v2927 = vpack.c.b16 %v2767, %v2763
    %v2928 = vpack.c.b16 %v2768, %v2764
    %v2929 = vpack.c.b16 %v2773, %v2769
    %v2930 = vpack.c.b16 %v2774, %v2770
    %v2931 = vpack.c.b16 %v2775, %v2771
    %v2932 = vpack.c.b16 %v2776, %v2772
    %v2933 = vpack.c.b16 %v2781, %v2777
    %v2934 = vpack.c.b16 %v2782, %v2778
    %v2935 = vpack.c.b16 %v2783, %v2779
    %v2936 = vpack.c.b16 %v2784, %v2780
    %v2937 = vpack.c.b16 %v2789, %v2785
    %v2938 = vpack.c.b16 %v2790, %v2786
    %v2939 = vpack.c.b16 %v2791, %v2787
    %v2940 = vpack.c.b16 %v2792, %v2788
    %v2941 = vpack.c.b16 %v2797, %v2793
    %v2942 = vpack.c.b16 %v2798, %v2794
    %v2943 = vpack.c.b16 %v2799, %v2795
    %v2944 = vpack.c.b16 %v2800, %v2796
    %v2945 = vpack.c.b16 %v2805, %v2801
    %v2946 = vpack.c.b16 %v2806, %v2802
    %v2947 = vpack.c.b16 %v2807, %v2803
    %v2948 = vpack.c.b16 %v2808, %v2804
    %v2949 = vpack.c.b16 %v2813, %v2809
    %v2950 = vpack.c.b16 %v2814, %v2810
    %v2951 = vpack.c.b16 %v2815, %v2811
    %v2952 = vpack.c.b16 %v2816, %v2812
    %v2953 = vpack.c.b16 %v2821, %v2817
    %v2954 = vpack.c.b16 %v2822, %v2818
    %v2955 = vpack.c.b16 %v2823, %v2819
    %v2956 = vpack.c.b16 %v2824, %v2820
    %v2957 = vpack.c.b16 %v2829, %v2825
    %v2958 = vpack.c.b16 %v2830, %v2826
    %v2959 = vpack.c.b16 %v2831, %v2827
    %v2960 = vpack.c.b16 %v2832, %v2828
    %3089 = vmatpush.bf16.msra.mxu0 %v2861
    %3090 = vmatpush.bf16.msra.mxu0 %v2857
    %3091 = vmatpush.bf16.msra.mxu0 %v2853
    %3092 = vmatpush.bf16.msra.mxu0 %v2849
    %3093 = vmatpush.bf16.msra.mxu0 %v2845
    %3094 = vmatpush.bf16.msra.mxu0 %v2841
    %3095 = vmatpush.bf16.msra.mxu0 %v2837
    %3096 = vmatpush.bf16.msra.mxu0 %v2833
    %3097 = vmatmul.bf16.gmra.mxu0 %v2279
    %v3098 = vpop.f32.mrf.mxu0
    %v3099 = vadd.f32 %v2441, %v3098
    %v3100 = vpop.f32.mrf.mxu0
    %v3101 = vadd.f32 %v2441, %v3100
    %3102 = vmatmul.bf16.gmra.mxu0 %v2283
    %v3103 = vpop.f32.mrf.mxu0
    %v3104 = vadd.f32 %v2441, %v3103
    %v3105 = vpop.f32.mrf.mxu0
    %v3106 = vadd.f32 %v2441, %v3105
    %3107 = vmatmul.bf16.gmra.mxu0 %v2287
    %v3108 = vpop.f32.mrf.mxu0
    %v3109 = vadd.f32 %v2441, %v3108
    %v3110 = vpop.f32.mrf.mxu0
    %v3111 = vadd.f32 %v2441, %v3110
    %3112 = vmatmul.bf16.gmra.mxu0 %v2291
    %v3113 = vpop.f32.mrf.mxu0
    %v3114 = vadd.f32 %v2441, %v3113
    %v3115 = vpop.f32.mrf.mxu0
    %v3116 = vadd.f32 %v2441, %v3115
    %3117 = vmatmul.bf16.gmra.mxu0 %v2295
    %v3118 = vpop.f32.mrf.mxu0
    %v3119 = vadd.f32 %v2441, %v3118
    %v3120 = vpop.f32.mrf.mxu0
    %v3121 = vadd.f32 %v2441, %v3120
    %3122 = vmatmul.bf16.gmra.mxu0 %v2299
    %v3123 = vpop.f32.mrf.mxu0
    %v3124 = vadd.f32 %v2441, %v3123
    %v3125 = vpop.f32.mrf.mxu0
    %v3126 = vadd.f32 %v2441, %v3125
    %3127 = vmatmul.bf16.gmra.mxu0 %v2303
    %v3128 = vpop.f32.mrf.mxu0
    %v3129 = vadd.f32 %v2441, %v3128
    %v3130 = vpop.f32.mrf.mxu0
    %v3131 = vadd.f32 %v2441, %v3130
    %3132 = vmatmul.bf16.gmra.mxu0 %v2307
    %v3133 = vpop.f32.mrf.mxu0
    %v3134 = vadd.f32 %v2441, %v3133
    %v3135 = vpop.f32.mrf.mxu0
    %v3136 = vadd.f32 %v2441, %v3135
    %3137 = vdwg.mxu0
    %3138 = vmatpush.bf16.msra.mxu0 %v2893
    %3139 = vmatpush.bf16.msra.mxu0 %v2889
    %3140 = vmatpush.bf16.msra.mxu0 %v2885
    %3141 = vmatpush.bf16.msra.mxu0 %v2881
    %3142 = vmatpush.bf16.msra.mxu0 %v2877
    %3143 = vmatpush.bf16.msra.mxu0 %v2873
    %3144 = vmatpush.bf16.msra.mxu0 %v2869
    %3145 = vmatpush.bf16.msra.mxu0 %v2865
    %3146 = vmatmul.bf16.gmra.mxu0 %v2280
    %v3147 = vpop.f32.mrf.mxu0
    %v3148 = vadd.f32 %v3099, %v3147
    %v3149 = vpop.f32.mrf.mxu0
    %v3150 = vadd.f32 %v3101, %v3149
    %3151 = vmatmul.bf16.gmra.mxu0 %v2284
    %v3152 = vpop.f32.mrf.mxu0
    %v3153 = vadd.f32 %v3104, %v3152
    %v3154 = vpop.f32.mrf.mxu0
    %v3155 = vadd.f32 %v3106, %v3154
    %3156 = vmatmul.bf16.gmra.mxu0 %v2288
    %v3157 = vpop.f32.mrf.mxu0
    %v3158 = vadd.f32 %v3109, %v3157
    %v3159 = vpop.f32.mrf.mxu0
    %v3160 = vadd.f32 %v3111, %v3159
    %3161 = vmatmul.bf16.gmra.mxu0 %v2292
    %v3162 = vpop.f32.mrf.mxu0
    %v3163 = vadd.f32 %v3114, %v3162
    %v3164 = vpop.f32.mrf.mxu0
    %v3165 = vadd.f32 %v3116, %v3164
    %3166 = vmatmul.bf16.gmra.mxu0 %v2296
    %v3167 = vpop.f32.mrf.mxu0
    %v3168 = vadd.f32 %v3119, %v3167
    %v3169 = vpop.f32.mrf.mxu0
    %v3170 = vadd.f32 %v3121, %v3169
    %3171 = vmatmul.bf16.gmra.mxu0 %v2300
    %v3172 = vpop.f32.mrf.mxu0
    %v3173 = vadd.f32 %v3124, %v3172
    %v3174 = vpop.f32.mrf.mxu0
    %v3175 = vadd.f32 %v3126, %v3174
    %3176 = vmatmul.bf16.gmra.mxu0 %v2304
    %v3177 = vpop.f32.mrf.mxu0
    %v3178 = vadd.f32 %v3129, %v3177
    %v3179 = vpop.f32.mrf.mxu0
    %v3180 = vadd.f32 %v3131, %v3179
    %3181 = vmatmul.bf16.gmra.mxu0 %v2308
    %v3182 = vpop.f32.mrf.mxu0
    %v3183 = vadd.f32 %v3134, %v3182
    %v3184 = vpop.f32.mrf.mxu0
    %v3185 = vadd.f32 %v3136, %v3184
    %3186 = vdwg.mxu0
    %3187 = vmatpush.bf16.msra.mxu0 %v2925
    %3188 = vmatpush.bf16.msra.mxu0 %v2921
    %3189 = vmatpush.bf16.msra.mxu0 %v2917
    %3190 = vmatpush.bf16.msra.mxu0 %v2913
    %3191 = vmatpush.bf16.msra.mxu0 %v2909
    %3192 = vmatpush.bf16.msra.mxu0 %v2905
    %3193 = vmatpush.bf16.msra.mxu0 %v2901
    %3194 = vmatpush.bf16.msra.mxu0 %v2897
    %3195 = vmatmul.bf16.gmra.mxu0 %v2281
    %v3196 = vpop.f32.mrf.mxu0
    %v3197 = vadd.f32 %v3148, %v3196
    %v3198 = vpop.f32.mrf.mxu0
    %v3199 = vadd.f32 %v3150, %v3198
    %3200 = vmatmul.bf16.gmra.mxu0 %v2285
    %v3201 = vpop.f32.mrf.mxu0
    %v3202 = vadd.f32 %v3153, %v3201
    %v3203 = vpop.f32.mrf.mxu0
    %v3204 = vadd.f32 %v3155, %v3203
    %3205 = vmatmul.bf16.gmra.mxu0 %v2289
    %v3206 = vpop.f32.mrf.mxu0
    %v3207 = vadd.f32 %v3158, %v3206
    %v3208 = vpop.f32.mrf.mxu0
    %v3209 = vadd.f32 %v3160, %v3208
    %3210 = vmatmul.bf16.gmra.mxu0 %v2293
    %v3211 = vpop.f32.mrf.mxu0
    %v3212 = vadd.f32 %v3163, %v3211
    %v3213 = vpop.f32.mrf.mxu0
    %v3214 = vadd.f32 %v3165, %v3213
    %3215 = vmatmul.bf16.gmra.mxu0 %v2297
    %v3216 = vpop.f32.mrf.mxu0
    %v3217 = vadd.f32 %v3168, %v3216
    %v3218 = vpop.f32.mrf.mxu0
    %v3219 = vadd.f32 %v3170, %v3218
    %3220 = vmatmul.bf16.gmra.mxu0 %v2301
    %v3221 = vpop.f32.mrf.mxu0
    %v3222 = vadd.f32 %v3173, %v3221
    %v3223 = vpop.f32.mrf.mxu0
    %v3224 = vadd.f32 %v3175, %v3223
    %3225 = vmatmul.bf16.gmra.mxu0 %v2305
    %v3226 = vpop.f32.mrf.mxu0
    %v3227 = vadd.f32 %v3178, %v3226
    %v3228 = vpop.f32.mrf.mxu0
    %v3229 = vadd.f32 %v3180, %v3228
    %3230 = vmatmul.bf16.gmra.mxu0 %v2309
    %v3231 = vpop.f32.mrf.mxu0
    %v3232 = vadd.f32 %v3183, %v3231
    %v3233 = vpop.f32.mrf.mxu0
    %v3234 = vadd.f32 %v3185, %v3233
    %3235 = vdwg.mxu0
    %3236 = vmatpush.bf16.msra.mxu0 %v2957
    %3237 = vmatpush.bf16.msra.mxu0 %v2953
    %3238 = vmatpush.bf16.msra.mxu0 %v2949
    %3239 = vmatpush.bf16.msra.mxu0 %v2945
    %3240 = vmatpush.bf16.msra.mxu0 %v2941
    %3241 = vmatpush.bf16.msra.mxu0 %v2937
    %3242 = vmatpush.bf16.msra.mxu0 %v2933
    %3243 = vmatpush.bf16.msra.mxu0 %v2929
    %3244 = vmatmul.bf16.gmra.mxu0 %v2282
    %v3245 = vpop.f32.mrf.mxu0
    %v3246 = vadd.f32 %v3197, %v3245
    %v3247 = vpop.f32.mrf.mxu0
    %v3248 = vadd.f32 %v3199, %v3247
    %3249 = vmatmul.bf16.gmra.mxu0 %v2286
    %v3250 = vpop.f32.mrf.mxu0
    %v3251 = vadd.f32 %v3202, %v3250
    %v3252 = vpop.f32.mrf.mxu0
    %v3253 = vadd.f32 %v3204, %v3252
    %3254 = vmatmul.bf16.gmra.mxu0 %v2290
    %v3255 = vpop.f32.mrf.mxu0
    %v3256 = vadd.f32 %v3207, %v3255
    %v3257 = vpop.f32.mrf.mxu0
    %v3258 = vadd.f32 %v3209, %v3257
    %3259 = vmatmul.bf16.gmra.mxu0 %v2294
    %v3260 = vpop.f32.mrf.mxu0
    %v3261 = vadd.f32 %v3212, %v3260
    %v3262 = vpop.f32.mrf.mxu0
    %v3263 = vadd.f32 %v3214, %v3262
    %3264 = vmatmul.bf16.gmra.mxu0 %v2298
    %v3265 = vpop.f32.mrf.mxu0
    %v3266 = vadd.f32 %v3217, %v3265
    %v3267 = vpop.f32.mrf.mxu0
    %v3268 = vadd.f32 %v3219, %v3267
    %3269 = vmatmul.bf16.gmra.mxu0 %v2302
    %v3270 = vpop.f32.mrf.mxu0
    %v3271 = vadd.f32 %v3222, %v3270
    %v3272 = vpop.f32.mrf.mxu0
    %v3273 = vadd.f32 %v3224, %v3272
    %3274 = vmatmul.bf16.gmra.mxu0 %v2306
    %v3275 = vpop.f32.mrf.mxu0
    %v3276 = vadd.f32 %v3227, %v3275
    %v3277 = vpop.f32.mrf.mxu0
    %v3278 = vadd.f32 %v3229, %v3277
    %3279 = vmatmul.bf16.gmra.mxu0 %v2310
    %v3280 = vpop.f32.mrf.mxu0
    %v3281 = vadd.f32 %v3232, %v3280
    %v3282 = vpop.f32.mrf.mxu0
    %v3283 = vadd.f32 %v3234, %v3282
    %3284 = vdwg.mxu0
    %3285 = vmatpush.bf16.msra.mxu0 %v2862
    %3286 = vmatpush.bf16.msra.mxu0 %v2858
    %3287 = vmatpush.bf16.msra.mxu0 %v2854
    %3288 = vmatpush.bf16.msra.mxu0 %v2850
    %3289 = vmatpush.bf16.msra.mxu0 %v2846
    %3290 = vmatpush.bf16.msra.mxu0 %v2842
    %3291 = vmatpush.bf16.msra.mxu0 %v2838
    %3292 = vmatpush.bf16.msra.mxu0 %v2834
    %3293 = vmatmul.bf16.gmra.mxu0 %v2279
    %v3294 = vpop.f32.mrf.mxu0
    %v3295 = vadd.f32 %v2442, %v3294
    %v3296 = vpop.f32.mrf.mxu0
    %v3297 = vadd.f32 %v2442, %v3296
    %3298 = vmatmul.bf16.gmra.mxu0 %v2283
    %v3299 = vpop.f32.mrf.mxu0
    %v3300 = vadd.f32 %v2442, %v3299
    %v3301 = vpop.f32.mrf.mxu0
    %v3302 = vadd.f32 %v2442, %v3301
    %3303 = vmatmul.bf16.gmra.mxu0 %v2287
    %v3304 = vpop.f32.mrf.mxu0
    %v3305 = vadd.f32 %v2442, %v3304
    %v3306 = vpop.f32.mrf.mxu0
    %v3307 = vadd.f32 %v2442, %v3306
    %3308 = vmatmul.bf16.gmra.mxu0 %v2291
    %v3309 = vpop.f32.mrf.mxu0
    %v3310 = vadd.f32 %v2442, %v3309
    %v3311 = vpop.f32.mrf.mxu0
    %v3312 = vadd.f32 %v2442, %v3311
    %3313 = vmatmul.bf16.gmra.mxu0 %v2295
    %v3314 = vpop.f32.mrf.mxu0
    %v3315 = vadd.f32 %v2442, %v3314
    %v3316 = vpop.f32.mrf.mxu0
    %v3317 = vadd.f32 %v2442, %v3316
    %3318 = vmatmul.bf16.gmra.mxu0 %v2299
    %v3319 = vpop.f32.mrf.mxu0
    %v3320 = vadd.f32 %v2442, %v3319
    %v3321 = vpop.f32.mrf.mxu0
    %v3322 = vadd.f32 %v2442, %v3321
    %3323 = vmatmul.bf16.gmra.mxu0 %v2303
    %v3324 = vpop.f32.mrf.mxu0
    %v3325 = vadd.f32 %v2442, %v3324
    %v3326 = vpop.f32.mrf.mxu0
    %v3327 = vadd.f32 %v2442, %v3326
    %3328 = vmatmul.bf16.gmra.mxu0 %v2307
    %v3329 = vpop.f32.mrf.mxu0
    %v3330 = vadd.f32 %v2442, %v3329
    %v3331 = vpop.f32.mrf.mxu0
    %v3332 = vadd.f32 %v2442, %v3331
    %3333 = vdwg.mxu0
    %3334 = vmatpush.bf16.msra.mxu0 %v2894
    %3335 = vmatpush.bf16.msra.mxu0 %v2890
    %3336 = vmatpush.bf16.msra.mxu0 %v2886
    %3337 = vmatpush.bf16.msra.mxu0 %v2882
    %3338 = vmatpush.bf16.msra.mxu0 %v2878
    %3339 = vmatpush.bf16.msra.mxu0 %v2874
    %3340 = vmatpush.bf16.msra.mxu0 %v2870
    %3341 = vmatpush.bf16.msra.mxu0 %v2866
    %3342 = vmatmul.bf16.gmra.mxu0 %v2280
    %v3343 = vpop.f32.mrf.mxu0
    %v3344 = vadd.f32 %v3295, %v3343
    %v3345 = vpop.f32.mrf.mxu0
    %v3346 = vadd.f32 %v3297, %v3345
    %3347 = vmatmul.bf16.gmra.mxu0 %v2284
    %v3348 = vpop.f32.mrf.mxu0
    %v3349 = vadd.f32 %v3300, %v3348
    %v3350 = vpop.f32.mrf.mxu0
    %v3351 = vadd.f32 %v3302, %v3350
    %3352 = vmatmul.bf16.gmra.mxu0 %v2288
    %v3353 = vpop.f32.mrf.mxu0
    %v3354 = vadd.f32 %v3305, %v3353
    %v3355 = vpop.f32.mrf.mxu0
    %v3356 = vadd.f32 %v3307, %v3355
    %3357 = vmatmul.bf16.gmra.mxu0 %v2292
    %v3358 = vpop.f32.mrf.mxu0
    %v3359 = vadd.f32 %v3310, %v3358
    %v3360 = vpop.f32.mrf.mxu0
    %v3361 = vadd.f32 %v3312, %v3360
    %3362 = vmatmul.bf16.gmra.mxu0 %v2296
    %v3363 = vpop.f32.mrf.mxu0
    %v3364 = vadd.f32 %v3315, %v3363
    %v3365 = vpop.f32.mrf.mxu0
    %v3366 = vadd.f32 %v3317, %v3365
    %3367 = vmatmul.bf16.gmra.mxu0 %v2300
    %v3368 = vpop.f32.mrf.mxu0
    %v3369 = vadd.f32 %v3320, %v3368
    %v3370 = vpop.f32.mrf.mxu0
    %v3371 = vadd.f32 %v3322, %v3370
    %3372 = vmatmul.bf16.gmra.mxu0 %v2304
    %v3373 = vpop.f32.mrf.mxu0
    %v3374 = vadd.f32 %v3325, %v3373
    %v3375 = vpop.f32.mrf.mxu0
    %v3376 = vadd.f32 %v3327, %v3375
    %3377 = vmatmul.bf16.gmra.mxu0 %v2308
    %v3378 = vpop.f32.mrf.mxu0
    %v3379 = vadd.f32 %v3330, %v3378
    %v3380 = vpop.f32.mrf.mxu0
    %v3381 = vadd.f32 %v3332, %v3380
    %3382 = vdwg.mxu0
    %3383 = vmatpush.bf16.msra.mxu0 %v2926
    %3384 = vmatpush.bf16.msra.mxu0 %v2922
    %3385 = vmatpush.bf16.msra.mxu0 %v2918
    %3386 = vmatpush.bf16.msra.mxu0 %v2914
    %3387 = vmatpush.bf16.msra.mxu0 %v2910
    %3388 = vmatpush.bf16.msra.mxu0 %v2906
    %3389 = vmatpush.bf16.msra.mxu0 %v2902
    %3390 = vmatpush.bf16.msra.mxu0 %v2898
    %3391 = vmatmul.bf16.gmra.mxu0 %v2281
    %v3392 = vpop.f32.mrf.mxu0
    %v3393 = vadd.f32 %v3344, %v3392
    %v3394 = vpop.f32.mrf.mxu0
    %v3395 = vadd.f32 %v3346, %v3394
    %3396 = vmatmul.bf16.gmra.mxu0 %v2285
    %v3397 = vpop.f32.mrf.mxu0
    %v3398 = vadd.f32 %v3349, %v3397
    %v3399 = vpop.f32.mrf.mxu0
    %v3400 = vadd.f32 %v3351, %v3399
    %3401 = vmatmul.bf16.gmra.mxu0 %v2289
    %v3402 = vpop.f32.mrf.mxu0
    %v3403 = vadd.f32 %v3354, %v3402
    %v3404 = vpop.f32.mrf.mxu0
    %v3405 = vadd.f32 %v3356, %v3404
    %3406 = vmatmul.bf16.gmra.mxu0 %v2293
    %v3407 = vpop.f32.mrf.mxu0
    %v3408 = vadd.f32 %v3359, %v3407
    %v3409 = vpop.f32.mrf.mxu0
    %v3410 = vadd.f32 %v3361, %v3409
    %3411 = vmatmul.bf16.gmra.mxu0 %v2297
    %v3412 = vpop.f32.mrf.mxu0
    %v3413 = vadd.f32 %v3364, %v3412
    %v3414 = vpop.f32.mrf.mxu0
    %v3415 = vadd.f32 %v3366, %v3414
    %3416 = vmatmul.bf16.gmra.mxu0 %v2301
    %v3417 = vpop.f32.mrf.mxu0
    %v3418 = vadd.f32 %v3369, %v3417
    %v3419 = vpop.f32.mrf.mxu0
    %v3420 = vadd.f32 %v3371, %v3419
    %3421 = vmatmul.bf16.gmra.mxu0 %v2305
    %v3422 = vpop.f32.mrf.mxu0
    %v3423 = vadd.f32 %v3374, %v3422
    %v3424 = vpop.f32.mrf.mxu0
    %v3425 = vadd.f32 %v3376, %v3424
    %3426 = vmatmul.bf16.gmra.mxu0 %v2309
    %v3427 = vpop.f32.mrf.mxu0
    %v3428 = vadd.f32 %v3379, %v3427
    %v3429 = vpop.f32.mrf.mxu0
    %v3430 = vadd.f32 %v3381, %v3429
    %3431 = vdwg.mxu0
    %3432 = vmatpush.bf16.msra.mxu0 %v2958
    %3433 = vmatpush.bf16.msra.mxu0 %v2954
    %3434 = vmatpush.bf16.msra.mxu0 %v2950
    %3435 = vmatpush.bf16.msra.mxu0 %v2946
    %3436 = vmatpush.bf16.msra.mxu0 %v2942
    %3437 = vmatpush.bf16.msra.mxu0 %v2938
    %3438 = vmatpush.bf16.msra.mxu0 %v2934
    %3439 = vmatpush.bf16.msra.mxu0 %v2930
    %3440 = vmatmul.bf16.gmra.mxu0 %v2282
    %v3441 = vpop.f32.mrf.mxu0
    %v3442 = vadd.f32 %v3393, %v3441
    %v3443 = vpop.f32.mrf.mxu0
    %v3444 = vadd.f32 %v3395, %v3443
    %3445 = vmatmul.bf16.gmra.mxu0 %v2286
    %v3446 = vpop.f32.mrf.mxu0
    %v3447 = vadd.f32 %v3398, %v3446
    %v3448 = vpop.f32.mrf.mxu0
    %v3449 = vadd.f32 %v3400, %v3448
    %3450 = vmatmul.bf16.gmra.mxu0 %v2290
    %v3451 = vpop.f32.mrf.mxu0
    %v3452 = vadd.f32 %v3403, %v3451
    %v3453 = vpop.f32.mrf.mxu0
    %v3454 = vadd.f32 %v3405, %v3453
    %3455 = vmatmul.bf16.gmra.mxu0 %v2294
    %v3456 = vpop.f32.mrf.mxu0
    %v3457 = vadd.f32 %v3408, %v3456
    %v3458 = vpop.f32.mrf.mxu0
    %v3459 = vadd.f32 %v3410, %v3458
    %3460 = vmatmul.bf16.gmra.mxu0 %v2298
    %v3461 = vpop.f32.mrf.mxu0
    %v3462 = vadd.f32 %v3413, %v3461
    %v3463 = vpop.f32.mrf.mxu0
    %v3464 = vadd.f32 %v3415, %v3463
    %3465 = vmatmul.bf16.gmra.mxu0 %v2302
    %v3466 = vpop.f32.mrf.mxu0
    %v3467 = vadd.f32 %v3418, %v3466
    %v3468 = vpop.f32.mrf.mxu0
    %v3469 = vadd.f32 %v3420, %v3468
    %3470 = vmatmul.bf16.gmra.mxu0 %v2306
    %v3471 = vpop.f32.mrf.mxu0
    %v3472 = vadd.f32 %v3423, %v3471
    %v3473 = vpop.f32.mrf.mxu0
    %v3474 = vadd.f32 %v3425, %v3473
    %3475 = vmatmul.bf16.gmra.mxu0 %v2310
    %v3476 = vpop.f32.mrf.mxu0
    %v3477 = vadd.f32 %v3428, %v3476
    %v3478 = vpop.f32.mrf.mxu0
    %v3479 = vadd.f32 %v3430, %v3478
    %3480 = vdwg.mxu0
    %3481 = vmatpush.bf16.msra.mxu0 %v2863
    %3482 = vmatpush.bf16.msra.mxu0 %v2859
    %3483 = vmatpush.bf16.msra.mxu0 %v2855
    %3484 = vmatpush.bf16.msra.mxu0 %v2851
    %3485 = vmatpush.bf16.msra.mxu0 %v2847
    %3486 = vmatpush.bf16.msra.mxu0 %v2843
    %3487 = vmatpush.bf16.msra.mxu0 %v2839
    %3488 = vmatpush.bf16.msra.mxu0 %v2835
    %3489 = vmatmul.bf16.gmra.mxu0 %v2279
    %v3490 = vpop.f32.mrf.mxu0
    %v3491 = vadd.f32 %v2443, %v3490
    %v3492 = vpop.f32.mrf.mxu0
    %v3493 = vadd.f32 %v2443, %v3492
    %3494 = vmatmul.bf16.gmra.mxu0 %v2283
    %v3495 = vpop.f32.mrf.mxu0
    %v3496 = vadd.f32 %v2443, %v3495
    %v3497 = vpop.f32.mrf.mxu0
    %v3498 = vadd.f32 %v2443, %v3497
    %3499 = vmatmul.bf16.gmra.mxu0 %v2287
    %v3500 = vpop.f32.mrf.mxu0
    %v3501 = vadd.f32 %v2443, %v3500
    %v3502 = vpop.f32.mrf.mxu0
    %v3503 = vadd.f32 %v2443, %v3502
    %3504 = vmatmul.bf16.gmra.mxu0 %v2291
    %v3505 = vpop.f32.mrf.mxu0
    %v3506 = vadd.f32 %v2443, %v3505
    %v3507 = vpop.f32.mrf.mxu0
    %v3508 = vadd.f32 %v2443, %v3507
    %3509 = vmatmul.bf16.gmra.mxu0 %v2295
    %v3510 = vpop.f32.mrf.mxu0
    %v3511 = vadd.f32 %v2443, %v3510
    %v3512 = vpop.f32.mrf.mxu0
    %v3513 = vadd.f32 %v2443, %v3512
    %3514 = vmatmul.bf16.gmra.mxu0 %v2299
    %v3515 = vpop.f32.mrf.mxu0
    %v3516 = vadd.f32 %v2443, %v3515
    %v3517 = vpop.f32.mrf.mxu0
    %v3518 = vadd.f32 %v2443, %v3517
    %3519 = vmatmul.bf16.gmra.mxu0 %v2303
    %v3520 = vpop.f32.mrf.mxu0
    %v3521 = vadd.f32 %v2443, %v3520
    %v3522 = vpop.f32.mrf.mxu0
    %v3523 = vadd.f32 %v2443, %v3522
    %3524 = vmatmul.bf16.gmra.mxu0 %v2307
    %v3525 = vpop.f32.mrf.mxu0
    %v3526 = vadd.f32 %v2443, %v3525
    %v3527 = vpop.f32.mrf.mxu0
    %v3528 = vadd.f32 %v2443, %v3527
    %3529 = vdwg.mxu0
    %3530 = vmatpush.bf16.msra.mxu0 %v2895
    %3531 = vmatpush.bf16.msra.mxu0 %v2891
    %3532 = vmatpush.bf16.msra.mxu0 %v2887
    %3533 = vmatpush.bf16.msra.mxu0 %v2883
    %3534 = vmatpush.bf16.msra.mxu0 %v2879
    %3535 = vmatpush.bf16.msra.mxu0 %v2875
    %3536 = vmatpush.bf16.msra.mxu0 %v2871
    %3537 = vmatpush.bf16.msra.mxu0 %v2867
    %3538 = vmatmul.bf16.gmra.mxu0 %v2280
    %v3539 = vpop.f32.mrf.mxu0
    %v3540 = vadd.f32 %v3491, %v3539
    %v3541 = vpop.f32.mrf.mxu0
    %v3542 = vadd.f32 %v3493, %v3541
    %3543 = vmatmul.bf16.gmra.mxu0 %v2284
    %v3544 = vpop.f32.mrf.mxu0
    %v3545 = vadd.f32 %v3496, %v3544
    %v3546 = vpop.f32.mrf.mxu0
    %v3547 = vadd.f32 %v3498, %v3546
    %3548 = vmatmul.bf16.gmra.mxu0 %v2288
    %v3549 = vpop.f32.mrf.mxu0
    %v3550 = vadd.f32 %v3501, %v3549
    %v3551 = vpop.f32.mrf.mxu0
    %v3552 = vadd.f32 %v3503, %v3551
    %3553 = vmatmul.bf16.gmra.mxu0 %v2292
    %v3554 = vpop.f32.mrf.mxu0
    %v3555 = vadd.f32 %v3506, %v3554
    %v3556 = vpop.f32.mrf.mxu0
    %v3557 = vadd.f32 %v3508, %v3556
    %3558 = vmatmul.bf16.gmra.mxu0 %v2296
    %v3559 = vpop.f32.mrf.mxu0
    %v3560 = vadd.f32 %v3511, %v3559
    %v3561 = vpop.f32.mrf.mxu0
    %v3562 = vadd.f32 %v3513, %v3561
    %3563 = vmatmul.bf16.gmra.mxu0 %v2300
    %v3564 = vpop.f32.mrf.mxu0
    %v3565 = vadd.f32 %v3516, %v3564
    %v3566 = vpop.f32.mrf.mxu0
    %v3567 = vadd.f32 %v3518, %v3566
    %3568 = vmatmul.bf16.gmra.mxu0 %v2304
    %v3569 = vpop.f32.mrf.mxu0
    %v3570 = vadd.f32 %v3521, %v3569
    %v3571 = vpop.f32.mrf.mxu0
    %v3572 = vadd.f32 %v3523, %v3571
    %3573 = vmatmul.bf16.gmra.mxu0 %v2308
    %v3574 = vpop.f32.mrf.mxu0
    %v3575 = vadd.f32 %v3526, %v3574
    %v3576 = vpop.f32.mrf.mxu0
    %v3577 = vadd.f32 %v3528, %v3576
    %3578 = vdwg.mxu0
    %3579 = vmatpush.bf16.msra.mxu0 %v2927
    %3580 = vmatpush.bf16.msra.mxu0 %v2923
    %3581 = vmatpush.bf16.msra.mxu0 %v2919
    %3582 = vmatpush.bf16.msra.mxu0 %v2915
    %3583 = vmatpush.bf16.msra.mxu0 %v2911
    %3584 = vmatpush.bf16.msra.mxu0 %v2907
    %3585 = vmatpush.bf16.msra.mxu0 %v2903
    %3586 = vmatpush.bf16.msra.mxu0 %v2899
    %3587 = vmatmul.bf16.gmra.mxu0 %v2281
    %v3588 = vpop.f32.mrf.mxu0
    %v3589 = vadd.f32 %v3540, %v3588
    %v3590 = vpop.f32.mrf.mxu0
    %v3591 = vadd.f32 %v3542, %v3590
    %3592 = vmatmul.bf16.gmra.mxu0 %v2285
    %v3593 = vpop.f32.mrf.mxu0
    %v3594 = vadd.f32 %v3545, %v3593
    %v3595 = vpop.f32.mrf.mxu0
    %v3596 = vadd.f32 %v3547, %v3595
    %3597 = vmatmul.bf16.gmra.mxu0 %v2289
    %v3598 = vpop.f32.mrf.mxu0
    %v3599 = vadd.f32 %v3550, %v3598
    %v3600 = vpop.f32.mrf.mxu0
    %v3601 = vadd.f32 %v3552, %v3600
    %3602 = vmatmul.bf16.gmra.mxu0 %v2293
    %v3603 = vpop.f32.mrf.mxu0
    %v3604 = vadd.f32 %v3555, %v3603
    %v3605 = vpop.f32.mrf.mxu0
    %v3606 = vadd.f32 %v3557, %v3605
    %3607 = vmatmul.bf16.gmra.mxu0 %v2297
    %v3608 = vpop.f32.mrf.mxu0
    %v3609 = vadd.f32 %v3560, %v3608
    %v3610 = vpop.f32.mrf.mxu0
    %v3611 = vadd.f32 %v3562, %v3610
    %3612 = vmatmul.bf16.gmra.mxu0 %v2301
    %v3613 = vpop.f32.mrf.mxu0
    %v3614 = vadd.f32 %v3565, %v3613
    %v3615 = vpop.f32.mrf.mxu0
    %v3616 = vadd.f32 %v3567, %v3615
    %3617 = vmatmul.bf16.gmra.mxu0 %v2305
    %v3618 = vpop.f32.mrf.mxu0
    %v3619 = vadd.f32 %v3570, %v3618
    %v3620 = vpop.f32.mrf.mxu0
    %v3621 = vadd.f32 %v3572, %v3620
    %3622 = vmatmul.bf16.gmra.mxu0 %v2309
    %v3623 = vpop.f32.mrf.mxu0
    %v3624 = vadd.f32 %v3575, %v3623
    %v3625 = vpop.f32.mrf.mxu0
    %v3626 = vadd.f32 %v3577, %v3625
    %3627 = vdwg.mxu0
    %3628 = vmatpush.bf16.msra.mxu0 %v2959
    %3629 = vmatpush.bf16.msra.mxu0 %v2955
    %3630 = vmatpush.bf16.msra.mxu0 %v2951
    %3631 = vmatpush.bf16.msra.mxu0 %v2947
    %3632 = vmatpush.bf16.msra.mxu0 %v2943
    %3633 = vmatpush.bf16.msra.mxu0 %v2939
    %3634 = vmatpush.bf16.msra.mxu0 %v2935
    %3635 = vmatpush.bf16.msra.mxu0 %v2931
    %3636 = vmatmul.bf16.gmra.mxu0 %v2282
    %v3637 = vpop.f32.mrf.mxu0
    %v3638 = vadd.f32 %v3589, %v3637
    %v3639 = vpop.f32.mrf.mxu0
    %v3640 = vadd.f32 %v3591, %v3639
    %3641 = vmatmul.bf16.gmra.mxu0 %v2286
    %v3642 = vpop.f32.mrf.mxu0
    %v3643 = vadd.f32 %v3594, %v3642
    %v3644 = vpop.f32.mrf.mxu0
    %v3645 = vadd.f32 %v3596, %v3644
    %3646 = vmatmul.bf16.gmra.mxu0 %v2290
    %v3647 = vpop.f32.mrf.mxu0
    %v3648 = vadd.f32 %v3599, %v3647
    %v3649 = vpop.f32.mrf.mxu0
    %v3650 = vadd.f32 %v3601, %v3649
    %3651 = vmatmul.bf16.gmra.mxu0 %v2294
    %v3652 = vpop.f32.mrf.mxu0
    %v3653 = vadd.f32 %v3604, %v3652
    %v3654 = vpop.f32.mrf.mxu0
    %v3655 = vadd.f32 %v3606, %v3654
    %3656 = vmatmul.bf16.gmra.mxu0 %v2298
    %v3657 = vpop.f32.mrf.mxu0
    %v3658 = vadd.f32 %v3609, %v3657
    %v3659 = vpop.f32.mrf.mxu0
    %v3660 = vadd.f32 %v3611, %v3659
    %3661 = vmatmul.bf16.gmra.mxu0 %v2302
    %v3662 = vpop.f32.mrf.mxu0
    %v3663 = vadd.f32 %v3614, %v3662
    %v3664 = vpop.f32.mrf.mxu0
    %v3665 = vadd.f32 %v3616, %v3664
    %3666 = vmatmul.bf16.gmra.mxu0 %v2306
    %v3667 = vpop.f32.mrf.mxu0
    %v3668 = vadd.f32 %v3619, %v3667
    %v3669 = vpop.f32.mrf.mxu0
    %v3670 = vadd.f32 %v3621, %v3669
    %3671 = vmatmul.bf16.gmra.mxu0 %v2310
    %v3672 = vpop.f32.mrf.mxu0
    %v3673 = vadd.f32 %v3624, %v3672
    %v3674 = vpop.f32.mrf.mxu0
    %v3675 = vadd.f32 %v3626, %v3674
    %3676 = vdwg.mxu0
    %3677 = vmatpush.bf16.msra.mxu0 %v2864
    %3678 = vmatpush.bf16.msra.mxu0 %v2860
    %3679 = vmatpush.bf16.msra.mxu0 %v2856
    %3680 = vmatpush.bf16.msra.mxu0 %v2852
    %3681 = vmatpush.bf16.msra.mxu0 %v2848
    %3682 = vmatpush.bf16.msra.mxu0 %v2844
    %3683 = vmatpush.bf16.msra.mxu0 %v2840
    %3684 = vmatpush.bf16.msra.mxu0 %v2836
    %3685 = vmatmul.bf16.gmra.mxu0 %v2279
    %v3686 = vpop.f32.mrf.mxu0
    %v3687 = vadd.f32 %v2444, %v3686
    %v3688 = vpop.f32.mrf.mxu0
    %v3689 = vadd.f32 %v2444, %v3688
    %3690 = vmatmul.bf16.gmra.mxu0 %v2283
    %v3691 = vpop.f32.mrf.mxu0
    %v3692 = vadd.f32 %v2444, %v3691
    %v3693 = vpop.f32.mrf.mxu0
    %v3694 = vadd.f32 %v2444, %v3693
    %3695 = vmatmul.bf16.gmra.mxu0 %v2287
    %v3696 = vpop.f32.mrf.mxu0
    %v3697 = vadd.f32 %v2444, %v3696
    %v3698 = vpop.f32.mrf.mxu0
    %v3699 = vadd.f32 %v2444, %v3698
    %3700 = vmatmul.bf16.gmra.mxu0 %v2291
    %v3701 = vpop.f32.mrf.mxu0
    %v3702 = vadd.f32 %v2444, %v3701
    %v3703 = vpop.f32.mrf.mxu0
    %v3704 = vadd.f32 %v2444, %v3703
    %3705 = vmatmul.bf16.gmra.mxu0 %v2295
    %v3706 = vpop.f32.mrf.mxu0
    %v3707 = vadd.f32 %v2444, %v3706
    %v3708 = vpop.f32.mrf.mxu0
    %v3709 = vadd.f32 %v2444, %v3708
    %3710 = vmatmul.bf16.gmra.mxu0 %v2299
    %v3711 = vpop.f32.mrf.mxu0
    %v3712 = vadd.f32 %v2444, %v3711
    %v3713 = vpop.f32.mrf.mxu0
    %v3714 = vadd.f32 %v2444, %v3713
    %3715 = vmatmul.bf16.gmra.mxu0 %v2303
    %v3716 = vpop.f32.mrf.mxu0
    %v3717 = vadd.f32 %v2444, %v3716
    %v3718 = vpop.f32.mrf.mxu0
    %v3719 = vadd.f32 %v2444, %v3718
    %3720 = vmatmul.bf16.gmra.mxu0 %v2307
    %v3721 = vpop.f32.mrf.mxu0
    %v3722 = vadd.f32 %v2444, %v3721
    %v3723 = vpop.f32.mrf.mxu0
    %v3724 = vadd.f32 %v2444, %v3723
    %3725 = vdwg.mxu0
    %3726 = vmatpush.bf16.msra.mxu0 %v2896
    %3727 = vmatpush.bf16.msra.mxu0 %v2892
    %3728 = vmatpush.bf16.msra.mxu0 %v2888
    %3729 = vmatpush.bf16.msra.mxu0 %v2884
    %3730 = vmatpush.bf16.msra.mxu0 %v2880
    %3731 = vmatpush.bf16.msra.mxu0 %v2876
    %3732 = vmatpush.bf16.msra.mxu0 %v2872
    %3733 = vmatpush.bf16.msra.mxu0 %v2868
    %3734 = vmatmul.bf16.gmra.mxu0 %v2280
    %v3735 = vpop.f32.mrf.mxu0
    %v3736 = vadd.f32 %v3687, %v3735
    %v3737 = vpop.f32.mrf.mxu0
    %v3738 = vadd.f32 %v3689, %v3737
    %3739 = vmatmul.bf16.gmra.mxu0 %v2284
    %v3740 = vpop.f32.mrf.mxu0
    %v3741 = vadd.f32 %v3692, %v3740
    %v3742 = vpop.f32.mrf.mxu0
    %v3743 = vadd.f32 %v3694, %v3742
    %3744 = vmatmul.bf16.gmra.mxu0 %v2288
    %v3745 = vpop.f32.mrf.mxu0
    %v3746 = vadd.f32 %v3697, %v3745
    %v3747 = vpop.f32.mrf.mxu0
    %v3748 = vadd.f32 %v3699, %v3747
    %3749 = vmatmul.bf16.gmra.mxu0 %v2292
    %v3750 = vpop.f32.mrf.mxu0
    %v3751 = vadd.f32 %v3702, %v3750
    %v3752 = vpop.f32.mrf.mxu0
    %v3753 = vadd.f32 %v3704, %v3752
    %3754 = vmatmul.bf16.gmra.mxu0 %v2296
    %v3755 = vpop.f32.mrf.mxu0
    %v3756 = vadd.f32 %v3707, %v3755
    %v3757 = vpop.f32.mrf.mxu0
    %v3758 = vadd.f32 %v3709, %v3757
    %3759 = vmatmul.bf16.gmra.mxu0 %v2300
    %v3760 = vpop.f32.mrf.mxu0
    %v3761 = vadd.f32 %v3712, %v3760
    %v3762 = vpop.f32.mrf.mxu0
    %v3763 = vadd.f32 %v3714, %v3762
    %3764 = vmatmul.bf16.gmra.mxu0 %v2304
    %v3765 = vpop.f32.mrf.mxu0
    %v3766 = vadd.f32 %v3717, %v3765
    %v3767 = vpop.f32.mrf.mxu0
    %v3768 = vadd.f32 %v3719, %v3767
    %3769 = vmatmul.bf16.gmra.mxu0 %v2308
    %v3770 = vpop.f32.mrf.mxu0
    %v3771 = vadd.f32 %v3722, %v3770
    %v3772 = vpop.f32.mrf.mxu0
    %v3773 = vadd.f32 %v3724, %v3772
    %3774 = vdwg.mxu0
    %3775 = vmatpush.bf16.msra.mxu0 %v2928
    %3776 = vmatpush.bf16.msra.mxu0 %v2924
    %3777 = vmatpush.bf16.msra.mxu0 %v2920
    %3778 = vmatpush.bf16.msra.mxu0 %v2916
    %3779 = vmatpush.bf16.msra.mxu0 %v2912
    %3780 = vmatpush.bf16.msra.mxu0 %v2908
    %3781 = vmatpush.bf16.msra.mxu0 %v2904
    %3782 = vmatpush.bf16.msra.mxu0 %v2900
    %3783 = vmatmul.bf16.gmra.mxu0 %v2281
    %v3784 = vpop.f32.mrf.mxu0
    %v3785 = vadd.f32 %v3736, %v3784
    %v3786 = vpop.f32.mrf.mxu0
    %v3787 = vadd.f32 %v3738, %v3786
    %3788 = vmatmul.bf16.gmra.mxu0 %v2285
    %v3789 = vpop.f32.mrf.mxu0
    %v3790 = vadd.f32 %v3741, %v3789
    %v3791 = vpop.f32.mrf.mxu0
    %v3792 = vadd.f32 %v3743, %v3791
    %3793 = vmatmul.bf16.gmra.mxu0 %v2289
    %v3794 = vpop.f32.mrf.mxu0
    %v3795 = vadd.f32 %v3746, %v3794
    %v3796 = vpop.f32.mrf.mxu0
    %v3797 = vadd.f32 %v3748, %v3796
    %3798 = vmatmul.bf16.gmra.mxu0 %v2293
    %v3799 = vpop.f32.mrf.mxu0
    %v3800 = vadd.f32 %v3751, %v3799
    %v3801 = vpop.f32.mrf.mxu0
    %v3802 = vadd.f32 %v3753, %v3801
    %3803 = vmatmul.bf16.gmra.mxu0 %v2297
    %v3804 = vpop.f32.mrf.mxu0
    %v3805 = vadd.f32 %v3756, %v3804
    %v3806 = vpop.f32.mrf.mxu0
    %v3807 = vadd.f32 %v3758, %v3806
    %3808 = vmatmul.bf16.gmra.mxu0 %v2301
    %v3809 = vpop.f32.mrf.mxu0
    %v3810 = vadd.f32 %v3761, %v3809
    %v3811 = vpop.f32.mrf.mxu0
    %v3812 = vadd.f32 %v3763, %v3811
    %3813 = vmatmul.bf16.gmra.mxu0 %v2305
    %v3814 = vpop.f32.mrf.mxu0
    %v3815 = vadd.f32 %v3766, %v3814
    %v3816 = vpop.f32.mrf.mxu0
    %v3817 = vadd.f32 %v3768, %v3816
    %3818 = vmatmul.bf16.gmra.mxu0 %v2309
    %v3819 = vpop.f32.mrf.mxu0
    %v3820 = vadd.f32 %v3771, %v3819
    %v3821 = vpop.f32.mrf.mxu0
    %v3822 = vadd.f32 %v3773, %v3821
    %3823 = vdwg.mxu0
    %3824 = vmatpush.bf16.msra.mxu0 %v2960
    %3825 = vmatpush.bf16.msra.mxu0 %v2956
    %3826 = vmatpush.bf16.msra.mxu0 %v2952
    %3827 = vmatpush.bf16.msra.mxu0 %v2948
    %3828 = vmatpush.bf16.msra.mxu0 %v2944
    %3829 = vmatpush.bf16.msra.mxu0 %v2940
    %3830 = vmatpush.bf16.msra.mxu0 %v2936
    %3831 = vmatpush.bf16.msra.mxu0 %v2932
    %3832 = vmatmul.bf16.gmra.mxu0 %v2282
    %v3833 = vpop.f32.mrf.mxu0
    %v3834 = vadd.f32 %v3785, %v3833
    %v3835 = vpop.f32.mrf.mxu0
    %v3836 = vadd.f32 %v3787, %v3835
    %3837 = vmatmul.bf16.gmra.mxu0 %v2286
    %v3838 = vpop.f32.mrf.mxu0
    %v3839 = vadd.f32 %v3790, %v3838
    %v3840 = vpop.f32.mrf.mxu0
    %v3841 = vadd.f32 %v3792, %v3840
    %3842 = vmatmul.bf16.gmra.mxu0 %v2290
    %v3843 = vpop.f32.mrf.mxu0
    %v3844 = vadd.f32 %v3795, %v3843
    %v3845 = vpop.f32.mrf.mxu0
    %v3846 = vadd.f32 %v3797, %v3845
    %3847 = vmatmul.bf16.gmra.mxu0 %v2294
    %v3848 = vpop.f32.mrf.mxu0
    %v3849 = vadd.f32 %v3800, %v3848
    %v3850 = vpop.f32.mrf.mxu0
    %v3851 = vadd.f32 %v3802, %v3850
    %3852 = vmatmul.bf16.gmra.mxu0 %v2298
    %v3853 = vpop.f32.mrf.mxu0
    %v3854 = vadd.f32 %v3805, %v3853
    %v3855 = vpop.f32.mrf.mxu0
    %v3856 = vadd.f32 %v3807, %v3855
    %3857 = vmatmul.bf16.gmra.mxu0 %v2302
    %v3858 = vpop.f32.mrf.mxu0
    %v3859 = vadd.f32 %v3810, %v3858
    %v3860 = vpop.f32.mrf.mxu0
    %v3861 = vadd.f32 %v3812, %v3860
    %3862 = vmatmul.bf16.gmra.mxu0 %v2306
    %v3863 = vpop.f32.mrf.mxu0
    %v3864 = vadd.f32 %v3815, %v3863
    %v3865 = vpop.f32.mrf.mxu0
    %v3866 = vadd.f32 %v3817, %v3865
    %3867 = vmatmul.bf16.gmra.mxu0 %v2310
    %v3868 = vpop.f32.mrf.mxu0
    %v3869 = vadd.f32 %v3820, %v3868
    %v3870 = vpop.f32.mrf.mxu0
    %v3871 = vadd.f32 %v3822, %v3870
    %3872 = vdwg.mxu0
    %v3873 = vmax.f32 %v3246, 0.0
    %v3874 = vmax.f32 %v3442, 0.0
    %v3875 = vmax.f32 %v3638, 0.0
    %v3876 = vmax.f32 %v3834, 0.0
    %v3877 = vmax.f32 %v3248, 0.0
    %v3878 = vmax.f32 %v3444, 0.0
    %v3879 = vmax.f32 %v3640, 0.0
    %v3880 = vmax.f32 %v3836, 0.0
    %v3881 = vmax.f32 %v3251, 0.0
    %v3882 = vmax.f32 %v3447, 0.0
    %v3883 = vmax.f32 %v3643, 0.0
    %v3884 = vmax.f32 %v3839, 0.0
    %v3885 = vmax.f32 %v3253, 0.0
    %v3886 = vmax.f32 %v3449, 0.0
    %v3887 = vmax.f32 %v3645, 0.0
    %v3888 = vmax.f32 %v3841, 0.0
    %v3889 = vmax.f32 %v3256, 0.0
    %v3890 = vmax.f32 %v3452, 0.0
    %v3891 = vmax.f32 %v3648, 0.0
    %v3892 = vmax.f32 %v3844, 0.0
    %v3893 = vmax.f32 %v3258, 0.0
    %v3894 = vmax.f32 %v3454, 0.0
    %v3895 = vmax.f32 %v3650, 0.0
    %v3896 = vmax.f32 %v3846, 0.0
    %v3897 = vmax.f32 %v3261, 0.0
    %v3898 = vmax.f32 %v3457, 0.0
    %v3899 = vmax.f32 %v3653, 0.0
    %v3900 = vmax.f32 %v3849, 0.0
    %v3901 = vmax.f32 %v3263, 0.0
    %v3902 = vmax.f32 %v3459, 0.0
    %v3903 = vmax.f32 %v3655, 0.0
    %v3904 = vmax.f32 %v3851, 0.0
    %v3905 = vmax.f32 %v3266, 0.0
    %v3906 = vmax.f32 %v3462, 0.0
    %v3907 = vmax.f32 %v3658, 0.0
    %v3908 = vmax.f32 %v3854, 0.0
    %v3909 = vmax.f32 %v3268, 0.0
    %v3910 = vmax.f32 %v3464, 0.0
    %v3911 = vmax.f32 %v3660, 0.0
    %v3912 = vmax.f32 %v3856, 0.0
    %v3913 = vmax.f32 %v3271, 0.0
    %v3914 = vmax.f32 %v3467, 0.0
    %v3915 = vmax.f32 %v3663, 0.0
    %v3916 = vmax.f32 %v3859, 0.0
    %v3917 = vmax.f32 %v3273, 0.0
    %v3918 = vmax.f32 %v3469, 0.0
    %v3919 = vmax.f32 %v3665, 0.0
    %v3920 = vmax.f32 %v3861, 0.0
    %v3921 = vmax.f32 %v3276, 0.0
    %v3922 = vmax.f32 %v3472, 0.0
    %v3923 = vmax.f32 %v3668, 0.0
    %v3924 = vmax.f32 %v3864, 0.0
    %v3925 = vmax.f32 %v3278, 0.0
    %v3926 = vmax.f32 %v3474, 0.0
    %v3927 = vmax.f32 %v3670, 0.0
    %v3928 = vmax.f32 %v3866, 0.0
    %v3929 = vmax.f32 %v3281, 0.0
    %v3930 = vmax.f32 %v3477, 0.0
    %v3931 = vmax.f32 %v3673, 0.0
    %v3932 = vmax.f32 %v3869, 0.0
    %v3933 = vmax.f32 %v3283, 0.0
    %v3934 = vmax.f32 %v3479, 0.0
    %v3935 = vmax.f32 %v3675, 0.0
    %v3936 = vmax.f32 %v3871, 0.0
    %v3937 = vpack.c.bf16 %v3877, %v3873
    %v3938 = vpack.c.bf16 %v3878, %v3874
    %v3939 = vpack.c.bf16 %v3879, %v3875
    %v3940 = vpack.c.bf16 %v3880, %v3876
    %v3941 = vpack.c.bf16 %v3885, %v3881
    %v3942 = vpack.c.bf16 %v3886, %v3882
    %v3943 = vpack.c.bf16 %v3887, %v3883
    %v3944 = vpack.c.bf16 %v3888, %v3884
    %v3945 = vpack.c.bf16 %v3893, %v3889
    %v3946 = vpack.c.bf16 %v3894, %v3890
    %v3947 = vpack.c.bf16 %v3895, %v3891
    %v3948 = vpack.c.bf16 %v3896, %v3892
    %v3949 = vpack.c.bf16 %v3901, %v3897
    %v3950 = vpack.c.bf16 %v3902, %v3898
    %v3951 = vpack.c.bf16 %v3903, %v3899
    %v3952 = vpack.c.bf16 %v3904, %v3900
    %v3953 = vpack.c.bf16 %v3909, %v3905
    %v3954 = vpack.c.bf16 %v3910, %v3906
    %v3955 = vpack.c.bf16 %v3911, %v3907
    %v3956 = vpack.c.bf16 %v3912, %v3908
    %v3957 = vpack.c.bf16 %v3917, %v3913
    %v3958 = vpack.c.bf16 %v3918, %v3914
    %v3959 = vpack.c.bf16 %v3919, %v3915
    %v3960 = vpack.c.bf16 %v3920, %v3916
    %v3961 = vpack.c.bf16 %v3925, %v3921
    %v3962 = vpack.c.bf16 %v3926, %v3922
    %v3963 = vpack.c.bf16 %v3927, %v3923
    %v3964 = vpack.c.bf16 %v3928, %v3924
    %v3965 = vpack.c.bf16 %v3933, %v3929
    %v3966 = vpack.c.bf16 %v3934, %v3930
    %v3967 = vpack.c.bf16 %v3935, %v3931
    %v3968 = vpack.c.bf16 %v3936, %v3932
    %v3969 = vld [vmem:[#allocation7] sm:$0xf]
    %v3970 = vld [vmem:[#allocation7 + $0x4] sm:$0xf]
    %v3971 = vld [vmem:[#allocation7 + $0x8] sm:$0xf]
    %v3972 = vld [vmem:[#allocation7 + $0xc] sm:$0xf]
    %v3973 = vld [vmem:[#allocation7 + $0x10] sm:$0xf]
    %v3974 = vld [vmem:[#allocation7 + $0x14] sm:$0xf]
    %v3975 = vld [vmem:[#allocation7 + $0x18] sm:$0xf]
    %v3976 = vld [vmem:[#allocation7 + $0x1c] sm:$0xf]
    %v3977 = vld [vmem:[#allocation7 + $0x20] sm:$0xf]
    %v3978 = vld [vmem:[#allocation7 + $0x24] sm:$0xf]
    %v3979 = vld [vmem:[#allocation7 + $0x28] sm:$0xf]
    %v3980 = vld [vmem:[#allocation7 + $0x2c] sm:$0xf]
    %v3981 = vld [vmem:[#allocation7 + $0x30] sm:$0xf]
    %v3982 = vld [vmem:[#allocation7 + $0x34] sm:$0xf]
    %v3983 = vld [vmem:[#allocation7 + $0x38] sm:$0xf]
    %v3984 = vld [vmem:[#allocation7 + $0x3c] sm:$0xf]
    %v3985 = vld [vmem:[#allocation7 + $0x40] sm:$0xf]
    %v3986 = vld [vmem:[#allocation7 + $0x44] sm:$0xf]
    %v3987 = vld [vmem:[#allocation7 + $0x48] sm:$0xf]
    %v3988 = vld [vmem:[#allocation7 + $0x4c] sm:$0xf]
    %v3989 = vld [vmem:[#allocation7 + $0x50] sm:$0xf]
    %v3990 = vld [vmem:[#allocation7 + $0x54] sm:$0xf]
    %v3991 = vld [vmem:[#allocation7 + $0x58] sm:$0xf]
    %v3992 = vld [vmem:[#allocation7 + $0x5c] sm:$0xf]
    %v3993 = vld [vmem:[#allocation7 + $0x60] sm:$0xf]
    %v3994 = vld [vmem:[#allocation7 + $0x64] sm:$0xf]
    %v3995 = vld [vmem:[#allocation7 + $0x68] sm:$0xf]
    %v3996 = vld [vmem:[#allocation7 + $0x6c] sm:$0xf]
    %v3997 = vld [vmem:[#allocation7 + $0x70] sm:$0xf]
    %v3998 = vld [vmem:[#allocation7 + $0x74] sm:$0xf]
    %v3999 = vld [vmem:[#allocation7 + $0x78] sm:$0xf]
    %v4000 = vld [vmem:[#allocation7 + $0x7c] sm:$0xf]
    %v4001 = vld [vmem:[#allocation7 + $0x80] sm:$0xf]
    %v4002 = vld [vmem:[#allocation7 + $0x84] sm:$0xf]
    %v4003 = vld [vmem:[#allocation7 + $0x88] sm:$0xf]
    %v4004 = vld [vmem:[#allocation7 + $0x8c] sm:$0xf]
    %v4005 = vld [vmem:[#allocation7 + $0x90] sm:$0xf]
    %v4006 = vld [vmem:[#allocation7 + $0x94] sm:$0xf]
    %v4007 = vld [vmem:[#allocation7 + $0x98] sm:$0xf]
    %v4008 = vld [vmem:[#allocation7 + $0x9c] sm:$0xf]
    %v4009 = vld [vmem:[#allocation7 + $0xa0] sm:$0xf]
    %v4010 = vld [vmem:[#allocation7 + $0xa4] sm:$0xf]
    %v4011 = vld [vmem:[#allocation7 + $0xa8] sm:$0xf]
    %v4012 = vld [vmem:[#allocation7 + $0xac] sm:$0xf]
    %v4013 = vld [vmem:[#allocation7 + $0xb0] sm:$0xf]
    %v4014 = vld [vmem:[#allocation7 + $0xb4] sm:$0xf]
    %v4015 = vld [vmem:[#allocation7 + $0xb8] sm:$0xf]
    %v4016 = vld [vmem:[#allocation7 + $0xbc] sm:$0xf]
    %v4017 = vld [vmem:[#allocation7 + $0xc0] sm:$0xf]
    %v4018 = vld [vmem:[#allocation7 + $0xc4] sm:$0xf]
    %v4019 = vld [vmem:[#allocation7 + $0xc8] sm:$0xf]
    %v4020 = vld [vmem:[#allocation7 + $0xcc] sm:$0xf]
    %v4021 = vld [vmem:[#allocation7 + $0xd0] sm:$0xf]
    %v4022 = vld [vmem:[#allocation7 + $0xd4] sm:$0xf]
    %v4023 = vld [vmem:[#allocation7 + $0xd8] sm:$0xf]
    %v4024 = vld [vmem:[#allocation7 + $0xdc] sm:$0xf]
    %v4025 = vld [vmem:[#allocation7 + $0xe0] sm:$0xf]
    %v4026 = vld [vmem:[#allocation7 + $0xe4] sm:$0xf]
    %v4027 = vld [vmem:[#allocation7 + $0xe8] sm:$0xf]
    %v4028 = vld [vmem:[#allocation7 + $0xec] sm:$0xf]
    %v4029 = vld [vmem:[#allocation7 + $0xf0] sm:$0xf]
    %v4030 = vld [vmem:[#allocation7 + $0xf4] sm:$0xf]
    %v4031 = vld [vmem:[#allocation7 + $0xf8] sm:$0xf]
    %v4032 = vld [vmem:[#allocation7 + $0xfc] sm:$0xf]
    %v4033 = vld [vmem:[%s8] sm:$0x1]
    %v4035 = vperm.slane %v4033, 0
    %v4101 = vunpack.c.l.b16 %v3969
    %v4102 = vunpack.c.l.b16 %v3970
    %v4103 = vunpack.c.l.b16 %v3971
    %v4104 = vunpack.c.l.b16 %v3972
    %v4105 = vunpack.c.l.b16 %v3973
    %v4106 = vunpack.c.l.b16 %v3974
    %v4107 = vunpack.c.l.b16 %v3975
    %v4108 = vunpack.c.l.b16 %v3976
    %v4109 = vunpack.c.l.b16 %v3977
    %v4110 = vunpack.c.l.b16 %v3978
    %v4111 = vunpack.c.l.b16 %v3979
    %v4112 = vunpack.c.l.b16 %v3980
    %v4113 = vunpack.c.l.b16 %v3981
    %v4114 = vunpack.c.l.b16 %v3982
    %v4115 = vunpack.c.l.b16 %v3983
    %v4116 = vunpack.c.l.b16 %v3984
    %v4117 = vunpack.c.l.b16 %v3985
    %v4118 = vunpack.c.l.b16 %v3986
    %v4119 = vunpack.c.l.b16 %v3987
    %v4120 = vunpack.c.l.b16 %v3988
    %v4121 = vunpack.c.l.b16 %v3989
    %v4122 = vunpack.c.l.b16 %v3990
    %v4123 = vunpack.c.l.b16 %v3991
    %v4124 = vunpack.c.l.b16 %v3992
    %v4125 = vunpack.c.l.b16 %v3993
    %v4126 = vunpack.c.l.b16 %v3994
    %v4127 = vunpack.c.l.b16 %v3995
    %v4128 = vunpack.c.l.b16 %v3996
    %v4129 = vunpack.c.l.b16 %v3997
    %v4130 = vunpack.c.l.b16 %v3998
    %v4131 = vunpack.c.l.b16 %v3999
    %v4132 = vunpack.c.l.b16 %v4000
    %v4133 = vunpack.c.l.b16 %v4001
    %v4134 = vunpack.c.l.b16 %v4002
    %v4135 = vunpack.c.l.b16 %v4003
    %v4136 = vunpack.c.l.b16 %v4004
    %v4137 = vunpack.c.l.b16 %v4005
    %v4138 = vunpack.c.l.b16 %v4006
    %v4139 = vunpack.c.l.b16 %v4007
    %v4140 = vunpack.c.l.b16 %v4008
    %v4141 = vunpack.c.l.b16 %v4009
    %v4142 = vunpack.c.l.b16 %v4010
    %v4143 = vunpack.c.l.b16 %v4011
    %v4144 = vunpack.c.l.b16 %v4012
    %v4145 = vunpack.c.l.b16 %v4013
    %v4146 = vunpack.c.l.b16 %v4014
    %v4147 = vunpack.c.l.b16 %v4015
    %v4148 = vunpack.c.l.b16 %v4016
    %v4149 = vunpack.c.l.b16 %v4017
    %v4150 = vunpack.c.l.b16 %v4018
    %v4151 = vunpack.c.l.b16 %v4019
    %v4152 = vunpack.c.l.b16 %v4020
    %v4153 = vunpack.c.l.b16 %v4021
    %v4154 = vunpack.c.l.b16 %v4022
    %v4155 = vunpack.c.l.b16 %v4023
    %v4156 = vunpack.c.l.b16 %v4024
    %v4157 = vunpack.c.l.b16 %v4025
    %v4158 = vunpack.c.l.b16 %v4026
    %v4159 = vunpack.c.l.b16 %v4027
    %v4160 = vunpack.c.l.b16 %v4028
    %v4161 = vunpack.c.l.b16 %v4029
    %v4162 = vunpack.c.l.b16 %v4030
    %v4163 = vunpack.c.l.b16 %v4031
    %v4164 = vunpack.c.l.b16 %v4032
    %v4165 = vpack.c.b16 %v4102, %v4101
    %v4166 = vpack.c.b16 %v4104, %v4103
    %v4167 = vpack.c.b16 %v4106, %v4105
    %v4168 = vpack.c.b16 %v4108, %v4107
    %v4169 = vpack.c.b16 %v4110, %v4109
    %v4170 = vpack.c.b16 %v4112, %v4111
    %v4171 = vpack.c.b16 %v4114, %v4113
    %v4172 = vpack.c.b16 %v4116, %v4115
    %v4173 = vpack.c.b16 %v4118, %v4117
    %v4174 = vpack.c.b16 %v4120, %v4119
    %v4175 = vpack.c.b16 %v4122, %v4121
    %v4176 = vpack.c.b16 %v4124, %v4123
    %v4177 = vpack.c.b16 %v4126, %v4125
    %v4178 = vpack.c.b16 %v4128, %v4127
    %v4179 = vpack.c.b16 %v4130, %v4129
    %v4180 = vpack.c.b16 %v4132, %v4131
    %v4181 = vpack.c.b16 %v4134, %v4133
    %v4182 = vpack.c.b16 %v4136, %v4135
    %v4183 = vpack.c.b16 %v4138, %v4137
    %v4184 = vpack.c.b16 %v4140, %v4139
    %v4185 = vpack.c.b16 %v4142, %v4141
    %v4186 = vpack.c.b16 %v4144, %v4143
    %v4187 = vpack.c.b16 %v4146, %v4145
    %v4188 = vpack.c.b16 %v4148, %v4147
    %v4189 = vpack.c.b16 %v4150, %v4149
    %v4190 = vpack.c.b16 %v4152, %v4151
    %v4191 = vpack.c.b16 %v4154, %v4153
    %v4192 = vpack.c.b16 %v4156, %v4155
    %v4193 = vpack.c.b16 %v4158, %v4157
    %v4194 = vpack.c.b16 %v4160, %v4159
    %v4195 = vpack.c.b16 %v4162, %v4161
    %v4196 = vpack.c.b16 %v4164, %v4163
    %4229 = vmatpush.bf16.msra.mxu0 %v4172
    %4230 = vmatpush.bf16.msra.mxu0 %v4171
    %4231 = vmatpush.bf16.msra.mxu0 %v4170
    %4232 = vmatpush.bf16.msra.mxu0 %v4169
    %4233 = vmatpush.bf16.msra.mxu0 %v4168
    %4234 = vmatpush.bf16.msra.mxu0 %v4167
    %4235 = vmatpush.bf16.msra.mxu0 %v4166
    %4236 = vmatpush.bf16.msra.mxu0 %v4165
    %4237 = vmatmul.bf16.gmra.mxu0 %v3937
    %v4238 = vpop.f32.mrf.mxu0
    %v4239 = vadd.f32 %v4035, %v4238
    %v4240 = vpop.f32.mrf.mxu0
    %v4241 = vadd.f32 %v4035, %v4240
    %4242 = vmatmul.bf16.gmra.mxu0 %v3941
    %v4243 = vpop.f32.mrf.mxu0
    %v4244 = vadd.f32 %v4035, %v4243
    %v4245 = vpop.f32.mrf.mxu0
    %v4246 = vadd.f32 %v4035, %v4245
    %4247 = vmatmul.bf16.gmra.mxu0 %v3945
    %v4248 = vpop.f32.mrf.mxu0
    %v4249 = vadd.f32 %v4035, %v4248
    %v4250 = vpop.f32.mrf.mxu0
    %v4251 = vadd.f32 %v4035, %v4250
    %4252 = vmatmul.bf16.gmra.mxu0 %v3949
    %v4253 = vpop.f32.mrf.mxu0
    %v4254 = vadd.f32 %v4035, %v4253
    %v4255 = vpop.f32.mrf.mxu0
    %v4256 = vadd.f32 %v4035, %v4255
    %4257 = vmatmul.bf16.gmra.mxu0 %v3953
    %v4258 = vpop.f32.mrf.mxu0
    %v4259 = vadd.f32 %v4035, %v4258
    %v4260 = vpop.f32.mrf.mxu0
    %v4261 = vadd.f32 %v4035, %v4260
    %4262 = vmatmul.bf16.gmra.mxu0 %v3957
    %v4263 = vpop.f32.mrf.mxu0
    %v4264 = vadd.f32 %v4035, %v4263
    %v4265 = vpop.f32.mrf.mxu0
    %v4266 = vadd.f32 %v4035, %v4265
    %4267 = vmatmul.bf16.gmra.mxu0 %v3961
    %v4268 = vpop.f32.mrf.mxu0
    %v4269 = vadd.f32 %v4035, %v4268
    %v4270 = vpop.f32.mrf.mxu0
    %v4271 = vadd.f32 %v4035, %v4270
    %4272 = vmatmul.bf16.gmra.mxu0 %v3965
    %v4273 = vpop.f32.mrf.mxu0
    %v4274 = vadd.f32 %v4035, %v4273
    %v4275 = vpop.f32.mrf.mxu0
    %v4276 = vadd.f32 %v4035, %v4275
    %4277 = vdwg.mxu0
    %4278 = vmatpush.bf16.msra.mxu0 %v4180
    %4279 = vmatpush.bf16.msra.mxu0 %v4179
    %4280 = vmatpush.bf16.msra.mxu0 %v4178
    %4281 = vmatpush.bf16.msra.mxu0 %v4177
    %4282 = vmatpush.bf16.msra.mxu0 %v4176
    %4283 = vmatpush.bf16.msra.mxu0 %v4175
    %4284 = vmatpush.bf16.msra.mxu0 %v4174
    %4285 = vmatpush.bf16.msra.mxu0 %v4173
    %4286 = vmatmul.bf16.gmra.mxu0 %v3938
    %v4287 = vpop.f32.mrf.mxu0
    %v4288 = vadd.f32 %v4239, %v4287
    %v4289 = vpop.f32.mrf.mxu0
    %v4290 = vadd.f32 %v4241, %v4289
    %4291 = vmatmul.bf16.gmra.mxu0 %v3942
    %v4292 = vpop.f32.mrf.mxu0
    %v4293 = vadd.f32 %v4244, %v4292
    %v4294 = vpop.f32.mrf.mxu0
    %v4295 = vadd.f32 %v4246, %v4294
    %4296 = vmatmul.bf16.gmra.mxu0 %v3946
    %v4297 = vpop.f32.mrf.mxu0
    %v4298 = vadd.f32 %v4249, %v4297
    %v4299 = vpop.f32.mrf.mxu0
    %v4300 = vadd.f32 %v4251, %v4299
    %4301 = vmatmul.bf16.gmra.mxu0 %v3950
    %v4302 = vpop.f32.mrf.mxu0
    %v4303 = vadd.f32 %v4254, %v4302
    %v4304 = vpop.f32.mrf.mxu0
    %v4305 = vadd.f32 %v4256, %v4304
    %4306 = vmatmul.bf16.gmra.mxu0 %v3954
    %v4307 = vpop.f32.mrf.mxu0
    %v4308 = vadd.f32 %v4259, %v4307
    %v4309 = vpop.f32.mrf.mxu0
    %v4310 = vadd.f32 %v4261, %v4309
    %4311 = vmatmul.bf16.gmra.mxu0 %v3958
    %v4312 = vpop.f32.mrf.mxu0
    %v4313 = vadd.f32 %v4264, %v4312
    %v4314 = vpop.f32.mrf.mxu0
    %v4315 = vadd.f32 %v4266, %v4314
    %4316 = vmatmul.bf16.gmra.mxu0 %v3962
    %v4317 = vpop.f32.mrf.mxu0
    %v4318 = vadd.f32 %v4269, %v4317
    %v4319 = vpop.f32.mrf.mxu0
    %v4320 = vadd.f32 %v4271, %v4319
    %4321 = vmatmul.bf16.gmra.mxu0 %v3966
    %v4322 = vpop.f32.mrf.mxu0
    %v4323 = vadd.f32 %v4274, %v4322
    %v4324 = vpop.f32.mrf.mxu0
    %v4325 = vadd.f32 %v4276, %v4324
    %4326 = vdwg.mxu0
    %4327 = vmatpush.bf16.msra.mxu0 %v4188
    %4328 = vmatpush.bf16.msra.mxu0 %v4187
    %4329 = vmatpush.bf16.msra.mxu0 %v4186
    %4330 = vmatpush.bf16.msra.mxu0 %v4185
    %4331 = vmatpush.bf16.msra.mxu0 %v4184
    %4332 = vmatpush.bf16.msra.mxu0 %v4183
    %4333 = vmatpush.bf16.msra.mxu0 %v4182
    %4334 = vmatpush.bf16.msra.mxu0 %v4181
    %4335 = vmatmul.bf16.gmra.mxu0 %v3939
    %v4336 = vpop.f32.mrf.mxu0
    %v4337 = vadd.f32 %v4288, %v4336
    %v4338 = vpop.f32.mrf.mxu0
    %v4339 = vadd.f32 %v4290, %v4338
    %4340 = vmatmul.bf16.gmra.mxu0 %v3943
    %v4341 = vpop.f32.mrf.mxu0
    %v4342 = vadd.f32 %v4293, %v4341
    %v4343 = vpop.f32.mrf.mxu0
    %v4344 = vadd.f32 %v4295, %v4343
    %4345 = vmatmul.bf16.gmra.mxu0 %v3947
    %v4346 = vpop.f32.mrf.mxu0
    %v4347 = vadd.f32 %v4298, %v4346
    %v4348 = vpop.f32.mrf.mxu0
    %v4349 = vadd.f32 %v4300, %v4348
    %4350 = vmatmul.bf16.gmra.mxu0 %v3951
    %v4351 = vpop.f32.mrf.mxu0
    %v4352 = vadd.f32 %v4303, %v4351
    %v4353 = vpop.f32.mrf.mxu0
    %v4354 = vadd.f32 %v4305, %v4353
    %4355 = vmatmul.bf16.gmra.mxu0 %v3955
    %v4356 = vpop.f32.mrf.mxu0
    %v4357 = vadd.f32 %v4308, %v4356
    %v4358 = vpop.f32.mrf.mxu0
    %v4359 = vadd.f32 %v4310, %v4358
    %4360 = vmatmul.bf16.gmra.mxu0 %v3959
    %v4361 = vpop.f32.mrf.mxu0
    %v4362 = vadd.f32 %v4313, %v4361
    %v4363 = vpop.f32.mrf.mxu0
    %v4364 = vadd.f32 %v4315, %v4363
    %4365 = vmatmul.bf16.gmra.mxu0 %v3963
    %v4366 = vpop.f32.mrf.mxu0
    %v4367 = vadd.f32 %v4318, %v4366
    %v4368 = vpop.f32.mrf.mxu0
    %v4369 = vadd.f32 %v4320, %v4368
    %4370 = vmatmul.bf16.gmra.mxu0 %v3967
    %v4371 = vpop.f32.mrf.mxu0
    %v4372 = vadd.f32 %v4323, %v4371
    %v4373 = vpop.f32.mrf.mxu0
    %v4374 = vadd.f32 %v4325, %v4373
    %4375 = vdwg.mxu0
    %4376 = vmatpush.bf16.msra.mxu0 %v4196
    %4377 = vmatpush.bf16.msra.mxu0 %v4195
    %4378 = vmatpush.bf16.msra.mxu0 %v4194
    %4379 = vmatpush.bf16.msra.mxu0 %v4193
    %4380 = vmatpush.bf16.msra.mxu0 %v4192
    %4381 = vmatpush.bf16.msra.mxu0 %v4191
    %4382 = vmatpush.bf16.msra.mxu0 %v4190
    %4383 = vmatpush.bf16.msra.mxu0 %v4189
    %4384 = vmatmul.bf16.gmra.mxu0 %v3940
    %v4385 = vpop.f32.mrf.mxu0
    %v4386 = vadd.f32 %v4337, %v4385
    %v4387 = vpop.f32.mrf.mxu0
    %v4388 = vadd.f32 %v4339, %v4387
    %4389 = vmatmul.bf16.gmra.mxu0 %v3944
    %v4390 = vpop.f32.mrf.mxu0
    %v4391 = vadd.f32 %v4342, %v4390
    %v4392 = vpop.f32.mrf.mxu0
    %v4393 = vadd.f32 %v4344, %v4392
    %4394 = vmatmul.bf16.gmra.mxu0 %v3948
    %v4395 = vpop.f32.mrf.mxu0
    %v4396 = vadd.f32 %v4347, %v4395
    %v4397 = vpop.f32.mrf.mxu0
    %v4398 = vadd.f32 %v4349, %v4397
    %4399 = vmatmul.bf16.gmra.mxu0 %v3952
    %v4400 = vpop.f32.mrf.mxu0
    %v4401 = vadd.f32 %v4352, %v4400
    %v4402 = vpop.f32.mrf.mxu0
    %v4403 = vadd.f32 %v4354, %v4402
    %4404 = vmatmul.bf16.gmra.mxu0 %v3956
    %v4405 = vpop.f32.mrf.mxu0
    %v4406 = vadd.f32 %v4357, %v4405
    %v4407 = vpop.f32.mrf.mxu0
    %v4408 = vadd.f32 %v4359, %v4407
    %4409 = vmatmul.bf16.gmra.mxu0 %v3960
    %v4410 = vpop.f32.mrf.mxu0
    %v4411 = vadd.f32 %v4362, %v4410
    %v4412 = vpop.f32.mrf.mxu0
    %v4413 = vadd.f32 %v4364, %v4412
    %4414 = vmatmul.bf16.gmra.mxu0 %v3964
    %v4415 = vpop.f32.mrf.mxu0
    %v4416 = vadd.f32 %v4367, %v4415
    %v4417 = vpop.f32.mrf.mxu0
    %v4418 = vadd.f32 %v4369, %v4417
    %4419 = vmatmul.bf16.gmra.mxu0 %v3968
    %v4420 = vpop.f32.mrf.mxu0
    %v4421 = vadd.f32 %v4372, %v4420
    %v4422 = vpop.f32.mrf.mxu0
    %v4423 = vadd.f32 %v4374, %v4422
    %4424 = vdwg.mxu0
    %4425 = vxpose.xlu0.b32.start [1/16] %v4386, 128
    %4426 = vxpose.xlu0.b32.cont [2/16] %v4388, 128
    %4427 = vxpose.xlu0.b32.cont [3/16] %v4391, 128
    %4428 = vxpose.xlu0.b32.cont [4/16] %v4393, 128
    %4429 = vxpose.xlu0.b32.cont [5/16] %v4396, 128
    %4430 = vxpose.xlu0.b32.cont [6/16] %v4398, 128
    %4431 = vxpose.xlu0.b32.cont [7/16] %v4401, 128
    %4432 = vxpose.xlu0.b32.cont [8/16] %v4403, 128
    %4433 = vxpose.xlu0.b32.cont [9/16] %v4406, 128
    %4434 = vxpose.xlu0.b32.cont [10/16] %v4408, 128
    %4435 = vxpose.xlu0.b32.cont [11/16] %v4411, 128
    %4436 = vxpose.xlu0.b32.cont [12/16] %v4413, 128
    %4437 = vxpose.xlu0.b32.cont [13/16] %v4416, 128
    %4438 = vxpose.xlu0.b32.cont [14/16] %v4418, 128
    %4439 = vxpose.xlu0.b32.cont [15/16] %v4421, 128
    %4440 = vxpose.xlu0.b32.end [16/16] %v4423, 128
    %v4441 = vpop.trf.xlu0
    %v4442 = vpop.trf.xlu0
    %v4443 = vpop.trf.xlu0
    %v4444 = vpop.trf.xlu0
    %v4445 = vpop.trf.xlu0
    %v4446 = vpop.trf.xlu0
    %v4447 = vpop.trf.xlu0
    %v4448 = vpop.trf.xlu0
    %v4449 = vpop.trf.xlu0
    %v4450 = vpop.trf.xlu0
    %v4451 = vpop.trf.xlu0
    %v4452 = vpop.trf.xlu0
    %v4453 = vpop.trf.xlu0
    %v4454 = vpop.trf.xlu0
    %v4455 = vpop.trf.xlu0
    %v4456 = vpop.trf.xlu0
    %4457 = vst [vmem:[%s9] sm:$0xff] %v4441
    // Predicated region
    $region54: #{latency_predictor_forward.1} parent=1 // pred_check
      _
    $region55: #{latency_predictor_forward.1} parent=1 // pred_check_branch
      %4459 = sbr.rel (0) target = $region57
    $region56: #{latency_predictor_forward.1} parent=1 // pred_region
      _
    $region57: #{latency_predictor_forward.1} parent=1 // pred_fallthru
      _
    // Predicated region
    $region58: #{latency_predictor_forward.1} parent=1 // pred_check
      _
    $region59: #{latency_predictor_forward.1} parent=1 // pred_check_branch
      %4461 = sbr.rel (0) target = $region61
    $region60: #{latency_predictor_forward.1} parent=1 // pred_region
      _
    $region61: #{latency_predictor_forward.1} parent=1 // pred_fallthru
      _
    %4462 = vsyncpa [#allocation3], 1
    %4463 = vsyncpa [#allocation5], 1
    %4464 = vsyncpa [#allocation8], 1

</llo_original>
